<compile_context>
chip_gen: v7x
topology: tpu7x:2x2x1
jax: 0.10.0
libtpu: 0.0.40
codegen_flags: <defaults>
</compile_context>

<pallas_src>
import functools

import jax
import jax.numpy as jnp
from jax.experimental import pallas as pl
from jax.experimental.pallas import tpu as pltpu


def _relpos_attn_kernel(x_ref, wqkv_ref, wo_ref, bout_ref, bias_ref, o_ref,
                        *, heads, dh, bt, seq, ch):
    # x_ref:    (Bt, L, C)   batch tile (f32)
    # wqkv_ref: (C, 3C)      fused QKV weight, bf16, scale folded into Q cols
    # wo_ref:   (C, C)       output-projection weight, bf16
    # bout_ref: (1, C)       output bias, f32
    # bias_ref: (H, L, L)    relative-position bias (pre-gathered), f32
    # o_ref:    (Bt, L, C)
    m = bt * seq

    x2 = x_ref[...].reshape(m, ch).astype(jnp.bfloat16)           # (M, C)

    # Single fused QKV projection for all heads (one wide MXU matmul).
    qkv = jnp.dot(x2, wqkv_ref[...],
                  preferred_element_type=jnp.float32)              # (M, 3C)

    bias = bias_ref[...]                                           # (H, L, L)

    ctx_parts = []
    for h in range(heads):                                         # static unroll (H small)
        # Static per-head lane slices of the fused QKV result.
        q = qkv[:, 0 * ch + h * dh:0 * ch + (h + 1) * dh].reshape(bt, seq, dh)
        k = qkv[:, 1 * ch + h * dh:1 * ch + (h + 1) * dh].reshape(bt, seq, dh)
        v = qkv[:, 2 * ch + h * dh:2 * ch + (h + 1) * dh].reshape(bt, seq, dh)

        # scores = q @ k^T (scale already folded into the Q weights),
        # batched over the batch tile.
        s = jnp.einsum('bqd,bkd->bqk', q, k,
                       preferred_element_type=jnp.float32)         # (Bt, L, L)
        s = s + bias[h][None, :, :]

        # Numerically-stable softmax in f32; denominator reciprocal on the EUP.
        mx = jnp.max(s, axis=-1, keepdims=True)
        p = jnp.exp(s - mx)
        denom = jnp.sum(p, axis=-1, keepdims=True)
        attn = (p * pl.reciprocal(denom, approx=True)).astype(jnp.bfloat16)

        # attention * V : (Bt, L, L) @ (Bt, L, dh) -> (Bt, L, dh), bf16 MXU feed.
        ctx = jnp.einsum('bqk,bkd->bqd', attn, v.astype(jnp.bfloat16),
                         preferred_element_type=jnp.float32)
        ctx_parts.append(ctx.reshape(m, dh))

    # One wide output projection for all heads.
    ctx_all = jnp.concatenate(ctx_parts, axis=-1).astype(jnp.bfloat16)  # (M, C)
    out = jnp.dot(ctx_all, wo_ref[...],
                  preferred_element_type=jnp.float32)              # (M, C)
    out = out + bout_ref[...]                                      # + (1, C)
    o_ref[...] = out.reshape(bt, seq, ch).astype(o_ref.dtype)


def prepare_rel_pos_attention_params(w_qkv, w_out, b_out, rel_bias, *, heads):
    """One-time parameter glue (hoisted out of the per-call path).

    w_qkv: (3C, C), w_out: (C, C), b_out: (C,), rel_bias: (15, 15, H).
    Returns the fused bf16 QKV weight (scale folded into Q), bf16 output
    projection, f32 output bias and the (H, 64, 64) relative-position bias.
    """
    three_c, c = w_qkv.shape
    assert three_c == 3 * c and c % heads == 0
    dh = c // heads
    scale = dh ** (-0.5)

    # (C, 3C); output columns ordered [3, H, dh] to match the PyTorch view().
    wt = jnp.asarray(w_qkv, jnp.float32).T
    scale_cols = jnp.concatenate(
        [jnp.full((c,), scale, jnp.float32), jnp.ones((2 * c,), jnp.float32)])
    wqkv = (wt * scale_cols[None, :]).astype(jnp.bfloat16)          # (C, 3C)

    wo = jnp.asarray(w_out, jnp.float32).T.astype(jnp.bfloat16)     # (C, C)
    b2 = jnp.asarray(b_out, jnp.float32).reshape(1, c)              # (1, C)

    # Relative-position bias gather (static 8x8 grid -> L = 64).
    rows = jnp.arange(8)
    cols = jnp.arange(8)
    ri = jnp.repeat(rows, 8)                                        # (64,)
    ci = jnp.tile(cols, 8)                                          # (64,)
    dr = jnp.clip(ri[:, None] - ri[None, :], -7, 7) + 7             # (64, 64)
    dc = jnp.clip(ci[:, None] - ci[None, :], -7, 7) + 7
    bias = jnp.asarray(rel_bias, jnp.float32)[dr, dc]               # (64, 64, H)
    bias = jnp.transpose(bias, (2, 0, 1))                           # (H, 64, 64)

    return dict(wqkv=wqkv, wo=wo, b_out=b2, bias=bias)


def _pick_batch_tile(batch):
    """Largest divisor of batch that is <= 8 (target M = bt*64 ~ 256-512)."""
    for bt in range(min(batch, 8), 0, -1):
        if batch % bt == 0:
            return bt
    return 1


def rel_pos_self_attention(x, params, *, heads):
    """x: (B, L, C); params from prepare_rel_pos_attention_params. -> (B, L, C)"""
    B, L, C = x.shape
    assert C % heads == 0
    assert L == 64, "relative bias construction assumes an 8x8 grid (L=64)"
    dh = C // heads

    bt = _pick_batch_tile(B)
    grid = (B // bt,)

    kernel = functools.partial(_relpos_attn_kernel,
                               heads=heads, dh=dh, bt=bt, seq=L, ch=C)

    out = pl.pallas_call(
        kernel,
        out_shape=jax.ShapeDtypeStruct((B, L, C), x.dtype),
        grid_spec=pltpu.PrefetchScalarGridSpec(
            num_scalar_prefetch=0,
            grid=grid,
            in_specs=[
                pl.BlockSpec((bt, L, C), lambda b: (b, 0, 0)),       # x
                pl.BlockSpec((C, 3 * C), lambda b: (0, 0)),          # fused W_qkv
                pl.BlockSpec((C, C), lambda b: (0, 0)),              # W_out
                pl.BlockSpec((1, C), lambda b: (0, 0)),              # b_out
                pl.BlockSpec((heads, L, L), lambda b: (0, 0, 0)),    # rel bias
            ],
            out_specs=pl.BlockSpec((bt, L, C), lambda b: (b, 0, 0)),
        ),
        compiler_params=pltpu.CompilerParams(
            dimension_semantics=("parallel",)),
    )(x, params['wqkv'], params['wo'], params['b_out'], params['bias'])
    return out


def _reference(x, w_qkv, w_out, b_out, rel_bias, *, heads):
    """Pure-JAX reference mirroring the PyTorch forward (dropout = identity)."""
    B, L, C = x.shape
    dh = C // heads
    scale = dh ** (-0.5)
    qkv = x @ w_qkv.T                                               # (B, L, 3C)
    qkv = qkv.reshape(B, L, 3, heads, dh).transpose(2, 0, 3, 1, 4)
    q, k, v = qkv[0], qkv[1], qkv[2]                                # (B, H, L, dh)
    scores = jnp.einsum('bhqd,bhkd->bhqk', q, k) * scale
    rows = jnp.arange(8); cols = jnp.arange(8)
    ri = jnp.repeat(rows, 8); ci = jnp.tile(cols, 8)
    dr = jnp.clip(ri[:, None] - ri[None, :], -7, 7) + 7
    dc = jnp.clip(ci[:, None] - ci[None, :], -7, 7) + 7
    bias = jnp.transpose(rel_bias[dr, dc], (2, 0, 1))[None]         # (1, H, L, L)
    attn = jax.nn.softmax(scores + bias, axis=-1)
    out = jnp.einsum('bhqk,bhkd->bhqd', attn, v)
    out = out.transpose(0, 2, 1, 3).reshape(B, L, C)
    return out @ w_out.T + b_out


if __name__ == "__main__":
    B, L, dim, heads = 2, 64, 32, 4  # L=64 is implied by the 8x8 rel-pos grid

    key = jax.random.PRNGKey(0)
    k_x, k_qkv, k_out, k_bout, k_bias = jax.random.split(key, 5)

    x = jax.random.normal(k_x, (B, L, dim), dtype=jnp.float32)
    # Deterministic synthetic parameters (shapes per the module __init__).
    w_qkv = jax.random.normal(k_qkv, (3 * dim, dim), dtype=jnp.float32) * 0.1
    w_out = jax.random.normal(k_out, (dim, dim), dtype=jnp.float32) * 0.1
    b_out = jax.random.normal(k_bout, (dim,), dtype=jnp.float32) * 0.1
    rel_bias = jax.random.normal(k_bias, (15, 15, heads), dtype=jnp.float32) * 0.1

    # Parameter glue is done once (hoisted out of the per-call path).
    params = prepare_rel_pos_attention_params(w_qkv, w_out, b_out, rel_bias,
                                              heads=heads)
    params = jax.tree_util.tree_map(jax.block_until_ready, params)

    out = rel_pos_self_attention(x, params, heads=heads)
    out = jax.block_until_ready(out)

    ref = _reference(x, w_qkv, w_out, b_out, rel_bias, heads=heads)
    assert out.shape == (B, L, dim)
    # Tolerance accounts for bf16 MXU inputs (weights / x / softmax probs) plus
    # the EUP approximate reciprocal in the softmax denominator.
    assert jnp.allclose(out, ref, atol=2e-2, rtol=2e-2), "mismatch vs reference"

    print("KERNEL_OK")
</pallas_src>

<mosaic_0001>
module attributes {stable_mosaic.version = 11 : i64} {
  func.func @_relpos_attn_kernel(%arg0: i32, %arg1: memref<2x64x32xf32, #tpu.memory_space<vmem>>, %arg2: memref<32x96xbf16, #tpu.memory_space<vmem>>, %arg3: memref<32x32xbf16, #tpu.memory_space<vmem>>, %arg4: memref<1x32xf32, #tpu.memory_space<vmem>>, %arg5: memref<4x64x64xf32, #tpu.memory_space<vmem>>, %arg6: memref<2x64x32xf32, #tpu.memory_space<vmem>>) attributes {dimension_semantics = [#tpu.dimension_semantics<parallel>], iteration_bounds = array<i64: 1>, scalar_prefetch = 0 : i64, scratch_operands = 0 : i64, tpu.core_type = #tpu.core_type<tc>, window_params = [{transform_indices = @transform_0, window_bounds = array<i64: 2, 64, 32>}, {pipeline_mode = #tpu.pipeline_mode<synchronous>, transform_indices = @transform_1, window_bounds = array<i64: 32, 96>}, {pipeline_mode = #tpu.pipeline_mode<synchronous>, transform_indices = @transform_2, window_bounds = array<i64: 32, 32>}, {pipeline_mode = #tpu.pipeline_mode<synchronous>, transform_indices = @transform_3, window_bounds = array<i64: 1, 32>}, {pipeline_mode = #tpu.pipeline_mode<synchronous>, transform_indices = @transform_4, window_bounds = array<i64: 4, 64, 64>}, {transform_indices = @transform_5, window_bounds = array<i64: 2, 64, 32>}]} {
    %c0 = arith.constant 0 : index
    %c0_0 = arith.constant 0 : index
    %c0_1 = arith.constant 0 : index
    %0 = vector.load %arg1[%c0, %c0_0, %c0_1] : memref<2x64x32xf32, #tpu.memory_space<vmem>>, vector<2x64x32xf32>
    %1 = vector.shape_cast %0 : vector<2x64x32xf32> to vector<128x32xf32>
    %2 = arith.truncf %1 : vector<128x32xf32> to vector<128x32xbf16>
    %c0_2 = arith.constant 0 : index
    %c0_3 = arith.constant 0 : index
    %3 = vector.load %arg2[%c0_2, %c0_3] : memref<32x96xbf16, #tpu.memory_space<vmem>>, vector<32x96xbf16>
    %cst = arith.constant dense<0.000000e+00> : vector<128x96xf32>
    %4 = tpu.matmul %2, %3, %cst {dimension_numbers = #tpu.dot_dimension_numbers<[1], [0], [0], [1], [0, 0, 1, 1], [], []>} : vector<128x32xbf16>, vector<32x96xbf16>, vector<128x96xf32> -> vector<128x96xf32>
    %c0_4 = arith.constant 0 : index
    %c0_5 = arith.constant 0 : index
    %c0_6 = arith.constant 0 : index
    %5 = vector.load %arg5[%c0_4, %c0_5, %c0_6] : memref<4x64x64xf32, #tpu.memory_space<vmem>>, vector<4x64x64xf32>
    %6 = vector.extract_strided_slice %4 {offsets = [0, 0], sizes = [128, 8], strides = [1, 1]} : vector<128x96xf32> to vector<128x8xf32>
    %7 = vector.shape_cast %6 : vector<128x8xf32> to vector<2x64x8xf32>
    %8 = vector.extract_strided_slice %4 {offsets = [0, 32], sizes = [128, 8], strides = [1, 1]} : vector<128x96xf32> to vector<128x8xf32>
    %9 = vector.shape_cast %8 : vector<128x8xf32> to vector<2x64x8xf32>
    %10 = vector.extract_strided_slice %4 {offsets = [0, 64], sizes = [128, 8], strides = [1, 1]} : vector<128x96xf32> to vector<128x8xf32>
    %11 = vector.shape_cast %10 : vector<128x8xf32> to vector<2x64x8xf32>
    "tpu.trace_start"() <{level = 10 : i32, message = "bqd,bkd->bqk"}> : () -> ()
    %cst_7 = arith.constant dense<0.000000e+00> : vector<2x64x64xf32>
    %12 = tpu.matmul %7, %9, %cst_7 {dimension_numbers = #tpu.dot_dimension_numbers<[2], [2], [1], [1], [0, 0, 0, 1, 1, 1], [0], [0]>} : vector<2x64x8xf32>, vector<2x64x8xf32>, vector<2x64x64xf32> -> vector<2x64x64xf32>
    "tpu.trace_stop"() : () -> ()
    %13 = vector.extract_strided_slice %5 {offsets = [0, 0, 0], sizes = [1, 64, 64], strides = [1, 1, 1]} : vector<4x64x64xf32> to vector<1x64x64xf32>
    %14 = vector.shape_cast %13 : vector<1x64x64xf32> to vector<64x64xf32>
    %15 = vector.shape_cast %14 : vector<64x64xf32> to vector<1x64x64xf32>
    %16 = vector.broadcast %15 : vector<1x64x64xf32> to vector<2x64x64xf32>
    %17 = arith.addf %12, %16 : vector<2x64x64xf32>
    %cst_8 = arith.constant dense<0xFF800000> : vector<2x64xf32>
    %18 = vector.multi_reduction <maximumf>, %17, %cst_8 [2] : vector<2x64x64xf32> to vector<2x64xf32>
    %19 = vector.shape_cast %18 : vector<2x64xf32> to vector<2x64x1xf32>
    %20 = vector.broadcast %19 : vector<2x64x1xf32> to vector<2x64x64xf32>
    %21 = arith.subf %17, %20 : vector<2x64x64xf32>
    %22 = math.exp %21 : vector<2x64x64xf32>
    %cst_9 = arith.constant dense<0.000000e+00> : vector<2x64xf32>
    %23 = vector.multi_reduction <add>, %22, %cst_9 [2] : vector<2x64x64xf32> to vector<2x64xf32>
    %24 = vector.shape_cast %23 : vector<2x64xf32> to vector<2x64x1xf32>
    %25 = tpu.reciprocal %24 {approx = true} : vector<2x64x1xf32> -> vector<2x64x1xf32>
    %26 = vector.broadcast %25 : vector<2x64x1xf32> to vector<2x64x64xf32>
    %27 = arith.mulf %22, %26 : vector<2x64x64xf32>
    %28 = arith.truncf %27 : vector<2x64x64xf32> to vector<2x64x64xbf16>
    %29 = arith.truncf %11 : vector<2x64x8xf32> to vector<2x64x8xbf16>
    "tpu.trace_start"() <{level = 10 : i32, message = "bqk,bkd->bqd"}> : () -> ()
    %cst_10 = arith.constant dense<0.000000e+00> : vector<2x64x8xf32>
    %30 = tpu.matmul %28, %29, %cst_10 {dimension_numbers = #tpu.dot_dimension_numbers<[2], [1], [1], [2], [0, 0, 0, 1, 1, 2], [0], [0]>} : vector<2x64x64xbf16>, vector<2x64x8xbf16>, vector<2x64x8xf32> -> vector<2x64x8xf32>
    "tpu.trace_stop"() : () -> ()
    %31 = vector.shape_cast %30 : vector<2x64x8xf32> to vector<128x8xf32>
    %32 = vector.extract_strided_slice %4 {offsets = [0, 8], sizes = [128, 8], strides = [1, 1]} : vector<128x96xf32> to vector<128x8xf32>
    %33 = vector.shape_cast %32 : vector<128x8xf32> to vector<2x64x8xf32>
    %34 = vector.extract_strided_slice %4 {offsets = [0, 40], sizes = [128, 8], strides = [1, 1]} : vector<128x96xf32> to vector<128x8xf32>
    %35 = vector.shape_cast %34 : vector<128x8xf32> to vector<2x64x8xf32>
    %36 = vector.extract_strided_slice %4 {offsets = [0, 72], sizes = [128, 8], strides = [1, 1]} : vector<128x96xf32> to vector<128x8xf32>
    %37 = vector.shape_cast %36 : vector<128x8xf32> to vector<2x64x8xf32>
    "tpu.trace_start"() <{level = 10 : i32, message = "bqd,bkd->bqk"}> : () -> ()
    %cst_11 = arith.constant dense<0.000000e+00> : vector<2x64x64xf32>
    %38 = tpu.matmul %33, %35, %cst_11 {dimension_numbers = #tpu.dot_dimension_numbers<[2], [2], [1], [1], [0, 0, 0, 1, 1, 1], [0], [0]>} : vector<2x64x8xf32>, vector<2x64x8xf32>, vector<2x64x64xf32> -> vector<2x64x64xf32>
    "tpu.trace_stop"() : () -> ()
    %39 = vector.extract_strided_slice %5 {offsets = [1, 0, 0], sizes = [1, 64, 64], strides = [1, 1, 1]} : vector<4x64x64xf32> to vector<1x64x64xf32>
    %40 = vector.shape_cast %39 : vector<1x64x64xf32> to vector<64x64xf32>
    %41 = vector.shape_cast %40 : vector<64x64xf32> to vector<1x64x64xf32>
    %42 = vector.broadcast %41 : vector<1x64x64xf32> to vector<2x64x64xf32>
    %43 = arith.addf %38, %42 : vector<2x64x64xf32>
    %cst_12 = arith.constant dense<0xFF800000> : vector<2x64xf32>
    %44 = vector.multi_reduction <maximumf>, %43, %cst_12 [2] : vector<2x64x64xf32> to vector<2x64xf32>
    %45 = vector.shape_cast %44 : vector<2x64xf32> to vector<2x64x1xf32>
    %46 = vector.broadcast %45 : vector<2x64x1xf32> to vector<2x64x64xf32>
    %47 = arith.subf %43, %46 : vector<2x64x64xf32>
    %48 = math.exp %47 : vector<2x64x64xf32>
    %cst_13 = arith.constant dense<0.000000e+00> : vector<2x64xf32>
    %49 = vector.multi_reduction <add>, %48, %cst_13 [2] : vector<2x64x64xf32> to vector<2x64xf32>
    %50 = vector.shape_cast %49 : vector<2x64xf32> to vector<2x64x1xf32>
    %51 = tpu.reciprocal %50 {approx = true} : vector<2x64x1xf32> -> vector<2x64x1xf32>
    %52 = vector.broadcast %51 : vector<2x64x1xf32> to vector<2x64x64xf32>
    %53 = arith.mulf %48, %52 : vector<2x64x64xf32>
    %54 = arith.truncf %53 : vector<2x64x64xf32> to vector<2x64x64xbf16>
    %55 = arith.truncf %37 : vector<2x64x8xf32> to vector<2x64x8xbf16>
    "tpu.trace_start"() <{level = 10 : i32, message = "bqk,bkd->bqd"}> : () -> ()
    %cst_14 = arith.constant dense<0.000000e+00> : vector<2x64x8xf32>
    %56 = tpu.matmul %54, %55, %cst_14 {dimension_numbers = #tpu.dot_dimension_numbers<[2], [1], [1], [2], [0, 0, 0, 1, 1, 2], [0], [0]>} : vector<2x64x64xbf16>, vector<2x64x8xbf16>, vector<2x64x8xf32> -> vector<2x64x8xf32>
    "tpu.trace_stop"() : () -> ()
    %57 = vector.shape_cast %56 : vector<2x64x8xf32> to vector<128x8xf32>
    %58 = vector.extract_strided_slice %4 {offsets = [0, 16], sizes = [128, 8], strides = [1, 1]} : vector<128x96xf32> to vector<128x8xf32>
    %59 = vector.shape_cast %58 : vector<128x8xf32> to vector<2x64x8xf32>
    %60 = vector.extract_strided_slice %4 {offsets = [0, 48], sizes = [128, 8], strides = [1, 1]} : vector<128x96xf32> to vector<128x8xf32>
    %61 = vector.shape_cast %60 : vector<128x8xf32> to vector<2x64x8xf32>
    %62 = vector.extract_strided_slice %4 {offsets = [0, 80], sizes = [128, 8], strides = [1, 1]} : vector<128x96xf32> to vector<128x8xf32>
    %63 = vector.shape_cast %62 : vector<128x8xf32> to vector<2x64x8xf32>
    "tpu.trace_start"() <{level = 10 : i32, message = "bqd,bkd->bqk"}> : () -> ()
    %cst_15 = arith.constant dense<0.000000e+00> : vector<2x64x64xf32>
    %64 = tpu.matmul %59, %61, %cst_15 {dimension_numbers = #tpu.dot_dimension_numbers<[2], [2], [1], [1], [0, 0, 0, 1, 1, 1], [0], [0]>} : vector<2x64x8xf32>, vector<2x64x8xf32>, vector<2x64x64xf32> -> vector<2x64x64xf32>
    "tpu.trace_stop"() : () -> ()
    %65 = vector.extract_strided_slice %5 {offsets = [2, 0, 0], sizes = [1, 64, 64], strides = [1, 1, 1]} : vector<4x64x64xf32> to vector<1x64x64xf32>
    %66 = vector.shape_cast %65 : vector<1x64x64xf32> to vector<64x64xf32>
    %67 = vector.shape_cast %66 : vector<64x64xf32> to vector<1x64x64xf32>
    %68 = vector.broadcast %67 : vector<1x64x64xf32> to vector<2x64x64xf32>
    %69 = arith.addf %64, %68 : vector<2x64x64xf32>
    %cst_16 = arith.constant dense<0xFF800000> : vector<2x64xf32>
    %70 = vector.multi_reduction <maximumf>, %69, %cst_16 [2] : vector<2x64x64xf32> to vector<2x64xf32>
    %71 = vector.shape_cast %70 : vector<2x64xf32> to vector<2x64x1xf32>
    %72 = vector.broadcast %71 : vector<2x64x1xf32> to vector<2x64x64xf32>
    %73 = arith.subf %69, %72 : vector<2x64x64xf32>
    %74 = math.exp %73 : vector<2x64x64xf32>
    %cst_17 = arith.constant dense<0.000000e+00> : vector<2x64xf32>
    %75 = vector.multi_reduction <add>, %74, %cst_17 [2] : vector<2x64x64xf32> to vector<2x64xf32>
    %76 = vector.shape_cast %75 : vector<2x64xf32> to vector<2x64x1xf32>
    %77 = tpu.reciprocal %76 {approx = true} : vector<2x64x1xf32> -> vector<2x64x1xf32>
    %78 = vector.broadcast %77 : vector<2x64x1xf32> to vector<2x64x64xf32>
    %79 = arith.mulf %74, %78 : vector<2x64x64xf32>
    %80 = arith.truncf %79 : vector<2x64x64xf32> to vector<2x64x64xbf16>
    %81 = arith.truncf %63 : vector<2x64x8xf32> to vector<2x64x8xbf16>
    "tpu.trace_start"() <{level = 10 : i32, message = "bqk,bkd->bqd"}> : () -> ()
    %cst_18 = arith.constant dense<0.000000e+00> : vector<2x64x8xf32>
    %82 = tpu.matmul %80, %81, %cst_18 {dimension_numbers = #tpu.dot_dimension_numbers<[2], [1], [1], [2], [0, 0, 0, 1, 1, 2], [0], [0]>} : vector<2x64x64xbf16>, vector<2x64x8xbf16>, vector<2x64x8xf32> -> vector<2x64x8xf32>
    "tpu.trace_stop"() : () -> ()
    %83 = vector.shape_cast %82 : vector<2x64x8xf32> to vector<128x8xf32>
    %84 = vector.extract_strided_slice %4 {offsets = [0, 24], sizes = [128, 8], strides = [1, 1]} : vector<128x96xf32> to vector<128x8xf32>
    %85 = vector.shape_cast %84 : vector<128x8xf32> to vector<2x64x8xf32>
    %86 = vector.extract_strided_slice %4 {offsets = [0, 56], sizes = [128, 8], strides = [1, 1]} : vector<128x96xf32> to vector<128x8xf32>
    %87 = vector.shape_cast %86 : vector<128x8xf32> to vector<2x64x8xf32>
    %88 = vector.extract_strided_slice %4 {offsets = [0, 88], sizes = [128, 8], strides = [1, 1]} : vector<128x96xf32> to vector<128x8xf32>
    %89 = vector.shape_cast %88 : vector<128x8xf32> to vector<2x64x8xf32>
    "tpu.trace_start"() <{level = 10 : i32, message = "bqd,bkd->bqk"}> : () -> ()
    %cst_19 = arith.constant dense<0.000000e+00> : vector<2x64x64xf32>
    %90 = tpu.matmul %85, %87, %cst_19 {dimension_numbers = #tpu.dot_dimension_numbers<[2], [2], [1], [1], [0, 0, 0, 1, 1, 1], [0], [0]>} : vector<2x64x8xf32>, vector<2x64x8xf32>, vector<2x64x64xf32> -> vector<2x64x64xf32>
    "tpu.trace_stop"() : () -> ()
    %91 = vector.extract_strided_slice %5 {offsets = [3, 0, 0], sizes = [1, 64, 64], strides = [1, 1, 1]} : vector<4x64x64xf32> to vector<1x64x64xf32>
    %92 = vector.shape_cast %91 : vector<1x64x64xf32> to vector<64x64xf32>
    %93 = vector.shape_cast %92 : vector<64x64xf32> to vector<1x64x64xf32>
    %94 = vector.broadcast %93 : vector<1x64x64xf32> to vector<2x64x64xf32>
    %95 = arith.addf %90, %94 : vector<2x64x64xf32>
    %cst_20 = arith.constant dense<0xFF800000> : vector<2x64xf32>
    %96 = vector.multi_reduction <maximumf>, %95, %cst_20 [2] : vector<2x64x64xf32> to vector<2x64xf32>
    %97 = vector.shape_cast %96 : vector<2x64xf32> to vector<2x64x1xf32>
    %98 = vector.broadcast %97 : vector<2x64x1xf32> to vector<2x64x64xf32>
    %99 = arith.subf %95, %98 : vector<2x64x64xf32>
    %100 = math.exp %99 : vector<2x64x64xf32>
    %cst_21 = arith.constant dense<0.000000e+00> : vector<2x64xf32>
    %101 = vector.multi_reduction <add>, %100, %cst_21 [2] : vector<2x64x64xf32> to vector<2x64xf32>
    %102 = vector.shape_cast %101 : vector<2x64xf32> to vector<2x64x1xf32>
    %103 = tpu.reciprocal %102 {approx = true} : vector<2x64x1xf32> -> vector<2x64x1xf32>
    %104 = vector.broadcast %103 : vector<2x64x1xf32> to vector<2x64x64xf32>
    %105 = arith.mulf %100, %104 : vector<2x64x64xf32>
    %106 = arith.truncf %105 : vector<2x64x64xf32> to vector<2x64x64xbf16>
    %107 = arith.truncf %89 : vector<2x64x8xf32> to vector<2x64x8xbf16>
    "tpu.trace_start"() <{level = 10 : i32, message = "bqk,bkd->bqd"}> : () -> ()
    %cst_22 = arith.constant dense<0.000000e+00> : vector<2x64x8xf32>
    %108 = tpu.matmul %106, %107, %cst_22 {dimension_numbers = #tpu.dot_dimension_numbers<[2], [1], [1], [2], [0, 0, 0, 1, 1, 2], [0], [0]>} : vector<2x64x64xbf16>, vector<2x64x8xbf16>, vector<2x64x8xf32> -> vector<2x64x8xf32>
    "tpu.trace_stop"() : () -> ()
    %109 = vector.shape_cast %108 : vector<2x64x8xf32> to vector<128x8xf32>
    %110 = tpu.concatenate %31, %57, %83, %109 in 1 : vector<128x8xf32>, vector<128x8xf32>, vector<128x8xf32>, vector<128x8xf32> -> vector<128x32xf32>
    %111 = arith.truncf %110 : vector<128x32xf32> to vector<128x32xbf16>
    %c0_23 = arith.constant 0 : index
    %c0_24 = arith.constant 0 : index
    %112 = vector.load %arg3[%c0_23, %c0_24] : memref<32x32xbf16, #tpu.memory_space<vmem>>, vector<32x32xbf16>
    %cst_25 = arith.constant dense<0.000000e+00> : vector<128x32xf32>
    %113 = tpu.matmul %111, %112, %cst_25 {dimension_numbers = #tpu.dot_dimension_numbers<[1], [0], [0], [1], [0, 0, 1, 1], [], []>} : vector<128x32xbf16>, vector<32x32xbf16>, vector<128x32xf32> -> vector<128x32xf32>
    %c0_26 = arith.constant 0 : index
    %c0_27 = arith.constant 0 : index
    %114 = vector.load %arg4[%c0_26, %c0_27] : memref<1x32xf32, #tpu.memory_space<vmem>>, vector<1x32xf32>
    %115 = vector.broadcast %114 : vector<1x32xf32> to vector<128x32xf32>
    %116 = arith.addf %113, %115 : vector<128x32xf32>
    %117 = vector.shape_cast %116 : vector<128x32xf32> to vector<2x64x32xf32>
    %c0_28 = arith.constant 0 : index
    %c0_29 = arith.constant 0 : index
    %c0_30 = arith.constant 0 : index
    %118 = vector.load %arg6[%c0_28, %c0_29, %c0_30] : memref<2x64x32xf32, #tpu.memory_space<vmem>>, vector<2x64x32xf32>
    tpu.vector_store %arg6[%c0_28, %c0_29, %c0_30], %117 {strides = array<i32>} : memref<2x64x32xf32, #tpu.memory_space<vmem>>, vector<2x64x32xf32>,
    return
  }
  func.func @transform_0(%arg0: i32) -> (i32, i32, i32) {
    %c0_i32 = arith.constant 0 : i32
    %c0_i32_0 = arith.constant 0 : i32
    %c0_i32_1 = arith.constant 0 : i32
    return %arg0, %c0_i32, %c0_i32_0 : i32, i32, i32
  }
  func.func @transform_1(%arg0: i32) -> (i32, i32) {
    %c0_i32 = arith.constant 0 : i32
    %c0_i32_0 = arith.constant 0 : i32
    %c0_i32_1 = arith.constant 0 : i32
    return %c0_i32, %c0_i32_0 : i32, i32
  }
  func.func @transform_2(%arg0: i32) -> (i32, i32) {
    %c0_i32 = arith.constant 0 : i32
    %c0_i32_0 = arith.constant 0 : i32
    %c0_i32_1 = arith.constant 0 : i32
    return %c0_i32, %c0_i32_0 : i32, i32
  }
  func.func @transform_3(%arg0: i32) -> (i32, i32) {
    %c0_i32 = arith.constant 0 : i32
    %c0_i32_0 = arith.constant 0 : i32
    %c0_i32_1 = arith.constant 0 : i32
    return %c0_i32, %c0_i32_0 : i32, i32
  }
  func.func @transform_4(%arg0: i32) -> (i32, i32, i32) {
    %c0_i32 = arith.constant 0 : i32
    %c0_i32_0 = arith.constant 0 : i32
    %c0_i32_1 = arith.constant 0 : i32
    %c0_i32_2 = arith.constant 0 : i32
    return %c0_i32, %c0_i32_0, %c0_i32_1 : i32, i32, i32
  }
  func.func @transform_5(%arg0: i32) -> (i32, i32, i32) {
    %c0_i32 = arith.constant 0 : i32
    %c0_i32_0 = arith.constant 0 : i32
    %c0_i32_1 = arith.constant 0 : i32
    return %arg0, %c0_i32, %c0_i32_0 : i32, i32, i32
  }
}

</mosaic_0001>

<llo_original>
// kernel: tpu_custom_call.1
$region0: #{tpu_custom_call.1}
  #allocation0 [shape = 'u32[]', space=smem, size = 0x4, offset = 0x4, fixed_abs, tag = 'smem constant byte address 0x4 - core index']
  #allocation1 [shape = 'u32[144,128]{1,0:T(1,128)}', space=vmem, size = 0x12000, scoped, tag = 'internal scratch']
  %s0 = inlined_call_operand.vmem [shape: f32[2,64,32], index: 0, kind: input, shape index: {}]
  %s1 = inlined_call_operand.vmem [shape: bf16[32,96], index: 1, kind: input, shape index: {}]
  %s2 = inlined_call_operand.vmem [shape: bf16[32,32], index: 2, kind: input, shape index: {}]
  %s3 = inlined_call_operand.vmem [shape: f32[1,32], index: 3, kind: input, shape index: {}]
  %s4 = inlined_call_operand.hbm [shape: f32[4,64,64], index: 4, kind: input, shape index: {}]
  %s5 = inlined_call_operand.vmem [shape: f32[2,64,32], index: 5, kind: output, shape index: {}]
  %s6 = sld [smem:[#allocation0]]
  $region34: #{tpu_custom_call.1} parent=0
    _
  %s8 = ssub.s32 1, %s6
  %s9 = scalar_select 0, %s8, %s6
  $region1: #{tpu_custom_call.1} parent=0
    #allocation2 [shape = 'u8[131072]{0}', space=vmem, size = 0x20000, scoped, tag = 'input window, operand 4, single buffered']
    #allocation3 [shape = 's32[1]{0}', space=sflag, size = 0x4, scoped, tag = 'scoped memory for tpu_custom_call.1']
    %10 = vsyncpa [#allocation3], 0
    // Predicated region
    $region2: #{tpu_custom_call.1} parent=1 // pred_check
      _
    $region3: #{tpu_custom_call.1} parent=1 // pred_check_branch
      %12 = sbr.rel (0) target = $region5
    $region4: #{tpu_custom_call.1} parent=1 // pred_region
      _
    $region5: #{tpu_custom_call.1} parent=1 // pred_fallthru
      _
    // Predicated region
    $region6: #{tpu_custom_call.1} parent=1 // pred_check
      _
    $region7: #{tpu_custom_call.1} parent=1 // pred_check_branch
      %14 = sbr.rel (0) target = $region9
    $region8: #{tpu_custom_call.1} parent=1 // pred_region
      _
    $region9: #{tpu_custom_call.1} parent=1 // pred_fallthru
      _
    // Predicated region
    $region10: #{tpu_custom_call.1} parent=1 // pred_check
      _
    $region11: #{tpu_custom_call.1} parent=1 // pred_check_branch
      %16 = sbr.rel (0) target = $region13
    $region12: #{tpu_custom_call.1} parent=1 // pred_region
      _
    $region13: #{tpu_custom_call.1} parent=1 // pred_fallthru
      _
    // Predicated region
    $region14: #{tpu_custom_call.1} parent=1 // pred_check
      _
    $region15: #{tpu_custom_call.1} parent=1 // pred_check_branch
      %18 = sbr.rel (0) target = $region17
    $region16: #{tpu_custom_call.1} parent=1 // pred_region
      _
    $region17: #{tpu_custom_call.1} parent=1 // pred_fallthru
      _
    // Predicated region
    $region18: #{tpu_custom_call.1} parent=1 // pred_check
      _
    $region19: #{tpu_custom_call.1} parent=1 // pred_check_branch
      %20 = sbr.rel (0) target = $region21
    $region20: #{tpu_custom_call.1} parent=1 // pred_region
      %s22 = ssub.s32 4096, 4096
      %23 = vsyncadd [#allocation3], %s22
      %s24 = sshll.u32 [#allocation2], 4
      %s25 = int_to_ptr.vmem [resolvable:$true] %s24
      %30 = dma.hbm_to_vmem [thread:$0]  %s4, 4096, %s25, [#allocation3], 128, 128, 8
    $region21: #{tpu_custom_call.1} parent=1 // pred_fallthru
      _
    // Predicated region
    $region22: #{tpu_custom_call.1} parent=1 // pred_check
      _
    $region23: #{tpu_custom_call.1} parent=1 // pred_check_branch
      %32 = sbr.rel (0) target = $region25
    $region24: #{tpu_custom_call.1} parent=1 // pred_region
      %33 = dma.done [#allocation3], 4096
    $region25: #{tpu_custom_call.1} parent=1 // pred_fallthru
      _
    %v35 = vld [vmem:[%s0] sm:$0xff]
    %v36 = vld [vmem:[%s0 + $0x8] sm:$0xff]
    %v37 = vld [vmem:[%s0 + $0x10] sm:$0xff]
    %v38 = vld [vmem:[%s0 + $0x18] sm:$0xff]
    %v39 = vld [vmem:[%s0 + $0x20] sm:$0xff]
    %v40 = vld [vmem:[%s0 + $0x28] sm:$0xff]
    %v41 = vld [vmem:[%s0 + $0x30] sm:$0xff]
    %v42 = vld [vmem:[%s0 + $0x38] sm:$0xff]
    %v43 = vld [vmem:[%s0 + $0x40] sm:$0xff]
    %v44 = vld [vmem:[%s0 + $0x48] sm:$0xff]
    %v45 = vld [vmem:[%s0 + $0x50] sm:$0xff]
    %v46 = vld [vmem:[%s0 + $0x58] sm:$0xff]
    %v47 = vld [vmem:[%s0 + $0x60] sm:$0xff]
    %v48 = vld [vmem:[%s0 + $0x68] sm:$0xff]
    %v49 = vld [vmem:[%s0 + $0x70] sm:$0xff]
    %v50 = vld [vmem:[%s0 + $0x78] sm:$0xff]
    %v51 = vpack.c.bf16 %v36, %v35
    %v52 = vpack.c.bf16 %v38, %v37
    %v53 = vpack.c.bf16 %v40, %v39
    %v54 = vpack.c.bf16 %v42, %v41
    %v55 = vpack.c.bf16 %v44, %v43
    %v56 = vpack.c.bf16 %v46, %v45
    %v57 = vpack.c.bf16 %v48, %v47
    %v58 = vpack.c.bf16 %v50, %v49
    %v59 = vld [vmem:[%s1] sm:$0xf]
    %v60 = vld [vmem:[%s1 + $0x4] sm:$0xf]
    %v61 = vld [vmem:[%s1 + $0x8] sm:$0xf]
    %v62 = vld [vmem:[%s1 + $0xc] sm:$0xf]
    %v67 = vunpack.c.l.b16 %v59
    %v68 = vunpack.c.l.b16 %v60
    %v69 = vunpack.c.l.b16 %v61
    %v70 = vunpack.c.l.b16 %v62
    %v71 = vpack.c.b16 %v68, %v67
    %v72 = vpack.c.b16 %v70, %v69
    %vm75 = vcmask 261120
    %v77 = vsel %vm75, %v51, 0
    %v80 = vsel %vm75, %v52, 0
    %v83 = vsel %vm75, %v53, 0
    %v86 = vsel %vm75, %v54, 0
    %v89 = vsel %vm75, %v55, 0
    %v92 = vsel %vm75, %v56, 0
    %v95 = vsel %vm75, %v57, 0
    %v98 = vsel %vm75, %v58, 0
    %100 = vmatprep.subr.bf16.mxu0 0
    %101 = vmatpush1.bf16.msra.mxu0 %v71
    %102 = vmatprep.subr.bf16.mxu0 0
    %103 = vmatpush1.bf16.msra.mxu0 %v72
    %104 = vmatprep.subr.bf16.mxu0 0
    %105 = vmatpush1.bf16.msra.mxu0 0
    %106 = vmatprep.subr.bf16.mxu0 0
    %107 = vmatpush1.bf16.msra.mxu0 0
    %108 = vmatprep.subr.bf16.mxu0 0
    %109 = vmatpush1.bf16.msra.mxu0 0
    %110 = vmatprep.subr.bf16.mxu0 0
    %111 = vmatpush1.bf16.msra.mxu0 0
    %112 = vmatprep.subr.bf16.mxu0 0
    %113 = vmatpush1.bf16.msra.mxu0 0
    %114 = vmatprep.subr.bf16.mxu0 0
    %115 = vmatpush1.bf16.msra.mxu0 0
    %116 = vmatprep.subr.bf16.mxu0 0
    %117 = vmatpush1.bf16.msra.mxu0 0
    %118 = vmatprep.subr.bf16.mxu0 0
    %119 = vmatpush1.bf16.msra.mxu0 0
    %120 = vmatprep.subr.bf16.mxu0 0
    %121 = vmatpush1.bf16.msra.mxu0 0
    %122 = vmatprep.subr.bf16.mxu0 0
    %123 = vmatpush1.bf16.msra.mxu0 0
    %124 = vmatprep.subr.bf16.mxu0 0
    %125 = vmatpush1.bf16.msra.mxu0 0
    %126 = vmatprep.subr.bf16.mxu0 0
    %127 = vmatpush1.bf16.msra.mxu0 0
    %128 = vmatprep.subr.bf16.mxu0 0
    %129 = vmatpush1.bf16.msra.mxu0 0
    %130 = vmatprep.subr.bf16.mxu0 0
    %131 = vmatpush1.bf16.msra.mxu0 0
    %132 = vmatprep.mubr.bf16.mxu0 0
    %133 = vmatmul.mubr.bf16.gmra.mrb[0].mxu0 %v77
    %v134 = vpop.f32.mrb[0].mxu0
    %v135 = vadd.f32 0.0, %v134
    %v136 = vpop.f32.mrb[0].mxu0
    %v137 = vpop.f32.mrb[0].mxu0
    %v138 = vadd.f32 0.0, %v137
    %v139 = vpop.f32.mrb[0].mxu0
    %140 = vmatprep.mubr.bf16.mxu0 0
    %141 = vmatmul.mubr.bf16.gmra.mrb[0].mxu0 %v80
    %v142 = vpop.f32.mrb[0].mxu0
    %v143 = vadd.f32 0.0, %v142
    %v144 = vpop.f32.mrb[0].mxu0
    %v145 = vpop.f32.mrb[0].mxu0
    %v146 = vadd.f32 0.0, %v145
    %v147 = vpop.f32.mrb[0].mxu0
    %148 = vmatprep.mubr.bf16.mxu0 0
    %149 = vmatmul.mubr.bf16.gmra.mrb[0].mxu0 %v83
    %v150 = vpop.f32.mrb[0].mxu0
    %v151 = vadd.f32 0.0, %v150
    %v152 = vpop.f32.mrb[0].mxu0
    %v153 = vpop.f32.mrb[0].mxu0
    %v154 = vadd.f32 0.0, %v153
    %v155 = vpop.f32.mrb[0].mxu0
    %156 = vmatprep.mubr.bf16.mxu0 0
    %157 = vmatmul.mubr.bf16.gmra.mrb[0].mxu0 %v86
    %v158 = vpop.f32.mrb[0].mxu0
    %v159 = vadd.f32 0.0, %v158
    %v160 = vpop.f32.mrb[0].mxu0
    %v161 = vpop.f32.mrb[0].mxu0
    %v162 = vadd.f32 0.0, %v161
    %v163 = vpop.f32.mrb[0].mxu0
    %164 = vmatprep.mubr.bf16.mxu0 0
    %165 = vmatmul.mubr.bf16.gmra.mrb[0].mxu0 %v89
    %v166 = vpop.f32.mrb[0].mxu0
    %v167 = vadd.f32 0.0, %v166
    %v168 = vpop.f32.mrb[0].mxu0
    %v169 = vpop.f32.mrb[0].mxu0
    %v170 = vadd.f32 0.0, %v169
    %v171 = vpop.f32.mrb[0].mxu0
    %172 = vmatprep.mubr.bf16.mxu0 0
    %173 = vmatmul.mubr.bf16.gmra.mrb[0].mxu0 %v92
    %v174 = vpop.f32.mrb[0].mxu0
    %v175 = vadd.f32 0.0, %v174
    %v176 = vpop.f32.mrb[0].mxu0
    %v177 = vpop.f32.mrb[0].mxu0
    %v178 = vadd.f32 0.0, %v177
    %v179 = vpop.f32.mrb[0].mxu0
    %180 = vmatprep.mubr.bf16.mxu0 0
    %181 = vmatmul.mubr.bf16.gmra.mrb[0].mxu0 %v95
    %v182 = vpop.f32.mrb[0].mxu0
    %v183 = vadd.f32 0.0, %v182
    %v184 = vpop.f32.mrb[0].mxu0
    %v185 = vpop.f32.mrb[0].mxu0
    %v186 = vadd.f32 0.0, %v185
    %v187 = vpop.f32.mrb[0].mxu0
    %188 = vmatprep.mubr.bf16.mxu0 0
    %189 = vmatmul.mubr.bf16.gmra.mrb[0].mxu0 %v98
    %v190 = vpop.f32.mrb[0].mxu0
    %v191 = vadd.f32 0.0, %v190
    %v192 = vpop.f32.mrb[0].mxu0
    %v193 = vpop.f32.mrb[0].mxu0
    %v194 = vadd.f32 0.0, %v193
    %v195 = vpop.f32.mrb[0].mxu0
    %196 = vdwg.mxu0
    %v197 = vld [vmem:[#allocation2] sm:$0xff]
    %v198 = vld [vmem:[#allocation2 + $0x8] sm:$0xff]
    %v199 = vld [vmem:[#allocation2 + $0x10] sm:$0xff]
    %v200 = vld [vmem:[#allocation2 + $0x18] sm:$0xff]
    %v201 = vld [vmem:[#allocation2 + $0x20] sm:$0xff]
    %v202 = vld [vmem:[#allocation2 + $0x28] sm:$0xff]
    %v203 = vld [vmem:[#allocation2 + $0x30] sm:$0xff]
    %v204 = vld [vmem:[#allocation2 + $0x38] sm:$0xff]
    %v205 = vld [vmem:[#allocation2 + $0x40] sm:$0xff]
    %v206 = vld [vmem:[#allocation2 + $0x48] sm:$0xff]
    %v207 = vld [vmem:[#allocation2 + $0x50] sm:$0xff]
    %v208 = vld [vmem:[#allocation2 + $0x58] sm:$0xff]
    %v209 = vld [vmem:[#allocation2 + $0x60] sm:$0xff]
    %v210 = vld [vmem:[#allocation2 + $0x68] sm:$0xff]
    %v211 = vld [vmem:[#allocation2 + $0x70] sm:$0xff]
    %v212 = vld [vmem:[#allocation2 + $0x78] sm:$0xff]
    %v213 = vld [vmem:[#allocation2 + $0x80] sm:$0xff]
    %v214 = vld [vmem:[#allocation2 + $0x88] sm:$0xff]
    %v215 = vld [vmem:[#allocation2 + $0x90] sm:$0xff]
    %v216 = vld [vmem:[#allocation2 + $0x98] sm:$0xff]
    %v217 = vld [vmem:[#allocation2 + $0xa0] sm:$0xff]
    %v218 = vld [vmem:[#allocation2 + $0xa8] sm:$0xff]
    %v219 = vld [vmem:[#allocation2 + $0xb0] sm:$0xff]
    %v220 = vld [vmem:[#allocation2 + $0xb8] sm:$0xff]
    %v221 = vld [vmem:[#allocation2 + $0xc0] sm:$0xff]
    %v222 = vld [vmem:[#allocation2 + $0xc8] sm:$0xff]
    %v223 = vld [vmem:[#allocation2 + $0xd0] sm:$0xff]
    %v224 = vld [vmem:[#allocation2 + $0xd8] sm:$0xff]
    %v225 = vld [vmem:[#allocation2 + $0xe0] sm:$0xff]
    %v226 = vld [vmem:[#allocation2 + $0xe8] sm:$0xff]
    %v227 = vld [vmem:[#allocation2 + $0xf0] sm:$0xff]
    %v228 = vld [vmem:[#allocation2 + $0xf8] sm:$0xff]
    %237 = vrot.lane.b32.xlu0 %v135, 96
    %v238 = vpop.permute.xlu0 %237
    %239 = vrot.lane.b32.xlu0 %v138, 96
    %v240 = vpop.permute.xlu0 %239
    %241 = vrot.lane.b32.xlu0 %v143, 96
    %v242 = vpop.permute.xlu0 %241
    %243 = vrot.lane.b32.xlu0 %v146, 96
    %v244 = vpop.permute.xlu0 %243
    %245 = vrot.lane.b32.xlu0 %v151, 96
    %v246 = vpop.permute.xlu0 %245
    %247 = vrot.lane.b32.xlu0 %v154, 96
    %v248 = vpop.permute.xlu0 %247
    %249 = vrot.lane.b32.xlu0 %v159, 96
    %v250 = vpop.permute.xlu0 %249
    %251 = vrot.lane.b32.xlu0 %v162, 96
    %v252 = vpop.permute.xlu0 %251
    %vm253 = vcmask 64512
    %v254 = vsel %vm253, %v135, 0
    %v256 = vsel %vm253, %v138, 0
    %v258 = vsel %vm253, %v143, 0
    %v260 = vsel %vm253, %v146, 0
    %v262 = vsel %vm253, %v151, 0
    %v264 = vsel %vm253, %v154, 0
    %v266 = vsel %vm253, %v159, 0
    %v268 = vsel %vm253, %v162, 0
    %v270 = vsel %vm253, %v238, 0
    %v272 = vsel %vm253, %v240, 0
    %v274 = vsel %vm253, %v242, 0
    %v276 = vsel %vm253, %v244, 0
    %v278 = vsel %vm253, %v246, 0
    %v280 = vsel %vm253, %v248, 0
    %v282 = vsel %vm253, %v250, 0
    %v284 = vsel %vm253, %v252, 0
    %286 = vmatprep.subr.mxu0 0.0
    %287 = vmatpush1.xpose.msra.mxu0 %v270
    %288 = vmatprep.subr.mxu0 0.0
    %289 = vmatpush1.xpose.msra.mxu0 %v272
    %290 = vmatprep.subr.mxu0 0.0
    %291 = vmatpush1.xpose.msra.mxu0 %v274
    %292 = vmatprep.subr.mxu0 0.0
    %293 = vmatpush1.xpose.msra.mxu0 %v276
    %294 = vmatprep.subr.mxu0 0.0
    %295 = vmatpush1.xpose.msra.mxu0 %v278
    %296 = vmatprep.subr.mxu0 0.0
    %297 = vmatpush1.xpose.msra.mxu0 %v280
    %298 = vmatprep.subr.mxu0 0.0
    %299 = vmatpush1.xpose.msra.mxu0 %v282
    %300 = vmatprep.subr.mxu0 0.0
    %301 = vmatpush1.xpose.msra.mxu0 %v284
    %302 = vmatprep.subr.mxu0 0.0
    %303 = vmatpush1.xpose.msra.mxu0 0.0
    %304 = vmatprep.subr.mxu0 0.0
    %305 = vmatpush1.xpose.msra.mxu0 0.0
    %306 = vmatprep.subr.mxu0 0.0
    %307 = vmatpush1.xpose.msra.mxu0 0.0
    %308 = vmatprep.subr.mxu0 0.0
    %309 = vmatpush1.xpose.msra.mxu0 0.0
    %310 = vmatprep.subr.mxu0 0.0
    %311 = vmatpush1.xpose.msra.mxu0 0.0
    %312 = vmatprep.subr.mxu0 0.0
    %313 = vmatpush1.xpose.msra.mxu0 0.0
    %314 = vmatprep.subr.mxu0 0.0
    %315 = vmatpush1.xpose.msra.mxu0 0.0
    %316 = vmatprep.subr.mxu0 0.0
    %317 = vmatpush1.xpose.msra.mxu0 0.0
    %318 = vmatprep.subr.mxu0 0.0
    %319 = vmatpush1.xpose.msra.mxu0 0.0
    %320 = vmatprep.subr.mxu0 0.0
    %321 = vmatpush1.xpose.msra.mxu0 0.0
    %322 = vmatprep.subr.mxu0 0.0
    %323 = vmatpush1.xpose.msra.mxu0 0.0
    %324 = vmatprep.subr.mxu0 0.0
    %325 = vmatpush1.xpose.msra.mxu0 0.0
    %326 = vmatprep.subr.mxu0 0.0
    %327 = vmatpush1.xpose.msra.mxu0 0.0
    %328 = vmatprep.subr.mxu0 0.0
    %329 = vmatpush1.xpose.msra.mxu0 0.0
    %330 = vmatprep.subr.mxu0 0.0
    %331 = vmatpush1.xpose.msra.mxu0 0.0
    %332 = vmatprep.subr.mxu0 0.0
    %333 = vmatpush1.xpose.msra.mxu0 0.0
    %334 = vmatprep.subr.mxu0 0.0
    %335 = vmatpush1.xpose.msra.mxu0 0.0
    %336 = vmatprep.subr.mxu0 0.0
    %337 = vmatpush1.xpose.msra.mxu0 0.0
    %338 = vmatprep.subr.mxu0 0.0
    %339 = vmatpush1.xpose.msra.mxu0 0.0
    %340 = vmatprep.subr.mxu0 0.0
    %341 = vmatpush1.xpose.msra.mxu0 0.0
    %342 = vmatprep.subr.mxu0 0.0
    %343 = vmatpush1.xpose.msra.mxu0 0.0
    %344 = vmatprep.subr.mxu0 0.0
    %345 = vmatpush1.xpose.msra.mxu0 0.0
    %346 = vmatprep.subr.mxu0 0.0
    %347 = vmatpush1.xpose.msra.mxu0 0.0
    %348 = vmatprep.subr.mxu0 0.0
    %349 = vmatpush1.xpose.msra.mxu0 0.0
    %350 = vmatprep.mubr.f32.mxu0 0.0
    %351 = vmatmul.mubr.f32.gmra.mrb[0].mxu0 %v254
    %v352 = vpop.f32.mrb[0].mxu0
    %v353 = vadd.f32 %v197, %v352
    %v354 = vpop.f32.mrb[0].mxu0
    %355 = vmatprep.mubr.f32.mxu0 0.0
    %356 = vmatmul.mubr.f32.gmra.mrb[0].mxu0 %v256
    %v357 = vpop.f32.mrb[0].mxu0
    %v358 = vadd.f32 %v198, %v357
    %v359 = vpop.f32.mrb[0].mxu0
    %360 = vmatprep.mubr.f32.mxu0 0.0
    %361 = vmatmul.mubr.f32.gmra.mrb[0].mxu0 %v258
    %v362 = vpop.f32.mrb[0].mxu0
    %v363 = vadd.f32 %v199, %v362
    %v364 = vpop.f32.mrb[0].mxu0
    %365 = vmatprep.mubr.f32.mxu0 0.0
    %366 = vmatmul.mubr.f32.gmra.mrb[0].mxu0 %v260
    %v367 = vpop.f32.mrb[0].mxu0
    %v368 = vadd.f32 %v200, %v367
    %v369 = vpop.f32.mrb[0].mxu0
    %370 = vmatprep.mubr.f32.mxu0 0.0
    %371 = vmatmul.mubr.f32.gmra.mrb[0].mxu0 %v262
    %v372 = vpop.f32.mrb[0].mxu0
    %v373 = vadd.f32 %v201, %v372
    %v374 = vpop.f32.mrb[0].mxu0
    %375 = vmatprep.mubr.f32.mxu0 0.0
    %376 = vmatmul.mubr.f32.gmra.mrb[0].mxu0 %v264
    %v377 = vpop.f32.mrb[0].mxu0
    %v378 = vadd.f32 %v202, %v377
    %v379 = vpop.f32.mrb[0].mxu0
    %380 = vmatprep.mubr.f32.mxu0 0.0
    %381 = vmatmul.mubr.f32.gmra.mrb[0].mxu0 %v266
    %v382 = vpop.f32.mrb[0].mxu0
    %v383 = vadd.f32 %v203, %v382
    %v384 = vpop.f32.mrb[0].mxu0
    %385 = vmatprep.mubr.f32.mxu0 0.0
    %386 = vmatmul.mubr.f32.gmra.mrb[0].mxu0 %v268
    %v387 = vpop.f32.mrb[0].mxu0
    %v388 = vadd.f32 %v204, %v387
    %v389 = vpop.f32.mrb[0].mxu0
    %390 = vdwg.mxu0
    %399 = vrot.lane.b32.xlu0 %v167, 96
    %v400 = vpop.permute.xlu0 %399
    %401 = vrot.lane.b32.xlu0 %v170, 96
    %v402 = vpop.permute.xlu0 %401
    %403 = vrot.lane.b32.xlu0 %v175, 96
    %v404 = vpop.permute.xlu0 %403
    %405 = vrot.lane.b32.xlu0 %v178, 96
    %v406 = vpop.permute.xlu0 %405
    %407 = vrot.lane.b32.xlu0 %v183, 96
    %v408 = vpop.permute.xlu0 %407
    %409 = vrot.lane.b32.xlu0 %v186, 96
    %v410 = vpop.permute.xlu0 %409
    %411 = vrot.lane.b32.xlu0 %v191, 96
    %v412 = vpop.permute.xlu0 %411
    %413 = vrot.lane.b32.xlu0 %v194, 96
    %v414 = vpop.permute.xlu0 %413
    %v415 = vsel %vm253, %v167, 0
    %v417 = vsel %vm253, %v170, 0
    %v419 = vsel %vm253, %v175, 0
    %v421 = vsel %vm253, %v178, 0
    %v423 = vsel %vm253, %v183, 0
    %v425 = vsel %vm253, %v186, 0
    %v427 = vsel %vm253, %v191, 0
    %v429 = vsel %vm253, %v194, 0
    %v431 = vsel %vm253, %v400, 0
    %v433 = vsel %vm253, %v402, 0
    %v435 = vsel %vm253, %v404, 0
    %v437 = vsel %vm253, %v406, 0
    %v439 = vsel %vm253, %v408, 0
    %v441 = vsel %vm253, %v410, 0
    %v443 = vsel %vm253, %v412, 0
    %v445 = vsel %vm253, %v414, 0
    %447 = vmatprep.subr.mxu0 0.0
    %448 = vmatpush1.xpose.msra.mxu0 %v431
    %449 = vmatprep.subr.mxu0 0.0
    %450 = vmatpush1.xpose.msra.mxu0 %v433
    %451 = vmatprep.subr.mxu0 0.0
    %452 = vmatpush1.xpose.msra.mxu0 %v435
    %453 = vmatprep.subr.mxu0 0.0
    %454 = vmatpush1.xpose.msra.mxu0 %v437
    %455 = vmatprep.subr.mxu0 0.0
    %456 = vmatpush1.xpose.msra.mxu0 %v439
    %457 = vmatprep.subr.mxu0 0.0
    %458 = vmatpush1.xpose.msra.mxu0 %v441
    %459 = vmatprep.subr.mxu0 0.0
    %460 = vmatpush1.xpose.msra.mxu0 %v443
    %461 = vmatprep.subr.mxu0 0.0
    %462 = vmatpush1.xpose.msra.mxu0 %v445
    %463 = vmatprep.subr.mxu0 0.0
    %464 = vmatpush1.xpose.msra.mxu0 0.0
    %465 = vmatprep.subr.mxu0 0.0
    %466 = vmatpush1.xpose.msra.mxu0 0.0
    %467 = vmatprep.subr.mxu0 0.0
    %468 = vmatpush1.xpose.msra.mxu0 0.0
    %469 = vmatprep.subr.mxu0 0.0
    %470 = vmatpush1.xpose.msra.mxu0 0.0
    %471 = vmatprep.subr.mxu0 0.0
    %472 = vmatpush1.xpose.msra.mxu0 0.0
    %473 = vmatprep.subr.mxu0 0.0
    %474 = vmatpush1.xpose.msra.mxu0 0.0
    %475 = vmatprep.subr.mxu0 0.0
    %476 = vmatpush1.xpose.msra.mxu0 0.0
    %477 = vmatprep.subr.mxu0 0.0
    %478 = vmatpush1.xpose.msra.mxu0 0.0
    %479 = vmatprep.subr.mxu0 0.0
    %480 = vmatpush1.xpose.msra.mxu0 0.0
    %481 = vmatprep.subr.mxu0 0.0
    %482 = vmatpush1.xpose.msra.mxu0 0.0
    %483 = vmatprep.subr.mxu0 0.0
    %484 = vmatpush1.xpose.msra.mxu0 0.0
    %485 = vmatprep.subr.mxu0 0.0
    %486 = vmatpush1.xpose.msra.mxu0 0.0
    %487 = vmatprep.subr.mxu0 0.0
    %488 = vmatpush1.xpose.msra.mxu0 0.0
    %489 = vmatprep.subr.mxu0 0.0
    %490 = vmatpush1.xpose.msra.mxu0 0.0
    %491 = vmatprep.subr.mxu0 0.0
    %492 = vmatpush1.xpose.msra.mxu0 0.0
    %493 = vmatprep.subr.mxu0 0.0
    %494 = vmatpush1.xpose.msra.mxu0 0.0
    %495 = vmatprep.subr.mxu0 0.0
    %496 = vmatpush1.xpose.msra.mxu0 0.0
    %497 = vmatprep.subr.mxu0 0.0
    %498 = vmatpush1.xpose.msra.mxu0 0.0
    %499 = vmatprep.subr.mxu0 0.0
    %500 = vmatpush1.xpose.msra.mxu0 0.0
    %501 = vmatprep.subr.mxu0 0.0
    %502 = vmatpush1.xpose.msra.mxu0 0.0
    %503 = vmatprep.subr.mxu0 0.0
    %504 = vmatpush1.xpose.msra.mxu0 0.0
    %505 = vmatprep.subr.mxu0 0.0
    %506 = vmatpush1.xpose.msra.mxu0 0.0
    %507 = vmatprep.subr.mxu0 0.0
    %508 = vmatpush1.xpose.msra.mxu0 0.0
    %509 = vmatprep.subr.mxu0 0.0
    %510 = vmatpush1.xpose.msra.mxu0 0.0
    %511 = vmatprep.mubr.f32.mxu0 0.0
    %512 = vmatmul.mubr.f32.gmra.mrb[0].mxu0 %v415
    %v513 = vpop.f32.mrb[0].mxu0
    %v514 = vadd.f32 %v197, %v513
    %v515 = vpop.f32.mrb[0].mxu0
    %516 = vmatprep.mubr.f32.mxu0 0.0
    %517 = vmatmul.mubr.f32.gmra.mrb[0].mxu0 %v417
    %v518 = vpop.f32.mrb[0].mxu0
    %v519 = vadd.f32 %v198, %v518
    %v520 = vpop.f32.mrb[0].mxu0
    %521 = vmatprep.mubr.f32.mxu0 0.0
    %522 = vmatmul.mubr.f32.gmra.mrb[0].mxu0 %v419
    %v523 = vpop.f32.mrb[0].mxu0
    %v524 = vadd.f32 %v199, %v523
    %v525 = vpop.f32.mrb[0].mxu0
    %526 = vmatprep.mubr.f32.mxu0 0.0
    %527 = vmatmul.mubr.f32.gmra.mrb[0].mxu0 %v421
    %v528 = vpop.f32.mrb[0].mxu0
    %v529 = vadd.f32 %v200, %v528
    %v530 = vpop.f32.mrb[0].mxu0
    %531 = vmatprep.mubr.f32.mxu0 0.0
    %532 = vmatmul.mubr.f32.gmra.mrb[0].mxu0 %v423
    %v533 = vpop.f32.mrb[0].mxu0
    %v534 = vadd.f32 %v201, %v533
    %v535 = vpop.f32.mrb[0].mxu0
    %536 = vmatprep.mubr.f32.mxu0 0.0
    %537 = vmatmul.mubr.f32.gmra.mrb[0].mxu0 %v425
    %v538 = vpop.f32.mrb[0].mxu0
    %v539 = vadd.f32 %v202, %v538
    %v540 = vpop.f32.mrb[0].mxu0
    %541 = vmatprep.mubr.f32.mxu0 0.0
    %542 = vmatmul.mubr.f32.gmra.mrb[0].mxu0 %v427
    %v543 = vpop.f32.mrb[0].mxu0
    %v544 = vadd.f32 %v203, %v543
    %v545 = vpop.f32.mrb[0].mxu0
    %546 = vmatprep.mubr.f32.mxu0 0.0
    %547 = vmatmul.mubr.f32.gmra.mrb[0].mxu0 %v429
    %v548 = vpop.f32.mrb[0].mxu0
    %v549 = vadd.f32 %v204, %v548
    %v550 = vpop.f32.mrb[0].mxu0
    %551 = vdwg.mxu0
    %vm552 = vcmask 523264
    %v553 = vsel %vm552, %v353, -inf
    %554 = vmax.xlane.f32.xlu0 %v553
    %v555 = vpop.xlane.xlu0 %554
    %v556 = vsel %vm552, %v358, -inf
    %557 = vmax.xlane.f32.xlu0 %v556
    %v558 = vpop.xlane.xlu0 %557
    %v559 = vsel %vm552, %v363, -inf
    %560 = vmax.xlane.f32.xlu0 %v559
    %v561 = vpop.xlane.xlu0 %560
    %v562 = vsel %vm552, %v368, -inf
    %563 = vmax.xlane.f32.xlu0 %v562
    %v564 = vpop.xlane.xlu0 %563
    %v565 = vsel %vm552, %v373, -inf
    %566 = vmax.xlane.f32.xlu0 %v565
    %v567 = vpop.xlane.xlu0 %566
    %v568 = vsel %vm552, %v378, -inf
    %569 = vmax.xlane.f32.xlu0 %v568
    %v570 = vpop.xlane.xlu0 %569
    %v571 = vsel %vm552, %v383, -inf
    %572 = vmax.xlane.f32.xlu0 %v571
    %v573 = vpop.xlane.xlu0 %572
    %v574 = vsel %vm552, %v388, -inf
    %575 = vmax.xlane.f32.xlu0 %v574
    %v576 = vpop.xlane.xlu0 %575
    %v577 = vsel %vm552, %v514, -inf
    %578 = vmax.xlane.f32.xlu0 %v577
    %v579 = vpop.xlane.xlu0 %578
    %v580 = vsel %vm552, %v519, -inf
    %581 = vmax.xlane.f32.xlu0 %v580
    %v582 = vpop.xlane.xlu0 %581
    %v583 = vsel %vm552, %v524, -inf
    %584 = vmax.xlane.f32.xlu0 %v583
    %v585 = vpop.xlane.xlu0 %584
    %v586 = vsel %vm552, %v529, -inf
    %587 = vmax.xlane.f32.xlu0 %v586
    %v588 = vpop.xlane.xlu0 %587
    %v589 = vsel %vm552, %v534, -inf
    %590 = vmax.xlane.f32.xlu0 %v589
    %v591 = vpop.xlane.xlu0 %590
    %v592 = vsel %vm552, %v539, -inf
    %593 = vmax.xlane.f32.xlu0 %v592
    %v594 = vpop.xlane.xlu0 %593
    %v595 = vsel %vm552, %v544, -inf
    %596 = vmax.xlane.f32.xlu0 %v595
    %v597 = vpop.xlane.xlu0 %596
    %v598 = vsel %vm552, %v549, -inf
    %599 = vmax.xlane.f32.xlu0 %v598
    %v600 = vpop.xlane.xlu0 %599
    %v601 = vsub.f32 %v353, %v555
    %v602 = vsub.f32 %v358, %v558
    %v603 = vsub.f32 %v363, %v561
    %v604 = vsub.f32 %v368, %v564
    %v605 = vsub.f32 %v373, %v567
    %v606 = vsub.f32 %v378, %v570
    %v607 = vsub.f32 %v383, %v573
    %v608 = vsub.f32 %v388, %v576
    %v609 = vsub.f32 %v514, %v579
    %v610 = vsub.f32 %v519, %v582
    %v611 = vsub.f32 %v524, %v585
    %v612 = vsub.f32 %v529, %v588
    %v613 = vsub.f32 %v534, %v591
    %v614 = vsub.f32 %v539, %v594
    %v615 = vsub.f32 %v544, %v597
    %v616 = vsub.f32 %v549, %v600
    %v617 = vmul.f32 %v601, 1.442695
    %v618 = vpow.pop %v617
    %v619 = vmul.f32 %v602, 1.442695
    %v620 = vpow.pop %v619
    %v621 = vmul.f32 %v603, 1.442695
    %v622 = vpow.pop %v621
    %v623 = vmul.f32 %v604, 1.442695
    %v624 = vpow.pop %v623
    %v625 = vmul.f32 %v605, 1.442695
    %v626 = vpow.pop %v625
    %v627 = vmul.f32 %v606, 1.442695
    %v628 = vpow.pop %v627
    %v629 = vmul.f32 %v607, 1.442695
    %v630 = vpow.pop %v629
    %v631 = vmul.f32 %v608, 1.442695
    %v632 = vpow.pop %v631
    %v633 = vmul.f32 %v609, 1.442695
    %v634 = vpow.pop %v633
    %v635 = vmul.f32 %v610, 1.442695
    %v636 = vpow.pop %v635
    %v637 = vmul.f32 %v611, 1.442695
    %v638 = vpow.pop %v637
    %v639 = vmul.f32 %v612, 1.442695
    %v640 = vpow.pop %v639
    %v641 = vmul.f32 %v613, 1.442695
    %v642 = vpow.pop %v641
    %v643 = vmul.f32 %v614, 1.442695
    %v644 = vpow.pop %v643
    %v645 = vmul.f32 %v615, 1.442695
    %v646 = vpow.pop %v645
    %v647 = vmul.f32 %v616, 1.442695
    %v648 = vpow.pop %v647
    %v649 = vsel %vm552, %v618, 0.0
    %650 = vadd.xlane.f32.xlu0 %v649
    %v651 = vpop.xlane.xlu0 %650
    %v652 = vsel %vm552, %v620, 0.0
    %653 = vadd.xlane.f32.xlu0 %v652
    %v654 = vpop.xlane.xlu0 %653
    %v655 = vsel %vm552, %v622, 0.0
    %656 = vadd.xlane.f32.xlu0 %v655
    %v657 = vpop.xlane.xlu0 %656
    %v658 = vsel %vm552, %v624, 0.0
    %659 = vadd.xlane.f32.xlu0 %v658
    %v660 = vpop.xlane.xlu0 %659
    %v661 = vsel %vm552, %v626, 0.0
    %662 = vadd.xlane.f32.xlu0 %v661
    %v663 = vpop.xlane.xlu0 %662
    %v664 = vsel %vm552, %v628, 0.0
    %665 = vadd.xlane.f32.xlu0 %v664
    %v666 = vpop.xlane.xlu0 %665
    %v667 = vsel %vm552, %v630, 0.0
    %668 = vadd.xlane.f32.xlu0 %v667
    %v669 = vpop.xlane.xlu0 %668
    %v670 = vsel %vm552, %v632, 0.0
    %671 = vadd.xlane.f32.xlu0 %v670
    %v672 = vpop.xlane.xlu0 %671
    %v673 = vsel %vm552, %v634, 0.0
    %674 = vadd.xlane.f32.xlu0 %v673
    %v675 = vpop.xlane.xlu0 %674
    %v676 = vsel %vm552, %v636, 0.0
    %677 = vadd.xlane.f32.xlu0 %v676
    %v678 = vpop.xlane.xlu0 %677
    %v679 = vsel %vm552, %v638, 0.0
    %680 = vadd.xlane.f32.xlu0 %v679
    %v681 = vpop.xlane.xlu0 %680
    %v682 = vsel %vm552, %v640, 0.0
    %683 = vadd.xlane.f32.xlu0 %v682
    %v684 = vpop.xlane.xlu0 %683
    %v685 = vsel %vm552, %v642, 0.0
    %686 = vadd.xlane.f32.xlu0 %v685
    %v687 = vpop.xlane.xlu0 %686
    %v688 = vsel %vm552, %v644, 0.0
    %689 = vadd.xlane.f32.xlu0 %v688
    %v690 = vpop.xlane.xlu0 %689
    %v691 = vsel %vm552, %v646, 0.0
    %692 = vadd.xlane.f32.xlu0 %v691
    %v693 = vpop.xlane.xlu0 %692
    %v694 = vsel %vm552, %v648, 0.0
    %695 = vadd.xlane.f32.xlu0 %v694
    %v696 = vpop.xlane.xlu0 %695
    %v697 = vrcp.pop %v651
    %v698 = vrcp.pop %v654
    %v699 = vrcp.pop %v657
    %v700 = vrcp.pop %v660
    %v701 = vrcp.pop %v663
    %v702 = vrcp.pop %v666
    %v703 = vrcp.pop %v669
    %v704 = vrcp.pop %v672
    %v705 = vrcp.pop %v675
    %v706 = vrcp.pop %v678
    %v707 = vrcp.pop %v681
    %v708 = vrcp.pop %v684
    %v709 = vrcp.pop %v687
    %v710 = vrcp.pop %v690
    %v711 = vrcp.pop %v693
    %v712 = vrcp.pop %v696
    %v713 = vmul.f32 %v618, %v697
    %v714 = vmul.f32 %v620, %v698
    %v715 = vmul.f32 %v622, %v699
    %v716 = vmul.f32 %v624, %v700
    %v717 = vmul.f32 %v626, %v701
    %v718 = vmul.f32 %v628, %v702
    %v719 = vmul.f32 %v630, %v703
    %v720 = vmul.f32 %v632, %v704
    %v721 = vmul.f32 %v634, %v705
    %v722 = vmul.f32 %v636, %v706
    %v723 = vmul.f32 %v638, %v707
    %v724 = vmul.f32 %v640, %v708
    %v725 = vmul.f32 %v642, %v709
    %v726 = vmul.f32 %v644, %v710
    %v727 = vmul.f32 %v646, %v711
    %v728 = vmul.f32 %v648, %v712
    %v729 = vpack.c.bf16 %v714, %v713
    %v730 = vpack.c.bf16 %v716, %v715
    %v731 = vpack.c.bf16 %v718, %v717
    %v732 = vpack.c.bf16 %v720, %v719
    %v733 = vpack.c.bf16 %v722, %v721
    %v734 = vpack.c.bf16 %v724, %v723
    %v735 = vpack.c.bf16 %v726, %v725
    %v736 = vpack.c.bf16 %v728, %v727
    %v737 = vpack.c.bf16 %v138, %v135
    %v738 = vpack.c.bf16 %v146, %v143
    %v739 = vpack.c.bf16 %v154, %v151
    %v740 = vpack.c.bf16 %v162, %v159
    %v741 = vpack.c.bf16 %v170, %v167
    %v742 = vpack.c.bf16 %v178, %v175
    %v743 = vpack.c.bf16 %v186, %v183
    %v744 = vpack.c.bf16 %v194, %v191
    %749 = vrot.lane.b32.xlu0 %v737, 64
    %v750 = vpop.permute.xlu0 %749
    %751 = vrot.lane.b32.xlu0 %v738, 64
    %v752 = vpop.permute.xlu0 %751
    %753 = vrot.lane.b32.xlu0 %v739, 64
    %v754 = vpop.permute.xlu0 %753
    %755 = vrot.lane.b32.xlu0 %v740, 64
    %v756 = vpop.permute.xlu0 %755
    %v762 = vsel %vm552, %v729, 0
    %v765 = vsel %vm552, %v730, 0
    %v768 = vsel %vm552, %v731, 0
    %v771 = vsel %vm552, %v732, 0
    %773 = vmatprep.subr.bf16.mxu0 0
    %774 = vmatpush1.bf16.msra.mxu0 %v750
    %775 = vmatprep.subr.bf16.mxu0 0
    %776 = vmatpush1.bf16.msra.mxu0 %v752
    %777 = vmatprep.subr.bf16.mxu0 0
    %778 = vmatpush1.bf16.msra.mxu0 %v754
    %779 = vmatprep.subr.bf16.mxu0 0
    %780 = vmatpush1.bf16.msra.mxu0 %v756
    %781 = vmatprep.subr.bf16.mxu0 0
    %782 = vmatpush1.bf16.msra.mxu0 0
    %783 = vmatprep.subr.bf16.mxu0 0
    %784 = vmatpush1.bf16.msra.mxu0 0
    %785 = vmatprep.subr.bf16.mxu0 0
    %786 = vmatpush1.bf16.msra.mxu0 0
    %787 = vmatprep.subr.bf16.mxu0 0
    %788 = vmatpush1.bf16.msra.mxu0 0
    %789 = vmatprep.subr.bf16.mxu0 0
    %790 = vmatpush1.bf16.msra.mxu0 0
    %791 = vmatprep.subr.bf16.mxu0 0
    %792 = vmatpush1.bf16.msra.mxu0 0
    %793 = vmatprep.subr.bf16.mxu0 0
    %794 = vmatpush1.bf16.msra.mxu0 0
    %795 = vmatprep.subr.bf16.mxu0 0
    %796 = vmatpush1.bf16.msra.mxu0 0
    %797 = vmatprep.subr.bf16.mxu0 0
    %798 = vmatpush1.bf16.msra.mxu0 0
    %799 = vmatprep.subr.bf16.mxu0 0
    %800 = vmatpush1.bf16.msra.mxu0 0
    %801 = vmatprep.subr.bf16.mxu0 0
    %802 = vmatpush1.bf16.msra.mxu0 0
    %803 = vmatprep.subr.bf16.mxu0 0
    %804 = vmatpush1.bf16.msra.mxu0 0
    %805 = vmatprep.mubr.bf16.mxu0 0
    %806 = vmatmul.mubr.bf16.gmra.mrb[0].mxu0 %v762
    %v807 = vpop.f32.mrb[0].mxu0
    %v808 = vadd.f32 0.0, %v807
    %v809 = vpop.f32.mrb[0].mxu0
    %v810 = vpop.f32.mrb[0].mxu0
    %v811 = vadd.f32 0.0, %v810
    %v812 = vpop.f32.mrb[0].mxu0
    %813 = vmatprep.mubr.bf16.mxu0 0
    %814 = vmatmul.mubr.bf16.gmra.mrb[0].mxu0 %v765
    %v815 = vpop.f32.mrb[0].mxu0
    %v816 = vadd.f32 0.0, %v815
    %v817 = vpop.f32.mrb[0].mxu0
    %v818 = vpop.f32.mrb[0].mxu0
    %v819 = vadd.f32 0.0, %v818
    %v820 = vpop.f32.mrb[0].mxu0
    %821 = vmatprep.mubr.bf16.mxu0 0
    %822 = vmatmul.mubr.bf16.gmra.mrb[0].mxu0 %v768
    %v823 = vpop.f32.mrb[0].mxu0
    %v824 = vadd.f32 0.0, %v823
    %v825 = vpop.f32.mrb[0].mxu0
    %v826 = vpop.f32.mrb[0].mxu0
    %v827 = vadd.f32 0.0, %v826
    %v828 = vpop.f32.mrb[0].mxu0
    %829 = vmatprep.mubr.bf16.mxu0 0
    %830 = vmatmul.mubr.bf16.gmra.mrb[0].mxu0 %v771
    %v831 = vpop.f32.mrb[0].mxu0
    %v832 = vadd.f32 0.0, %v831
    %v833 = vpop.f32.mrb[0].mxu0
    %v834 = vpop.f32.mrb[0].mxu0
    %v835 = vadd.f32 0.0, %v834
    %v836 = vpop.f32.mrb[0].mxu0
    %837 = vdwg.mxu0
    %842 = vrot.lane.b32.xlu0 %v741, 64
    %v843 = vpop.permute.xlu0 %842
    %844 = vrot.lane.b32.xlu0 %v742, 64
    %v845 = vpop.permute.xlu0 %844
    %846 = vrot.lane.b32.xlu0 %v743, 64
    %v847 = vpop.permute.xlu0 %846
    %848 = vrot.lane.b32.xlu0 %v744, 64
    %v849 = vpop.permute.xlu0 %848
    %v855 = vsel %vm552, %v733, 0
    %v858 = vsel %vm552, %v734, 0
    %v861 = vsel %vm552, %v735, 0
    %v864 = vsel %vm552, %v736, 0
    %866 = vmatprep.subr.bf16.mxu0 0
    %867 = vmatpush1.bf16.msra.mxu0 %v843
    %868 = vmatprep.subr.bf16.mxu0 0
    %869 = vmatpush1.bf16.msra.mxu0 %v845
    %870 = vmatprep.subr.bf16.mxu0 0
    %871 = vmatpush1.bf16.msra.mxu0 %v847
    %872 = vmatprep.subr.bf16.mxu0 0
    %873 = vmatpush1.bf16.msra.mxu0 %v849
    %874 = vmatprep.subr.bf16.mxu0 0
    %875 = vmatpush1.bf16.msra.mxu0 0
    %876 = vmatprep.subr.bf16.mxu0 0
    %877 = vmatpush1.bf16.msra.mxu0 0
    %878 = vmatprep.subr.bf16.mxu0 0
    %879 = vmatpush1.bf16.msra.mxu0 0
    %880 = vmatprep.subr.bf16.mxu0 0
    %881 = vmatpush1.bf16.msra.mxu0 0
    %882 = vmatprep.subr.bf16.mxu0 0
    %883 = vmatpush1.bf16.msra.mxu0 0
    %884 = vmatprep.subr.bf16.mxu0 0
    %885 = vmatpush1.bf16.msra.mxu0 0
    %886 = vmatprep.subr.bf16.mxu0 0
    %887 = vmatpush1.bf16.msra.mxu0 0
    %888 = vmatprep.subr.bf16.mxu0 0
    %889 = vmatpush1.bf16.msra.mxu0 0
    %890 = vmatprep.subr.bf16.mxu0 0
    %891 = vmatpush1.bf16.msra.mxu0 0
    %892 = vmatprep.subr.bf16.mxu0 0
    %893 = vmatpush1.bf16.msra.mxu0 0
    %894 = vmatprep.subr.bf16.mxu0 0
    %895 = vmatpush1.bf16.msra.mxu0 0
    %896 = vmatprep.subr.bf16.mxu0 0
    %897 = vmatpush1.bf16.msra.mxu0 0
    %898 = vmatprep.mubr.bf16.mxu0 0
    %899 = vmatmul.mubr.bf16.gmra.mrb[0].mxu0 %v855
    %v900 = vpop.f32.mrb[0].mxu0
    %v901 = vadd.f32 0.0, %v900
    %v902 = vpop.f32.mrb[0].mxu0
    %v903 = vpop.f32.mrb[0].mxu0
    %v904 = vadd.f32 0.0, %v903
    %v905 = vpop.f32.mrb[0].mxu0
    %906 = vmatprep.mubr.bf16.mxu0 0
    %907 = vmatmul.mubr.bf16.gmra.mrb[0].mxu0 %v858
    %v908 = vpop.f32.mrb[0].mxu0
    %v909 = vadd.f32 0.0, %v908
    %v910 = vpop.f32.mrb[0].mxu0
    %v911 = vpop.f32.mrb[0].mxu0
    %v912 = vadd.f32 0.0, %v911
    %v913 = vpop.f32.mrb[0].mxu0
    %914 = vmatprep.mubr.bf16.mxu0 0
    %915 = vmatmul.mubr.bf16.gmra.mrb[0].mxu0 %v861
    %v916 = vpop.f32.mrb[0].mxu0
    %v917 = vadd.f32 0.0, %v916
    %v918 = vpop.f32.mrb[0].mxu0
    %v919 = vpop.f32.mrb[0].mxu0
    %v920 = vadd.f32 0.0, %v919
    %v921 = vpop.f32.mrb[0].mxu0
    %922 = vmatprep.mubr.bf16.mxu0 0
    %923 = vmatmul.mubr.bf16.gmra.mrb[0].mxu0 %v864
    %v924 = vpop.f32.mrb[0].mxu0
    %v925 = vadd.f32 0.0, %v924
    %v926 = vpop.f32.mrb[0].mxu0
    %v927 = vpop.f32.mrb[0].mxu0
    %v928 = vadd.f32 0.0, %v927
    %v929 = vpop.f32.mrb[0].mxu0
    %930 = vdwg.mxu0
    %931 = vrot.lane.b32.xlu0 %v135, 120
    %v932 = vpop.permute.xlu0 %931
    %933 = vrot.lane.b32.xlu0 %v138, 120
    %v934 = vpop.permute.xlu0 %933
    %935 = vrot.lane.b32.xlu0 %v143, 120
    %v936 = vpop.permute.xlu0 %935
    %937 = vrot.lane.b32.xlu0 %v146, 120
    %v938 = vpop.permute.xlu0 %937
    %939 = vrot.lane.b32.xlu0 %v151, 120
    %v940 = vpop.permute.xlu0 %939
    %941 = vrot.lane.b32.xlu0 %v154, 120
    %v942 = vpop.permute.xlu0 %941
    %943 = vrot.lane.b32.xlu0 %v159, 120
    %v944 = vpop.permute.xlu0 %943
    %945 = vrot.lane.b32.xlu0 %v162, 120
    %v946 = vpop.permute.xlu0 %945
    %947 = vrot.lane.b32.xlu0 %v135, 88
    %v948 = vpop.permute.xlu0 %947
    %949 = vrot.lane.b32.xlu0 %v138, 88
    %v950 = vpop.permute.xlu0 %949
    %951 = vrot.lane.b32.xlu0 %v143, 88
    %v952 = vpop.permute.xlu0 %951
    %953 = vrot.lane.b32.xlu0 %v146, 88
    %v954 = vpop.permute.xlu0 %953
    %955 = vrot.lane.b32.xlu0 %v151, 88
    %v956 = vpop.permute.xlu0 %955
    %957 = vrot.lane.b32.xlu0 %v154, 88
    %v958 = vpop.permute.xlu0 %957
    %959 = vrot.lane.b32.xlu0 %v159, 88
    %v960 = vpop.permute.xlu0 %959
    %961 = vrot.lane.b32.xlu0 %v162, 88
    %v962 = vpop.permute.xlu0 %961
    %v963 = vsel %vm253, %v932, 0
    %v965 = vsel %vm253, %v934, 0
    %v967 = vsel %vm253, %v936, 0
    %v969 = vsel %vm253, %v938, 0
    %v971 = vsel %vm253, %v940, 0
    %v973 = vsel %vm253, %v942, 0
    %v975 = vsel %vm253, %v944, 0
    %v977 = vsel %vm253, %v946, 0
    %v979 = vsel %vm253, %v948, 0
    %v981 = vsel %vm253, %v950, 0
    %v983 = vsel %vm253, %v952, 0
    %v985 = vsel %vm253, %v954, 0
    %v987 = vsel %vm253, %v956, 0
    %v989 = vsel %vm253, %v958, 0
    %v991 = vsel %vm253, %v960, 0
    %v993 = vsel %vm253, %v962, 0
    %995 = vmatprep.subr.mxu0 0.0
    %996 = vmatpush1.xpose.msra.mxu0 %v979
    %997 = vmatprep.subr.mxu0 0.0
    %998 = vmatpush1.xpose.msra.mxu0 %v981
    %999 = vmatprep.subr.mxu0 0.0
    %1000 = vmatpush1.xpose.msra.mxu0 %v983
    %1001 = vmatprep.subr.mxu0 0.0
    %1002 = vmatpush1.xpose.msra.mxu0 %v985
    %1003 = vmatprep.subr.mxu0 0.0
    %1004 = vmatpush1.xpose.msra.mxu0 %v987
    %1005 = vmatprep.subr.mxu0 0.0
    %1006 = vmatpush1.xpose.msra.mxu0 %v989
    %1007 = vmatprep.subr.mxu0 0.0
    %1008 = vmatpush1.xpose.msra.mxu0 %v991
    %1009 = vmatprep.subr.mxu0 0.0
    %1010 = vmatpush1.xpose.msra.mxu0 %v993
    %1011 = vmatprep.subr.mxu0 0.0
    %1012 = vmatpush1.xpose.msra.mxu0 0.0
    %1013 = vmatprep.subr.mxu0 0.0
    %1014 = vmatpush1.xpose.msra.mxu0 0.0
    %1015 = vmatprep.subr.mxu0 0.0
    %1016 = vmatpush1.xpose.msra.mxu0 0.0
    %1017 = vmatprep.subr.mxu0 0.0
    %1018 = vmatpush1.xpose.msra.mxu0 0.0
    %1019 = vmatprep.subr.mxu0 0.0
    %1020 = vmatpush1.xpose.msra.mxu0 0.0
    %1021 = vmatprep.subr.mxu0 0.0
    %1022 = vmatpush1.xpose.msra.mxu0 0.0
    %1023 = vmatprep.subr.mxu0 0.0
    %1024 = vmatpush1.xpose.msra.mxu0 0.0
    %1025 = vmatprep.subr.mxu0 0.0
    %1026 = vmatpush1.xpose.msra.mxu0 0.0
    %1027 = vmatprep.subr.mxu0 0.0
    %1028 = vmatpush1.xpose.msra.mxu0 0.0
    %1029 = vmatprep.subr.mxu0 0.0
    %1030 = vmatpush1.xpose.msra.mxu0 0.0
    %1031 = vmatprep.subr.mxu0 0.0
    %1032 = vmatpush1.xpose.msra.mxu0 0.0
    %1033 = vmatprep.subr.mxu0 0.0
    %1034 = vmatpush1.xpose.msra.mxu0 0.0
    %1035 = vmatprep.subr.mxu0 0.0
    %1036 = vmatpush1.xpose.msra.mxu0 0.0
    %1037 = vmatprep.subr.mxu0 0.0
    %1038 = vmatpush1.xpose.msra.mxu0 0.0
    %1039 = vmatprep.subr.mxu0 0.0
    %1040 = vmatpush1.xpose.msra.mxu0 0.0
    %1041 = vmatprep.subr.mxu0 0.0
    %1042 = vmatpush1.xpose.msra.mxu0 0.0
    %1043 = vmatprep.subr.mxu0 0.0
    %1044 = vmatpush1.xpose.msra.mxu0 0.0
    %1045 = vmatprep.subr.mxu0 0.0
    %1046 = vmatpush1.xpose.msra.mxu0 0.0
    %1047 = vmatprep.subr.mxu0 0.0
    %1048 = vmatpush1.xpose.msra.mxu0 0.0
    %1049 = vmatprep.subr.mxu0 0.0
    %1050 = vmatpush1.xpose.msra.mxu0 0.0
    %1051 = vmatprep.subr.mxu0 0.0
    %1052 = vmatpush1.xpose.msra.mxu0 0.0
    %1053 = vmatprep.subr.mxu0 0.0
    %1054 = vmatpush1.xpose.msra.mxu0 0.0
    %1055 = vmatprep.subr.mxu0 0.0
    %1056 = vmatpush1.xpose.msra.mxu0 0.0
    %1057 = vmatprep.subr.mxu0 0.0
    %1058 = vmatpush1.xpose.msra.mxu0 0.0
    %1059 = vmatprep.mubr.f32.mxu0 0.0
    %1060 = vmatmul.mubr.f32.gmra.mrb[0].mxu0 %v963
    %v1061 = vpop.f32.mrb[0].mxu0
    %v1062 = vadd.f32 %v205, %v1061
    %v1063 = vpop.f32.mrb[0].mxu0
    %1064 = vmatprep.mubr.f32.mxu0 0.0
    %1065 = vmatmul.mubr.f32.gmra.mrb[0].mxu0 %v965
    %v1066 = vpop.f32.mrb[0].mxu0
    %v1067 = vadd.f32 %v206, %v1066
    %v1068 = vpop.f32.mrb[0].mxu0
    %1069 = vmatprep.mubr.f32.mxu0 0.0
    %1070 = vmatmul.mubr.f32.gmra.mrb[0].mxu0 %v967
    %v1071 = vpop.f32.mrb[0].mxu0
    %v1072 = vadd.f32 %v207, %v1071
    %v1073 = vpop.f32.mrb[0].mxu0
    %1074 = vmatprep.mubr.f32.mxu0 0.0
    %1075 = vmatmul.mubr.f32.gmra.mrb[0].mxu0 %v969
    %v1076 = vpop.f32.mrb[0].mxu0
    %v1077 = vadd.f32 %v208, %v1076
    %v1078 = vpop.f32.mrb[0].mxu0
    %1079 = vmatprep.mubr.f32.mxu0 0.0
    %1080 = vmatmul.mubr.f32.gmra.mrb[0].mxu0 %v971
    %v1081 = vpop.f32.mrb[0].mxu0
    %v1082 = vadd.f32 %v209, %v1081
    %v1083 = vpop.f32.mrb[0].mxu0
    %1084 = vmatprep.mubr.f32.mxu0 0.0
    %1085 = vmatmul.mubr.f32.gmra.mrb[0].mxu0 %v973
    %v1086 = vpop.f32.mrb[0].mxu0
    %v1087 = vadd.f32 %v210, %v1086
    %v1088 = vpop.f32.mrb[0].mxu0
    %1089 = vmatprep.mubr.f32.mxu0 0.0
    %1090 = vmatmul.mubr.f32.gmra.mrb[0].mxu0 %v975
    %v1091 = vpop.f32.mrb[0].mxu0
    %v1092 = vadd.f32 %v211, %v1091
    %v1093 = vpop.f32.mrb[0].mxu0
    %1094 = vmatprep.mubr.f32.mxu0 0.0
    %1095 = vmatmul.mubr.f32.gmra.mrb[0].mxu0 %v977
    %v1096 = vpop.f32.mrb[0].mxu0
    %v1097 = vadd.f32 %v212, %v1096
    %v1098 = vpop.f32.mrb[0].mxu0
    %1099 = vdwg.mxu0
    %1100 = vrot.lane.b32.xlu0 %v167, 120
    %v1101 = vpop.permute.xlu0 %1100
    %1102 = vrot.lane.b32.xlu0 %v170, 120
    %v1103 = vpop.permute.xlu0 %1102
    %1104 = vrot.lane.b32.xlu0 %v175, 120
    %v1105 = vpop.permute.xlu0 %1104
    %1106 = vrot.lane.b32.xlu0 %v178, 120
    %v1107 = vpop.permute.xlu0 %1106
    %1108 = vrot.lane.b32.xlu0 %v183, 120
    %v1109 = vpop.permute.xlu0 %1108
    %1110 = vrot.lane.b32.xlu0 %v186, 120
    %v1111 = vpop.permute.xlu0 %1110
    %1112 = vrot.lane.b32.xlu0 %v191, 120
    %v1113 = vpop.permute.xlu0 %1112
    %1114 = vrot.lane.b32.xlu0 %v194, 120
    %v1115 = vpop.permute.xlu0 %1114
    %1116 = vrot.lane.b32.xlu0 %v167, 88
    %v1117 = vpop.permute.xlu0 %1116
    %1118 = vrot.lane.b32.xlu0 %v170, 88
    %v1119 = vpop.permute.xlu0 %1118
    %1120 = vrot.lane.b32.xlu0 %v175, 88
    %v1121 = vpop.permute.xlu0 %1120
    %1122 = vrot.lane.b32.xlu0 %v178, 88
    %v1123 = vpop.permute.xlu0 %1122
    %1124 = vrot.lane.b32.xlu0 %v183, 88
    %v1125 = vpop.permute.xlu0 %1124
    %1126 = vrot.lane.b32.xlu0 %v186, 88
    %v1127 = vpop.permute.xlu0 %1126
    %1128 = vrot.lane.b32.xlu0 %v191, 88
    %v1129 = vpop.permute.xlu0 %1128
    %1130 = vrot.lane.b32.xlu0 %v194, 88
    %v1131 = vpop.permute.xlu0 %1130
    %v1132 = vsel %vm253, %v1101, 0
    %v1134 = vsel %vm253, %v1103, 0
    %v1136 = vsel %vm253, %v1105, 0
    %v1138 = vsel %vm253, %v1107, 0
    %v1140 = vsel %vm253, %v1109, 0
    %v1142 = vsel %vm253, %v1111, 0
    %v1144 = vsel %vm253, %v1113, 0
    %v1146 = vsel %vm253, %v1115, 0
    %v1148 = vsel %vm253, %v1117, 0
    %v1150 = vsel %vm253, %v1119, 0
    %v1152 = vsel %vm253, %v1121, 0
    %v1154 = vsel %vm253, %v1123, 0
    %v1156 = vsel %vm253, %v1125, 0
    %v1158 = vsel %vm253, %v1127, 0
    %v1160 = vsel %vm253, %v1129, 0
    %v1162 = vsel %vm253, %v1131, 0
    %1164 = vmatprep.subr.mxu0 0.0
    %1165 = vmatpush1.xpose.msra.mxu0 %v1148
    %1166 = vmatprep.subr.mxu0 0.0
    %1167 = vmatpush1.xpose.msra.mxu0 %v1150
    %1168 = vmatprep.subr.mxu0 0.0
    %1169 = vmatpush1.xpose.msra.mxu0 %v1152
    %1170 = vmatprep.subr.mxu0 0.0
    %1171 = vmatpush1.xpose.msra.mxu0 %v1154
    %1172 = vmatprep.subr.mxu0 0.0
    %1173 = vmatpush1.xpose.msra.mxu0 %v1156
    %1174 = vmatprep.subr.mxu0 0.0
    %1175 = vmatpush1.xpose.msra.mxu0 %v1158
    %1176 = vmatprep.subr.mxu0 0.0
    %1177 = vmatpush1.xpose.msra.mxu0 %v1160
    %1178 = vmatprep.subr.mxu0 0.0
    %1179 = vmatpush1.xpose.msra.mxu0 %v1162
    %1180 = vmatprep.subr.mxu0 0.0
    %1181 = vmatpush1.xpose.msra.mxu0 0.0
    %1182 = vmatprep.subr.mxu0 0.0
    %1183 = vmatpush1.xpose.msra.mxu0 0.0
    %1184 = vmatprep.subr.mxu0 0.0
    %1185 = vmatpush1.xpose.msra.mxu0 0.0
    %1186 = vmatprep.subr.mxu0 0.0
    %1187 = vmatpush1.xpose.msra.mxu0 0.0
    %1188 = vmatprep.subr.mxu0 0.0
    %1189 = vmatpush1.xpose.msra.mxu0 0.0
    %1190 = vmatprep.subr.mxu0 0.0
    %1191 = vmatpush1.xpose.msra.mxu0 0.0
    %1192 = vmatprep.subr.mxu0 0.0
    %1193 = vmatpush1.xpose.msra.mxu0 0.0
    %1194 = vmatprep.subr.mxu0 0.0
    %1195 = vmatpush1.xpose.msra.mxu0 0.0
    %1196 = vmatprep.subr.mxu0 0.0
    %1197 = vmatpush1.xpose.msra.mxu0 0.0
    %1198 = vmatprep.subr.mxu0 0.0
    %1199 = vmatpush1.xpose.msra.mxu0 0.0
    %1200 = vmatprep.subr.mxu0 0.0
    %1201 = vmatpush1.xpose.msra.mxu0 0.0
    %1202 = vmatprep.subr.mxu0 0.0
    %1203 = vmatpush1.xpose.msra.mxu0 0.0
    %1204 = vmatprep.subr.mxu0 0.0
    %1205 = vmatpush1.xpose.msra.mxu0 0.0
    %1206 = vmatprep.subr.mxu0 0.0
    %1207 = vmatpush1.xpose.msra.mxu0 0.0
    %1208 = vmatprep.subr.mxu0 0.0
    %1209 = vmatpush1.xpose.msra.mxu0 0.0
    %1210 = vmatprep.subr.mxu0 0.0
    %1211 = vmatpush1.xpose.msra.mxu0 0.0
    %1212 = vmatprep.subr.mxu0 0.0
    %1213 = vmatpush1.xpose.msra.mxu0 0.0
    %1214 = vmatprep.subr.mxu0 0.0
    %1215 = vmatpush1.xpose.msra.mxu0 0.0
    %1216 = vmatprep.subr.mxu0 0.0
    %1217 = vmatpush1.xpose.msra.mxu0 0.0
    %1218 = vmatprep.subr.mxu0 0.0
    %1219 = vmatpush1.xpose.msra.mxu0 0.0
    %1220 = vmatprep.subr.mxu0 0.0
    %1221 = vmatpush1.xpose.msra.mxu0 0.0
    %1222 = vmatprep.subr.mxu0 0.0
    %1223 = vmatpush1.xpose.msra.mxu0 0.0
    %1224 = vmatprep.subr.mxu0 0.0
    %1225 = vmatpush1.xpose.msra.mxu0 0.0
    %1226 = vmatprep.subr.mxu0 0.0
    %1227 = vmatpush1.xpose.msra.mxu0 0.0
    %1228 = vmatprep.mubr.f32.mxu0 0.0
    %1229 = vmatmul.mubr.f32.gmra.mrb[0].mxu0 %v1132
    %v1230 = vpop.f32.mrb[0].mxu0
    %v1231 = vadd.f32 %v205, %v1230
    %v1232 = vpop.f32.mrb[0].mxu0
    %1233 = vmatprep.mubr.f32.mxu0 0.0
    %1234 = vmatmul.mubr.f32.gmra.mrb[0].mxu0 %v1134
    %v1235 = vpop.f32.mrb[0].mxu0
    %v1236 = vadd.f32 %v206, %v1235
    %v1237 = vpop.f32.mrb[0].mxu0
    %1238 = vmatprep.mubr.f32.mxu0 0.0
    %1239 = vmatmul.mubr.f32.gmra.mrb[0].mxu0 %v1136
    %v1240 = vpop.f32.mrb[0].mxu0
    %v1241 = vadd.f32 %v207, %v1240
    %v1242 = vpop.f32.mrb[0].mxu0
    %1243 = vmatprep.mubr.f32.mxu0 0.0
    %1244 = vmatmul.mubr.f32.gmra.mrb[0].mxu0 %v1138
    %v1245 = vpop.f32.mrb[0].mxu0
    %v1246 = vadd.f32 %v208, %v1245
    %v1247 = vpop.f32.mrb[0].mxu0
    %1248 = vmatprep.mubr.f32.mxu0 0.0
    %1249 = vmatmul.mubr.f32.gmra.mrb[0].mxu0 %v1140
    %v1250 = vpop.f32.mrb[0].mxu0
    %v1251 = vadd.f32 %v209, %v1250
    %v1252 = vpop.f32.mrb[0].mxu0
    %1253 = vmatprep.mubr.f32.mxu0 0.0
    %1254 = vmatmul.mubr.f32.gmra.mrb[0].mxu0 %v1142
    %v1255 = vpop.f32.mrb[0].mxu0
    %v1256 = vadd.f32 %v210, %v1255
    %v1257 = vpop.f32.mrb[0].mxu0
    %1258 = vmatprep.mubr.f32.mxu0 0.0
    %1259 = vmatmul.mubr.f32.gmra.mrb[0].mxu0 %v1144
    %v1260 = vpop.f32.mrb[0].mxu0
    %v1261 = vadd.f32 %v211, %v1260
    %v1262 = vpop.f32.mrb[0].mxu0
    %1263 = vmatprep.mubr.f32.mxu0 0.0
    %1264 = vmatmul.mubr.f32.gmra.mrb[0].mxu0 %v1146
    %v1265 = vpop.f32.mrb[0].mxu0
    %v1266 = vadd.f32 %v212, %v1265
    %v1267 = vpop.f32.mrb[0].mxu0
    %1268 = vdwg.mxu0
    %v1269 = vsel %vm552, %v1062, -inf
    %1270 = vmax.xlane.f32.xlu0 %v1269
    %v1271 = vpop.xlane.xlu0 %1270
    %v1272 = vsel %vm552, %v1067, -inf
    %1273 = vmax.xlane.f32.xlu0 %v1272
    %v1274 = vpop.xlane.xlu0 %1273
    %v1275 = vsel %vm552, %v1072, -inf
    %1276 = vmax.xlane.f32.xlu0 %v1275
    %v1277 = vpop.xlane.xlu0 %1276
    %v1278 = vsel %vm552, %v1077, -inf
    %1279 = vmax.xlane.f32.xlu0 %v1278
    %v1280 = vpop.xlane.xlu0 %1279
    %v1281 = vsel %vm552, %v1082, -inf
    %1282 = vmax.xlane.f32.xlu0 %v1281
    %v1283 = vpop.xlane.xlu0 %1282
    %v1284 = vsel %vm552, %v1087, -inf
    %1285 = vmax.xlane.f32.xlu0 %v1284
    %v1286 = vpop.xlane.xlu0 %1285
    %v1287 = vsel %vm552, %v1092, -inf
    %1288 = vmax.xlane.f32.xlu0 %v1287
    %v1289 = vpop.xlane.xlu0 %1288
    %v1290 = vsel %vm552, %v1097, -inf
    %1291 = vmax.xlane.f32.xlu0 %v1290
    %v1292 = vpop.xlane.xlu0 %1291
    %v1293 = vsel %vm552, %v1231, -inf
    %1294 = vmax.xlane.f32.xlu0 %v1293
    %v1295 = vpop.xlane.xlu0 %1294
    %v1296 = vsel %vm552, %v1236, -inf
    %1297 = vmax.xlane.f32.xlu0 %v1296
    %v1298 = vpop.xlane.xlu0 %1297
    %v1299 = vsel %vm552, %v1241, -inf
    %1300 = vmax.xlane.f32.xlu0 %v1299
    %v1301 = vpop.xlane.xlu0 %1300
    %v1302 = vsel %vm552, %v1246, -inf
    %1303 = vmax.xlane.f32.xlu0 %v1302
    %v1304 = vpop.xlane.xlu0 %1303
    %v1305 = vsel %vm552, %v1251, -inf
    %1306 = vmax.xlane.f32.xlu0 %v1305
    %v1307 = vpop.xlane.xlu0 %1306
    %v1308 = vsel %vm552, %v1256, -inf
    %1309 = vmax.xlane.f32.xlu0 %v1308
    %v1310 = vpop.xlane.xlu0 %1309
    %v1311 = vsel %vm552, %v1261, -inf
    %1312 = vmax.xlane.f32.xlu0 %v1311
    %v1313 = vpop.xlane.xlu0 %1312
    %v1314 = vsel %vm552, %v1266, -inf
    %1315 = vmax.xlane.f32.xlu0 %v1314
    %v1316 = vpop.xlane.xlu0 %1315
    %v1317 = vsub.f32 %v1062, %v1271
    %v1318 = vsub.f32 %v1067, %v1274
    %v1319 = vsub.f32 %v1072, %v1277
    %v1320 = vsub.f32 %v1077, %v1280
    %v1321 = vsub.f32 %v1082, %v1283
    %v1322 = vsub.f32 %v1087, %v1286
    %v1323 = vsub.f32 %v1092, %v1289
    %v1324 = vsub.f32 %v1097, %v1292
    %v1325 = vsub.f32 %v1231, %v1295
    %v1326 = vsub.f32 %v1236, %v1298
    %v1327 = vsub.f32 %v1241, %v1301
    %v1328 = vsub.f32 %v1246, %v1304
    %v1329 = vsub.f32 %v1251, %v1307
    %v1330 = vsub.f32 %v1256, %v1310
    %v1331 = vsub.f32 %v1261, %v1313
    %v1332 = vsub.f32 %v1266, %v1316
    %v1333 = vmul.f32 %v1317, 1.442695
    %v1334 = vpow.pop %v1333
    %v1335 = vmul.f32 %v1318, 1.442695
    %v1336 = vpow.pop %v1335
    %v1337 = vmul.f32 %v1319, 1.442695
    %v1338 = vpow.pop %v1337
    %v1339 = vmul.f32 %v1320, 1.442695
    %v1340 = vpow.pop %v1339
    %v1341 = vmul.f32 %v1321, 1.442695
    %v1342 = vpow.pop %v1341
    %v1343 = vmul.f32 %v1322, 1.442695
    %v1344 = vpow.pop %v1343
    %v1345 = vmul.f32 %v1323, 1.442695
    %v1346 = vpow.pop %v1345
    %v1347 = vmul.f32 %v1324, 1.442695
    %v1348 = vpow.pop %v1347
    %v1349 = vmul.f32 %v1325, 1.442695
    %v1350 = vpow.pop %v1349
    %v1351 = vmul.f32 %v1326, 1.442695
    %v1352 = vpow.pop %v1351
    %v1353 = vmul.f32 %v1327, 1.442695
    %v1354 = vpow.pop %v1353
    %v1355 = vmul.f32 %v1328, 1.442695
    %v1356 = vpow.pop %v1355
    %v1357 = vmul.f32 %v1329, 1.442695
    %v1358 = vpow.pop %v1357
    %v1359 = vmul.f32 %v1330, 1.442695
    %v1360 = vpow.pop %v1359
    %v1361 = vmul.f32 %v1331, 1.442695
    %v1362 = vpow.pop %v1361
    %v1363 = vmul.f32 %v1332, 1.442695
    %v1364 = vpow.pop %v1363
    %v1365 = vsel %vm552, %v1334, 0.0
    %1366 = vadd.xlane.f32.xlu0 %v1365
    %v1367 = vpop.xlane.xlu0 %1366
    %v1368 = vsel %vm552, %v1336, 0.0
    %1369 = vadd.xlane.f32.xlu0 %v1368
    %v1370 = vpop.xlane.xlu0 %1369
    %v1371 = vsel %vm552, %v1338, 0.0
    %1372 = vadd.xlane.f32.xlu0 %v1371
    %v1373 = vpop.xlane.xlu0 %1372
    %v1374 = vsel %vm552, %v1340, 0.0
    %1375 = vadd.xlane.f32.xlu0 %v1374
    %v1376 = vpop.xlane.xlu0 %1375
    %v1377 = vsel %vm552, %v1342, 0.0
    %1378 = vadd.xlane.f32.xlu0 %v1377
    %v1379 = vpop.xlane.xlu0 %1378
    %v1380 = vsel %vm552, %v1344, 0.0
    %1381 = vadd.xlane.f32.xlu0 %v1380
    %v1382 = vpop.xlane.xlu0 %1381
    %v1383 = vsel %vm552, %v1346, 0.0
    %1384 = vadd.xlane.f32.xlu0 %v1383
    %v1385 = vpop.xlane.xlu0 %1384
    %v1386 = vsel %vm552, %v1348, 0.0
    %1387 = vadd.xlane.f32.xlu0 %v1386
    %v1388 = vpop.xlane.xlu0 %1387
    %v1389 = vsel %vm552, %v1350, 0.0
    %1390 = vadd.xlane.f32.xlu0 %v1389
    %v1391 = vpop.xlane.xlu0 %1390
    %v1392 = vsel %vm552, %v1352, 0.0
    %1393 = vadd.xlane.f32.xlu0 %v1392
    %v1394 = vpop.xlane.xlu0 %1393
    %v1395 = vsel %vm552, %v1354, 0.0
    %1396 = vadd.xlane.f32.xlu0 %v1395
    %v1397 = vpop.xlane.xlu0 %1396
    %v1398 = vsel %vm552, %v1356, 0.0
    %1399 = vadd.xlane.f32.xlu0 %v1398
    %v1400 = vpop.xlane.xlu0 %1399
    %v1401 = vsel %vm552, %v1358, 0.0
    %1402 = vadd.xlane.f32.xlu0 %v1401
    %v1403 = vpop.xlane.xlu0 %1402
    %v1404 = vsel %vm552, %v1360, 0.0
    %1405 = vadd.xlane.f32.xlu0 %v1404
    %v1406 = vpop.xlane.xlu0 %1405
    %v1407 = vsel %vm552, %v1362, 0.0
    %1408 = vadd.xlane.f32.xlu0 %v1407
    %v1409 = vpop.xlane.xlu0 %1408
    %v1410 = vsel %vm552, %v1364, 0.0
    %1411 = vadd.xlane.f32.xlu0 %v1410
    %v1412 = vpop.xlane.xlu0 %1411
    %v1413 = vrcp.pop %v1367
    %v1414 = vrcp.pop %v1370
    %v1415 = vrcp.pop %v1373
    %v1416 = vrcp.pop %v1376
    %v1417 = vrcp.pop %v1379
    %v1418 = vrcp.pop %v1382
    %v1419 = vrcp.pop %v1385
    %v1420 = vrcp.pop %v1388
    %v1421 = vrcp.pop %v1391
    %v1422 = vrcp.pop %v1394
    %v1423 = vrcp.pop %v1397
    %v1424 = vrcp.pop %v1400
    %v1425 = vrcp.pop %v1403
    %v1426 = vrcp.pop %v1406
    %v1427 = vrcp.pop %v1409
    %v1428 = vrcp.pop %v1412
    %v1429 = vmul.f32 %v1334, %v1413
    %v1430 = vmul.f32 %v1336, %v1414
    %v1431 = vmul.f32 %v1338, %v1415
    %v1432 = vmul.f32 %v1340, %v1416
    %v1433 = vmul.f32 %v1342, %v1417
    %v1434 = vmul.f32 %v1344, %v1418
    %v1435 = vmul.f32 %v1346, %v1419
    %v1436 = vmul.f32 %v1348, %v1420
    %v1437 = vmul.f32 %v1350, %v1421
    %v1438 = vmul.f32 %v1352, %v1422
    %v1439 = vmul.f32 %v1354, %v1423
    %v1440 = vmul.f32 %v1356, %v1424
    %v1441 = vmul.f32 %v1358, %v1425
    %v1442 = vmul.f32 %v1360, %v1426
    %v1443 = vmul.f32 %v1362, %v1427
    %v1444 = vmul.f32 %v1364, %v1428
    %v1445 = vpack.c.bf16 %v1430, %v1429
    %v1446 = vpack.c.bf16 %v1432, %v1431
    %v1447 = vpack.c.bf16 %v1434, %v1433
    %v1448 = vpack.c.bf16 %v1436, %v1435
    %v1449 = vpack.c.bf16 %v1438, %v1437
    %v1450 = vpack.c.bf16 %v1440, %v1439
    %v1451 = vpack.c.bf16 %v1442, %v1441
    %v1452 = vpack.c.bf16 %v1444, %v1443
    %1453 = vrot.lane.b32.xlu0 %v737, 56
    %v1454 = vpop.permute.xlu0 %1453
    %1455 = vrot.lane.b32.xlu0 %v738, 56
    %v1456 = vpop.permute.xlu0 %1455
    %1457 = vrot.lane.b32.xlu0 %v739, 56
    %v1458 = vpop.permute.xlu0 %1457
    %1459 = vrot.lane.b32.xlu0 %v740, 56
    %v1460 = vpop.permute.xlu0 %1459
    %v1466 = vsel %vm552, %v1445, 0
    %v1469 = vsel %vm552, %v1446, 0
    %v1472 = vsel %vm552, %v1447, 0
    %v1475 = vsel %vm552, %v1448, 0
    %1477 = vmatprep.subr.bf16.mxu0 0
    %1478 = vmatpush1.bf16.msra.mxu0 %v1454
    %1479 = vmatprep.subr.bf16.mxu0 0
    %1480 = vmatpush1.bf16.msra.mxu0 %v1456
    %1481 = vmatprep.subr.bf16.mxu0 0
    %1482 = vmatpush1.bf16.msra.mxu0 %v1458
    %1483 = vmatprep.subr.bf16.mxu0 0
    %1484 = vmatpush1.bf16.msra.mxu0 %v1460
    %1485 = vmatprep.subr.bf16.mxu0 0
    %1486 = vmatpush1.bf16.msra.mxu0 0
    %1487 = vmatprep.subr.bf16.mxu0 0
    %1488 = vmatpush1.bf16.msra.mxu0 0
    %1489 = vmatprep.subr.bf16.mxu0 0
    %1490 = vmatpush1.bf16.msra.mxu0 0
    %1491 = vmatprep.subr.bf16.mxu0 0
    %1492 = vmatpush1.bf16.msra.mxu0 0
    %1493 = vmatprep.subr.bf16.mxu0 0
    %1494 = vmatpush1.bf16.msra.mxu0 0
    %1495 = vmatprep.subr.bf16.mxu0 0
    %1496 = vmatpush1.bf16.msra.mxu0 0
    %1497 = vmatprep.subr.bf16.mxu0 0
    %1498 = vmatpush1.bf16.msra.mxu0 0
    %1499 = vmatprep.subr.bf16.mxu0 0
    %1500 = vmatpush1.bf16.msra.mxu0 0
    %1501 = vmatprep.subr.bf16.mxu0 0
    %1502 = vmatpush1.bf16.msra.mxu0 0
    %1503 = vmatprep.subr.bf16.mxu0 0
    %1504 = vmatpush1.bf16.msra.mxu0 0
    %1505 = vmatprep.subr.bf16.mxu0 0
    %1506 = vmatpush1.bf16.msra.mxu0 0
    %1507 = vmatprep.subr.bf16.mxu0 0
    %1508 = vmatpush1.bf16.msra.mxu0 0
    %1509 = vmatprep.mubr.bf16.mxu0 0
    %1510 = vmatmul.mubr.bf16.gmra.mrb[0].mxu0 %v1466
    %v1511 = vpop.f32.mrb[0].mxu0
    %v1512 = vadd.f32 0.0, %v1511
    %v1513 = vpop.f32.mrb[0].mxu0
    %v1514 = vpop.f32.mrb[0].mxu0
    %v1515 = vadd.f32 0.0, %v1514
    %v1516 = vpop.f32.mrb[0].mxu0
    %1517 = vmatprep.mubr.bf16.mxu0 0
    %1518 = vmatmul.mubr.bf16.gmra.mrb[0].mxu0 %v1469
    %v1519 = vpop.f32.mrb[0].mxu0
    %v1520 = vadd.f32 0.0, %v1519
    %v1521 = vpop.f32.mrb[0].mxu0
    %v1522 = vpop.f32.mrb[0].mxu0
    %v1523 = vadd.f32 0.0, %v1522
    %v1524 = vpop.f32.mrb[0].mxu0
    %1525 = vmatprep.mubr.bf16.mxu0 0
    %1526 = vmatmul.mubr.bf16.gmra.mrb[0].mxu0 %v1472
    %v1527 = vpop.f32.mrb[0].mxu0
    %v1528 = vadd.f32 0.0, %v1527
    %v1529 = vpop.f32.mrb[0].mxu0
    %v1530 = vpop.f32.mrb[0].mxu0
    %v1531 = vadd.f32 0.0, %v1530
    %v1532 = vpop.f32.mrb[0].mxu0
    %1533 = vmatprep.mubr.bf16.mxu0 0
    %1534 = vmatmul.mubr.bf16.gmra.mrb[0].mxu0 %v1475
    %v1535 = vpop.f32.mrb[0].mxu0
    %v1536 = vadd.f32 0.0, %v1535
    %v1537 = vpop.f32.mrb[0].mxu0
    %v1538 = vpop.f32.mrb[0].mxu0
    %v1539 = vadd.f32 0.0, %v1538
    %v1540 = vpop.f32.mrb[0].mxu0
    %1541 = vdwg.mxu0
    %1542 = vrot.lane.b32.xlu0 %v741, 56
    %v1543 = vpop.permute.xlu0 %1542
    %1544 = vrot.lane.b32.xlu0 %v742, 56
    %v1545 = vpop.permute.xlu0 %1544
    %1546 = vrot.lane.b32.xlu0 %v743, 56
    %v1547 = vpop.permute.xlu0 %1546
    %1548 = vrot.lane.b32.xlu0 %v744, 56
    %v1549 = vpop.permute.xlu0 %1548
    %v1555 = vsel %vm552, %v1449, 0
    %v1558 = vsel %vm552, %v1450, 0
    %v1561 = vsel %vm552, %v1451, 0
    %v1564 = vsel %vm552, %v1452, 0
    %1566 = vmatprep.subr.bf16.mxu0 0
    %1567 = vmatpush1.bf16.msra.mxu0 %v1543
    %1568 = vmatprep.subr.bf16.mxu0 0
    %1569 = vmatpush1.bf16.msra.mxu0 %v1545
    %1570 = vmatprep.subr.bf16.mxu0 0
    %1571 = vmatpush1.bf16.msra.mxu0 %v1547
    %1572 = vmatprep.subr.bf16.mxu0 0
    %1573 = vmatpush1.bf16.msra.mxu0 %v1549
    %1574 = vmatprep.subr.bf16.mxu0 0
    %1575 = vmatpush1.bf16.msra.mxu0 0
    %1576 = vmatprep.subr.bf16.mxu0 0
    %1577 = vmatpush1.bf16.msra.mxu0 0
    %1578 = vmatprep.subr.bf16.mxu0 0
    %1579 = vmatpush1.bf16.msra.mxu0 0
    %1580 = vmatprep.subr.bf16.mxu0 0
    %1581 = vmatpush1.bf16.msra.mxu0 0
    %1582 = vmatprep.subr.bf16.mxu0 0
    %1583 = vmatpush1.bf16.msra.mxu0 0
    %1584 = vmatprep.subr.bf16.mxu0 0
    %1585 = vmatpush1.bf16.msra.mxu0 0
    %1586 = vmatprep.subr.bf16.mxu0 0
    %1587 = vmatpush1.bf16.msra.mxu0 0
    %1588 = vmatprep.subr.bf16.mxu0 0
    %1589 = vmatpush1.bf16.msra.mxu0 0
    %1590 = vmatprep.subr.bf16.mxu0 0
    %1591 = vmatpush1.bf16.msra.mxu0 0
    %1592 = vmatprep.subr.bf16.mxu0 0
    %1593 = vmatpush1.bf16.msra.mxu0 0
    %1594 = vmatprep.subr.bf16.mxu0 0
    %1595 = vmatpush1.bf16.msra.mxu0 0
    %1596 = vmatprep.subr.bf16.mxu0 0
    %1597 = vmatpush1.bf16.msra.mxu0 0
    %1598 = vmatprep.mubr.bf16.mxu0 0
    %1599 = vmatmul.mubr.bf16.gmra.mrb[0].mxu0 %v1555
    %v1600 = vpop.f32.mrb[0].mxu0
    %v1601 = vadd.f32 0.0, %v1600
    %v1602 = vpop.f32.mrb[0].mxu0
    %v1603 = vpop.f32.mrb[0].mxu0
    %v1604 = vadd.f32 0.0, %v1603
    %v1605 = vpop.f32.mrb[0].mxu0
    %1606 = vmatprep.mubr.bf16.mxu0 0
    %1607 = vmatmul.mubr.bf16.gmra.mrb[0].mxu0 %v1558
    %v1608 = vpop.f32.mrb[0].mxu0
    %v1609 = vadd.f32 0.0, %v1608
    %v1610 = vpop.f32.mrb[0].mxu0
    %v1611 = vpop.f32.mrb[0].mxu0
    %v1612 = vadd.f32 0.0, %v1611
    %v1613 = vpop.f32.mrb[0].mxu0
    %1614 = vmatprep.mubr.bf16.mxu0 0
    %1615 = vmatmul.mubr.bf16.gmra.mrb[0].mxu0 %v1561
    %v1616 = vpop.f32.mrb[0].mxu0
    %v1617 = vadd.f32 0.0, %v1616
    %v1618 = vpop.f32.mrb[0].mxu0
    %v1619 = vpop.f32.mrb[0].mxu0
    %v1620 = vadd.f32 0.0, %v1619
    %v1621 = vpop.f32.mrb[0].mxu0
    %1622 = vmatprep.mubr.bf16.mxu0 0
    %1623 = vmatmul.mubr.bf16.gmra.mrb[0].mxu0 %v1564
    %v1624 = vpop.f32.mrb[0].mxu0
    %v1625 = vadd.f32 0.0, %v1624
    %v1626 = vpop.f32.mrb[0].mxu0
    %v1627 = vpop.f32.mrb[0].mxu0
    %v1628 = vadd.f32 0.0, %v1627
    %v1629 = vpop.f32.mrb[0].mxu0
    %1630 = vdwg.mxu0
    %1631 = vrot.lane.b32.xlu0 %v135, 112
    %v1632 = vpop.permute.xlu0 %1631
    %1633 = vrot.lane.b32.xlu0 %v138, 112
    %v1634 = vpop.permute.xlu0 %1633
    %1635 = vrot.lane.b32.xlu0 %v143, 112
    %v1636 = vpop.permute.xlu0 %1635
    %1637 = vrot.lane.b32.xlu0 %v146, 112
    %v1638 = vpop.permute.xlu0 %1637
    %1639 = vrot.lane.b32.xlu0 %v151, 112
    %v1640 = vpop.permute.xlu0 %1639
    %1641 = vrot.lane.b32.xlu0 %v154, 112
    %v1642 = vpop.permute.xlu0 %1641
    %1643 = vrot.lane.b32.xlu0 %v159, 112
    %v1644 = vpop.permute.xlu0 %1643
    %1645 = vrot.lane.b32.xlu0 %v162, 112
    %v1646 = vpop.permute.xlu0 %1645
    %1647 = vrot.lane.b32.xlu0 %v135, 80
    %v1648 = vpop.permute.xlu0 %1647
    %1649 = vrot.lane.b32.xlu0 %v138, 80
    %v1650 = vpop.permute.xlu0 %1649
    %1651 = vrot.lane.b32.xlu0 %v143, 80
    %v1652 = vpop.permute.xlu0 %1651
    %1653 = vrot.lane.b32.xlu0 %v146, 80
    %v1654 = vpop.permute.xlu0 %1653
    %1655 = vrot.lane.b32.xlu0 %v151, 80
    %v1656 = vpop.permute.xlu0 %1655
    %1657 = vrot.lane.b32.xlu0 %v154, 80
    %v1658 = vpop.permute.xlu0 %1657
    %1659 = vrot.lane.b32.xlu0 %v159, 80
    %v1660 = vpop.permute.xlu0 %1659
    %1661 = vrot.lane.b32.xlu0 %v162, 80
    %v1662 = vpop.permute.xlu0 %1661
    %v1663 = vsel %vm253, %v1632, 0
    %v1665 = vsel %vm253, %v1634, 0
    %v1667 = vsel %vm253, %v1636, 0
    %v1669 = vsel %vm253, %v1638, 0
    %v1671 = vsel %vm253, %v1640, 0
    %v1673 = vsel %vm253, %v1642, 0
    %v1675 = vsel %vm253, %v1644, 0
    %v1677 = vsel %vm253, %v1646, 0
    %v1679 = vsel %vm253, %v1648, 0
    %v1681 = vsel %vm253, %v1650, 0
    %v1683 = vsel %vm253, %v1652, 0
    %v1685 = vsel %vm253, %v1654, 0
    %v1687 = vsel %vm253, %v1656, 0
    %v1689 = vsel %vm253, %v1658, 0
    %v1691 = vsel %vm253, %v1660, 0
    %v1693 = vsel %vm253, %v1662, 0
    %1695 = vmatprep.subr.mxu0 0.0
    %1696 = vmatpush1.xpose.msra.mxu0 %v1679
    %1697 = vmatprep.subr.mxu0 0.0
    %1698 = vmatpush1.xpose.msra.mxu0 %v1681
    %1699 = vmatprep.subr.mxu0 0.0
    %1700 = vmatpush1.xpose.msra.mxu0 %v1683
    %1701 = vmatprep.subr.mxu0 0.0
    %1702 = vmatpush1.xpose.msra.mxu0 %v1685
    %1703 = vmatprep.subr.mxu0 0.0
    %1704 = vmatpush1.xpose.msra.mxu0 %v1687
    %1705 = vmatprep.subr.mxu0 0.0
    %1706 = vmatpush1.xpose.msra.mxu0 %v1689
    %1707 = vmatprep.subr.mxu0 0.0
    %1708 = vmatpush1.xpose.msra.mxu0 %v1691
    %1709 = vmatprep.subr.mxu0 0.0
    %1710 = vmatpush1.xpose.msra.mxu0 %v1693
    %1711 = vmatprep.subr.mxu0 0.0
    %1712 = vmatpush1.xpose.msra.mxu0 0.0
    %1713 = vmatprep.subr.mxu0 0.0
    %1714 = vmatpush1.xpose.msra.mxu0 0.0
    %1715 = vmatprep.subr.mxu0 0.0
    %1716 = vmatpush1.xpose.msra.mxu0 0.0
    %1717 = vmatprep.subr.mxu0 0.0
    %1718 = vmatpush1.xpose.msra.mxu0 0.0
    %1719 = vmatprep.subr.mxu0 0.0
    %1720 = vmatpush1.xpose.msra.mxu0 0.0
    %1721 = vmatprep.subr.mxu0 0.0
    %1722 = vmatpush1.xpose.msra.mxu0 0.0
    %1723 = vmatprep.subr.mxu0 0.0
    %1724 = vmatpush1.xpose.msra.mxu0 0.0
    %1725 = vmatprep.subr.mxu0 0.0
    %1726 = vmatpush1.xpose.msra.mxu0 0.0
    %1727 = vmatprep.subr.mxu0 0.0
    %1728 = vmatpush1.xpose.msra.mxu0 0.0
    %1729 = vmatprep.subr.mxu0 0.0
    %1730 = vmatpush1.xpose.msra.mxu0 0.0
    %1731 = vmatprep.subr.mxu0 0.0
    %1732 = vmatpush1.xpose.msra.mxu0 0.0
    %1733 = vmatprep.subr.mxu0 0.0
    %1734 = vmatpush1.xpose.msra.mxu0 0.0
    %1735 = vmatprep.subr.mxu0 0.0
    %1736 = vmatpush1.xpose.msra.mxu0 0.0
    %1737 = vmatprep.subr.mxu0 0.0
    %1738 = vmatpush1.xpose.msra.mxu0 0.0
    %1739 = vmatprep.subr.mxu0 0.0
    %1740 = vmatpush1.xpose.msra.mxu0 0.0
    %1741 = vmatprep.subr.mxu0 0.0
    %1742 = vmatpush1.xpose.msra.mxu0 0.0
    %1743 = vmatprep.subr.mxu0 0.0
    %1744 = vmatpush1.xpose.msra.mxu0 0.0
    %1745 = vmatprep.subr.mxu0 0.0
    %1746 = vmatpush1.xpose.msra.mxu0 0.0
    %1747 = vmatprep.subr.mxu0 0.0
    %1748 = vmatpush1.xpose.msra.mxu0 0.0
    %1749 = vmatprep.subr.mxu0 0.0
    %1750 = vmatpush1.xpose.msra.mxu0 0.0
    %1751 = vmatprep.subr.mxu0 0.0
    %1752 = vmatpush1.xpose.msra.mxu0 0.0
    %1753 = vmatprep.subr.mxu0 0.0
    %1754 = vmatpush1.xpose.msra.mxu0 0.0
    %1755 = vmatprep.subr.mxu0 0.0
    %1756 = vmatpush1.xpose.msra.mxu0 0.0
    %1757 = vmatprep.subr.mxu0 0.0
    %1758 = vmatpush1.xpose.msra.mxu0 0.0
    %1759 = vmatprep.mubr.f32.mxu0 0.0
    %1760 = vmatmul.mubr.f32.gmra.mrb[0].mxu0 %v1663
    %v1761 = vpop.f32.mrb[0].mxu0
    %v1762 = vadd.f32 %v213, %v1761
    %v1763 = vpop.f32.mrb[0].mxu0
    %1764 = vmatprep.mubr.f32.mxu0 0.0
    %1765 = vmatmul.mubr.f32.gmra.mrb[0].mxu0 %v1665
    %v1766 = vpop.f32.mrb[0].mxu0
    %v1767 = vadd.f32 %v214, %v1766
    %v1768 = vpop.f32.mrb[0].mxu0
    %1769 = vmatprep.mubr.f32.mxu0 0.0
    %1770 = vmatmul.mubr.f32.gmra.mrb[0].mxu0 %v1667
    %v1771 = vpop.f32.mrb[0].mxu0
    %v1772 = vadd.f32 %v215, %v1771
    %v1773 = vpop.f32.mrb[0].mxu0
    %1774 = vmatprep.mubr.f32.mxu0 0.0
    %1775 = vmatmul.mubr.f32.gmra.mrb[0].mxu0 %v1669
    %v1776 = vpop.f32.mrb[0].mxu0
    %v1777 = vadd.f32 %v216, %v1776
    %v1778 = vpop.f32.mrb[0].mxu0
    %1779 = vmatprep.mubr.f32.mxu0 0.0
    %1780 = vmatmul.mubr.f32.gmra.mrb[0].mxu0 %v1671
    %v1781 = vpop.f32.mrb[0].mxu0
    %v1782 = vadd.f32 %v217, %v1781
    %v1783 = vpop.f32.mrb[0].mxu0
    %1784 = vmatprep.mubr.f32.mxu0 0.0
    %1785 = vmatmul.mubr.f32.gmra.mrb[0].mxu0 %v1673
    %v1786 = vpop.f32.mrb[0].mxu0
    %v1787 = vadd.f32 %v218, %v1786
    %v1788 = vpop.f32.mrb[0].mxu0
    %1789 = vmatprep.mubr.f32.mxu0 0.0
    %1790 = vmatmul.mubr.f32.gmra.mrb[0].mxu0 %v1675
    %v1791 = vpop.f32.mrb[0].mxu0
    %v1792 = vadd.f32 %v219, %v1791
    %v1793 = vpop.f32.mrb[0].mxu0
    %1794 = vmatprep.mubr.f32.mxu0 0.0
    %1795 = vmatmul.mubr.f32.gmra.mrb[0].mxu0 %v1677
    %v1796 = vpop.f32.mrb[0].mxu0
    %v1797 = vadd.f32 %v220, %v1796
    %v1798 = vpop.f32.mrb[0].mxu0
    %1799 = vdwg.mxu0
    %1800 = vrot.lane.b32.xlu0 %v167, 112
    %v1801 = vpop.permute.xlu0 %1800
    %1802 = vrot.lane.b32.xlu0 %v170, 112
    %v1803 = vpop.permute.xlu0 %1802
    %1804 = vrot.lane.b32.xlu0 %v175, 112
    %v1805 = vpop.permute.xlu0 %1804
    %1806 = vrot.lane.b32.xlu0 %v178, 112
    %v1807 = vpop.permute.xlu0 %1806
    %1808 = vrot.lane.b32.xlu0 %v183, 112
    %v1809 = vpop.permute.xlu0 %1808
    %1810 = vrot.lane.b32.xlu0 %v186, 112
    %v1811 = vpop.permute.xlu0 %1810
    %1812 = vrot.lane.b32.xlu0 %v191, 112
    %v1813 = vpop.permute.xlu0 %1812
    %1814 = vrot.lane.b32.xlu0 %v194, 112
    %v1815 = vpop.permute.xlu0 %1814
    %1816 = vrot.lane.b32.xlu0 %v167, 80
    %v1817 = vpop.permute.xlu0 %1816
    %1818 = vrot.lane.b32.xlu0 %v170, 80
    %v1819 = vpop.permute.xlu0 %1818
    %1820 = vrot.lane.b32.xlu0 %v175, 80
    %v1821 = vpop.permute.xlu0 %1820
    %1822 = vrot.lane.b32.xlu0 %v178, 80
    %v1823 = vpop.permute.xlu0 %1822
    %1824 = vrot.lane.b32.xlu0 %v183, 80
    %v1825 = vpop.permute.xlu0 %1824
    %1826 = vrot.lane.b32.xlu0 %v186, 80
    %v1827 = vpop.permute.xlu0 %1826
    %1828 = vrot.lane.b32.xlu0 %v191, 80
    %v1829 = vpop.permute.xlu0 %1828
    %1830 = vrot.lane.b32.xlu0 %v194, 80
    %v1831 = vpop.permute.xlu0 %1830
    %v1832 = vsel %vm253, %v1801, 0
    %v1834 = vsel %vm253, %v1803, 0
    %v1836 = vsel %vm253, %v1805, 0
    %v1838 = vsel %vm253, %v1807, 0
    %v1840 = vsel %vm253, %v1809, 0
    %v1842 = vsel %vm253, %v1811, 0
    %v1844 = vsel %vm253, %v1813, 0
    %v1846 = vsel %vm253, %v1815, 0
    %v1848 = vsel %vm253, %v1817, 0
    %v1850 = vsel %vm253, %v1819, 0
    %v1852 = vsel %vm253, %v1821, 0
    %v1854 = vsel %vm253, %v1823, 0
    %v1856 = vsel %vm253, %v1825, 0
    %v1858 = vsel %vm253, %v1827, 0
    %v1860 = vsel %vm253, %v1829, 0
    %v1862 = vsel %vm253, %v1831, 0
    %1864 = vmatprep.subr.mxu0 0.0
    %1865 = vmatpush1.xpose.msra.mxu0 %v1848
    %1866 = vmatprep.subr.mxu0 0.0
    %1867 = vmatpush1.xpose.msra.mxu0 %v1850
    %1868 = vmatprep.subr.mxu0 0.0
    %1869 = vmatpush1.xpose.msra.mxu0 %v1852
    %1870 = vmatprep.subr.mxu0 0.0
    %1871 = vmatpush1.xpose.msra.mxu0 %v1854
    %1872 = vmatprep.subr.mxu0 0.0
    %1873 = vmatpush1.xpose.msra.mxu0 %v1856
    %1874 = vmatprep.subr.mxu0 0.0
    %1875 = vmatpush1.xpose.msra.mxu0 %v1858
    %1876 = vmatprep.subr.mxu0 0.0
    %1877 = vmatpush1.xpose.msra.mxu0 %v1860
    %1878 = vmatprep.subr.mxu0 0.0
    %1879 = vmatpush1.xpose.msra.mxu0 %v1862
    %1880 = vmatprep.subr.mxu0 0.0
    %1881 = vmatpush1.xpose.msra.mxu0 0.0
    %1882 = vmatprep.subr.mxu0 0.0
    %1883 = vmatpush1.xpose.msra.mxu0 0.0
    %1884 = vmatprep.subr.mxu0 0.0
    %1885 = vmatpush1.xpose.msra.mxu0 0.0
    %1886 = vmatprep.subr.mxu0 0.0
    %1887 = vmatpush1.xpose.msra.mxu0 0.0
    %1888 = vmatprep.subr.mxu0 0.0
    %1889 = vmatpush1.xpose.msra.mxu0 0.0
    %1890 = vmatprep.subr.mxu0 0.0
    %1891 = vmatpush1.xpose.msra.mxu0 0.0
    %1892 = vmatprep.subr.mxu0 0.0
    %1893 = vmatpush1.xpose.msra.mxu0 0.0
    %1894 = vmatprep.subr.mxu0 0.0
    %1895 = vmatpush1.xpose.msra.mxu0 0.0
    %1896 = vmatprep.subr.mxu0 0.0
    %1897 = vmatpush1.xpose.msra.mxu0 0.0
    %1898 = vmatprep.subr.mxu0 0.0
    %1899 = vmatpush1.xpose.msra.mxu0 0.0
    %1900 = vmatprep.subr.mxu0 0.0
    %1901 = vmatpush1.xpose.msra.mxu0 0.0
    %1902 = vmatprep.subr.mxu0 0.0
    %1903 = vmatpush1.xpose.msra.mxu0 0.0
    %1904 = vmatprep.subr.mxu0 0.0
    %1905 = vmatpush1.xpose.msra.mxu0 0.0
    %1906 = vmatprep.subr.mxu0 0.0
    %1907 = vmatpush1.xpose.msra.mxu0 0.0
    %1908 = vmatprep.subr.mxu0 0.0
    %1909 = vmatpush1.xpose.msra.mxu0 0.0
    %1910 = vmatprep.subr.mxu0 0.0
    %1911 = vmatpush1.xpose.msra.mxu0 0.0
    %1912 = vmatprep.subr.mxu0 0.0
    %1913 = vmatpush1.xpose.msra.mxu0 0.0
    %1914 = vmatprep.subr.mxu0 0.0
    %1915 = vmatpush1.xpose.msra.mxu0 0.0
    %1916 = vmatprep.subr.mxu0 0.0
    %1917 = vmatpush1.xpose.msra.mxu0 0.0
    %1918 = vmatprep.subr.mxu0 0.0
    %1919 = vmatpush1.xpose.msra.mxu0 0.0
    %1920 = vmatprep.subr.mxu0 0.0
    %1921 = vmatpush1.xpose.msra.mxu0 0.0
    %1922 = vmatprep.subr.mxu0 0.0
    %1923 = vmatpush1.xpose.msra.mxu0 0.0
    %1924 = vmatprep.subr.mxu0 0.0
    %1925 = vmatpush1.xpose.msra.mxu0 0.0
    %1926 = vmatprep.subr.mxu0 0.0
    %1927 = vmatpush1.xpose.msra.mxu0 0.0
    %1928 = vmatprep.mubr.f32.mxu0 0.0
    %1929 = vmatmul.mubr.f32.gmra.mrb[0].mxu0 %v1832
    %v1930 = vpop.f32.mrb[0].mxu0
    %v1931 = vadd.f32 %v213, %v1930
    %v1932 = vpop.f32.mrb[0].mxu0
    %1933 = vmatprep.mubr.f32.mxu0 0.0
    %1934 = vmatmul.mubr.f32.gmra.mrb[0].mxu0 %v1834
    %v1935 = vpop.f32.mrb[0].mxu0
    %v1936 = vadd.f32 %v214, %v1935
    %v1937 = vpop.f32.mrb[0].mxu0
    %1938 = vmatprep.mubr.f32.mxu0 0.0
    %1939 = vmatmul.mubr.f32.gmra.mrb[0].mxu0 %v1836
    %v1940 = vpop.f32.mrb[0].mxu0
    %v1941 = vadd.f32 %v215, %v1940
    %v1942 = vpop.f32.mrb[0].mxu0
    %1943 = vmatprep.mubr.f32.mxu0 0.0
    %1944 = vmatmul.mubr.f32.gmra.mrb[0].mxu0 %v1838
    %v1945 = vpop.f32.mrb[0].mxu0
    %v1946 = vadd.f32 %v216, %v1945
    %v1947 = vpop.f32.mrb[0].mxu0
    %1948 = vmatprep.mubr.f32.mxu0 0.0
    %1949 = vmatmul.mubr.f32.gmra.mrb[0].mxu0 %v1840
    %v1950 = vpop.f32.mrb[0].mxu0
    %v1951 = vadd.f32 %v217, %v1950
    %v1952 = vpop.f32.mrb[0].mxu0
    %1953 = vmatprep.mubr.f32.mxu0 0.0
    %1954 = vmatmul.mubr.f32.gmra.mrb[0].mxu0 %v1842
    %v1955 = vpop.f32.mrb[0].mxu0
    %v1956 = vadd.f32 %v218, %v1955
    %v1957 = vpop.f32.mrb[0].mxu0
    %1958 = vmatprep.mubr.f32.mxu0 0.0
    %1959 = vmatmul.mubr.f32.gmra.mrb[0].mxu0 %v1844
    %v1960 = vpop.f32.mrb[0].mxu0
    %v1961 = vadd.f32 %v219, %v1960
    %v1962 = vpop.f32.mrb[0].mxu0
    %1963 = vmatprep.mubr.f32.mxu0 0.0
    %1964 = vmatmul.mubr.f32.gmra.mrb[0].mxu0 %v1846
    %v1965 = vpop.f32.mrb[0].mxu0
    %v1966 = vadd.f32 %v220, %v1965
    %v1967 = vpop.f32.mrb[0].mxu0
    %1968 = vdwg.mxu0
    %v1969 = vsel %vm552, %v1762, -inf
    %1970 = vmax.xlane.f32.xlu0 %v1969
    %v1971 = vpop.xlane.xlu0 %1970
    %v1972 = vsel %vm552, %v1767, -inf
    %1973 = vmax.xlane.f32.xlu0 %v1972
    %v1974 = vpop.xlane.xlu0 %1973
    %v1975 = vsel %vm552, %v1772, -inf
    %1976 = vmax.xlane.f32.xlu0 %v1975
    %v1977 = vpop.xlane.xlu0 %1976
    %v1978 = vsel %vm552, %v1777, -inf
    %1979 = vmax.xlane.f32.xlu0 %v1978
    %v1980 = vpop.xlane.xlu0 %1979
    %v1981 = vsel %vm552, %v1782, -inf
    %1982 = vmax.xlane.f32.xlu0 %v1981
    %v1983 = vpop.xlane.xlu0 %1982
    %v1984 = vsel %vm552, %v1787, -inf
    %1985 = vmax.xlane.f32.xlu0 %v1984
    %v1986 = vpop.xlane.xlu0 %1985
    %v1987 = vsel %vm552, %v1792, -inf
    %1988 = vmax.xlane.f32.xlu0 %v1987
    %v1989 = vpop.xlane.xlu0 %1988
    %v1990 = vsel %vm552, %v1797, -inf
    %1991 = vmax.xlane.f32.xlu0 %v1990
    %v1992 = vpop.xlane.xlu0 %1991
    %v1993 = vsel %vm552, %v1931, -inf
    %1994 = vmax.xlane.f32.xlu0 %v1993
    %v1995 = vpop.xlane.xlu0 %1994
    %v1996 = vsel %vm552, %v1936, -inf
    %1997 = vmax.xlane.f32.xlu0 %v1996
    %v1998 = vpop.xlane.xlu0 %1997
    %v1999 = vsel %vm552, %v1941, -inf
    %2000 = vmax.xlane.f32.xlu0 %v1999
    %v2001 = vpop.xlane.xlu0 %2000
    %v2002 = vsel %vm552, %v1946, -inf
    %2003 = vmax.xlane.f32.xlu0 %v2002
    %v2004 = vpop.xlane.xlu0 %2003
    %v2005 = vsel %vm552, %v1951, -inf
    %2006 = vmax.xlane.f32.xlu0 %v2005
    %v2007 = vpop.xlane.xlu0 %2006
    %v2008 = vsel %vm552, %v1956, -inf
    %2009 = vmax.xlane.f32.xlu0 %v2008
    %v2010 = vpop.xlane.xlu0 %2009
    %v2011 = vsel %vm552, %v1961, -inf
    %2012 = vmax.xlane.f32.xlu0 %v2011
    %v2013 = vpop.xlane.xlu0 %2012
    %v2014 = vsel %vm552, %v1966, -inf
    %2015 = vmax.xlane.f32.xlu0 %v2014
    %v2016 = vpop.xlane.xlu0 %2015
    %v2017 = vsub.f32 %v1762, %v1971
    %v2018 = vsub.f32 %v1767, %v1974
    %v2019 = vsub.f32 %v1772, %v1977
    %v2020 = vsub.f32 %v1777, %v1980
    %v2021 = vsub.f32 %v1782, %v1983
    %v2022 = vsub.f32 %v1787, %v1986
    %v2023 = vsub.f32 %v1792, %v1989
    %v2024 = vsub.f32 %v1797, %v1992
    %v2025 = vsub.f32 %v1931, %v1995
    %v2026 = vsub.f32 %v1936, %v1998
    %v2027 = vsub.f32 %v1941, %v2001
    %v2028 = vsub.f32 %v1946, %v2004
    %v2029 = vsub.f32 %v1951, %v2007
    %v2030 = vsub.f32 %v1956, %v2010
    %v2031 = vsub.f32 %v1961, %v2013
    %v2032 = vsub.f32 %v1966, %v2016
    %v2033 = vmul.f32 %v2017, 1.442695
    %v2034 = vpow.pop %v2033
    %v2035 = vmul.f32 %v2018, 1.442695
    %v2036 = vpow.pop %v2035
    %v2037 = vmul.f32 %v2019, 1.442695
    %v2038 = vpow.pop %v2037
    %v2039 = vmul.f32 %v2020, 1.442695
    %v2040 = vpow.pop %v2039
    %v2041 = vmul.f32 %v2021, 1.442695
    %v2042 = vpow.pop %v2041
    %v2043 = vmul.f32 %v2022, 1.442695
    %v2044 = vpow.pop %v2043
    %v2045 = vmul.f32 %v2023, 1.442695
    %v2046 = vpow.pop %v2045
    %v2047 = vmul.f32 %v2024, 1.442695
    %v2048 = vpow.pop %v2047
    %v2049 = vmul.f32 %v2025, 1.442695
    %v2050 = vpow.pop %v2049
    %v2051 = vmul.f32 %v2026, 1.442695
    %v2052 = vpow.pop %v2051
    %v2053 = vmul.f32 %v2027, 1.442695
    %v2054 = vpow.pop %v2053
    %v2055 = vmul.f32 %v2028, 1.442695
    %v2056 = vpow.pop %v2055
    %v2057 = vmul.f32 %v2029, 1.442695
    %v2058 = vpow.pop %v2057
    %v2059 = vmul.f32 %v2030, 1.442695
    %v2060 = vpow.pop %v2059
    %v2061 = vmul.f32 %v2031, 1.442695
    %v2062 = vpow.pop %v2061
    %v2063 = vmul.f32 %v2032, 1.442695
    %v2064 = vpow.pop %v2063
    %v2065 = vsel %vm552, %v2034, 0.0
    %2066 = vadd.xlane.f32.xlu0 %v2065
    %v2067 = vpop.xlane.xlu0 %2066
    %v2068 = vsel %vm552, %v2036, 0.0
    %2069 = vadd.xlane.f32.xlu0 %v2068
    %v2070 = vpop.xlane.xlu0 %2069
    %v2071 = vsel %vm552, %v2038, 0.0
    %2072 = vadd.xlane.f32.xlu0 %v2071
    %v2073 = vpop.xlane.xlu0 %2072
    %v2074 = vsel %vm552, %v2040, 0.0
    %2075 = vadd.xlane.f32.xlu0 %v2074
    %v2076 = vpop.xlane.xlu0 %2075
    %v2077 = vsel %vm552, %v2042, 0.0
    %2078 = vadd.xlane.f32.xlu0 %v2077
    %v2079 = vpop.xlane.xlu0 %2078
    %v2080 = vsel %vm552, %v2044, 0.0
    %2081 = vadd.xlane.f32.xlu0 %v2080
    %v2082 = vpop.xlane.xlu0 %2081
    %v2083 = vsel %vm552, %v2046, 0.0
    %2084 = vadd.xlane.f32.xlu0 %v2083
    %v2085 = vpop.xlane.xlu0 %2084
    %v2086 = vsel %vm552, %v2048, 0.0
    %2087 = vadd.xlane.f32.xlu0 %v2086
    %v2088 = vpop.xlane.xlu0 %2087
    %v2089 = vsel %vm552, %v2050, 0.0
    %2090 = vadd.xlane.f32.xlu0 %v2089
    %v2091 = vpop.xlane.xlu0 %2090
    %v2092 = vsel %vm552, %v2052, 0.0
    %2093 = vadd.xlane.f32.xlu0 %v2092
    %v2094 = vpop.xlane.xlu0 %2093
    %v2095 = vsel %vm552, %v2054, 0.0
    %2096 = vadd.xlane.f32.xlu0 %v2095
    %v2097 = vpop.xlane.xlu0 %2096
    %v2098 = vsel %vm552, %v2056, 0.0
    %2099 = vadd.xlane.f32.xlu0 %v2098
    %v2100 = vpop.xlane.xlu0 %2099
    %v2101 = vsel %vm552, %v2058, 0.0
    %2102 = vadd.xlane.f32.xlu0 %v2101
    %v2103 = vpop.xlane.xlu0 %2102
    %v2104 = vsel %vm552, %v2060, 0.0
    %2105 = vadd.xlane.f32.xlu0 %v2104
    %v2106 = vpop.xlane.xlu0 %2105
    %v2107 = vsel %vm552, %v2062, 0.0
    %2108 = vadd.xlane.f32.xlu0 %v2107
    %v2109 = vpop.xlane.xlu0 %2108
    %v2110 = vsel %vm552, %v2064, 0.0
    %2111 = vadd.xlane.f32.xlu0 %v2110
    %v2112 = vpop.xlane.xlu0 %2111
    %v2113 = vrcp.pop %v2067
    %v2114 = vrcp.pop %v2070
    %v2115 = vrcp.pop %v2073
    %v2116 = vrcp.pop %v2076
    %v2117 = vrcp.pop %v2079
    %v2118 = vrcp.pop %v2082
    %v2119 = vrcp.pop %v2085
    %v2120 = vrcp.pop %v2088
    %v2121 = vrcp.pop %v2091
    %v2122 = vrcp.pop %v2094
    %v2123 = vrcp.pop %v2097
    %v2124 = vrcp.pop %v2100
    %v2125 = vrcp.pop %v2103
    %v2126 = vrcp.pop %v2106
    %v2127 = vrcp.pop %v2109
    %v2128 = vrcp.pop %v2112
    %v2129 = vmul.f32 %v2034, %v2113
    %v2130 = vmul.f32 %v2036, %v2114
    %v2131 = vmul.f32 %v2038, %v2115
    %v2132 = vmul.f32 %v2040, %v2116
    %v2133 = vmul.f32 %v2042, %v2117
    %v2134 = vmul.f32 %v2044, %v2118
    %v2135 = vmul.f32 %v2046, %v2119
    %v2136 = vmul.f32 %v2048, %v2120
    %v2137 = vmul.f32 %v2050, %v2121
    %v2138 = vmul.f32 %v2052, %v2122
    %v2139 = vmul.f32 %v2054, %v2123
    %v2140 = vmul.f32 %v2056, %v2124
    %v2141 = vmul.f32 %v2058, %v2125
    %v2142 = vmul.f32 %v2060, %v2126
    %v2143 = vmul.f32 %v2062, %v2127
    %v2144 = vmul.f32 %v2064, %v2128
    %v2145 = vpack.c.bf16 %v2130, %v2129
    %v2146 = vpack.c.bf16 %v2132, %v2131
    %v2147 = vpack.c.bf16 %v2134, %v2133
    %v2148 = vpack.c.bf16 %v2136, %v2135
    %v2149 = vpack.c.bf16 %v2138, %v2137
    %v2150 = vpack.c.bf16 %v2140, %v2139
    %v2151 = vpack.c.bf16 %v2142, %v2141
    %v2152 = vpack.c.bf16 %v2144, %v2143
    %2153 = vrot.lane.b32.xlu0 %v737, 48
    %v2154 = vpop.permute.xlu0 %2153
    %2155 = vrot.lane.b32.xlu0 %v738, 48
    %v2156 = vpop.permute.xlu0 %2155
    %2157 = vrot.lane.b32.xlu0 %v739, 48
    %v2158 = vpop.permute.xlu0 %2157
    %2159 = vrot.lane.b32.xlu0 %v740, 48
    %v2160 = vpop.permute.xlu0 %2159
    %v2166 = vsel %vm552, %v2145, 0
    %v2169 = vsel %vm552, %v2146, 0
    %v2172 = vsel %vm552, %v2147, 0
    %v2175 = vsel %vm552, %v2148, 0
    %2177 = vmatprep.subr.bf16.mxu0 0
    %2178 = vmatpush1.bf16.msra.mxu0 %v2154
    %2179 = vmatprep.subr.bf16.mxu0 0
    %2180 = vmatpush1.bf16.msra.mxu0 %v2156
    %2181 = vmatprep.subr.bf16.mxu0 0
    %2182 = vmatpush1.bf16.msra.mxu0 %v2158
    %2183 = vmatprep.subr.bf16.mxu0 0
    %2184 = vmatpush1.bf16.msra.mxu0 %v2160
    %2185 = vmatprep.subr.bf16.mxu0 0
    %2186 = vmatpush1.bf16.msra.mxu0 0
    %2187 = vmatprep.subr.bf16.mxu0 0
    %2188 = vmatpush1.bf16.msra.mxu0 0
    %2189 = vmatprep.subr.bf16.mxu0 0
    %2190 = vmatpush1.bf16.msra.mxu0 0
    %2191 = vmatprep.subr.bf16.mxu0 0
    %2192 = vmatpush1.bf16.msra.mxu0 0
    %2193 = vmatprep.subr.bf16.mxu0 0
    %2194 = vmatpush1.bf16.msra.mxu0 0
    %2195 = vmatprep.subr.bf16.mxu0 0
    %2196 = vmatpush1.bf16.msra.mxu0 0
    %2197 = vmatprep.subr.bf16.mxu0 0
    %2198 = vmatpush1.bf16.msra.mxu0 0
    %2199 = vmatprep.subr.bf16.mxu0 0
    %2200 = vmatpush1.bf16.msra.mxu0 0
    %2201 = vmatprep.subr.bf16.mxu0 0
    %2202 = vmatpush1.bf16.msra.mxu0 0
    %2203 = vmatprep.subr.bf16.mxu0 0
    %2204 = vmatpush1.bf16.msra.mxu0 0
    %2205 = vmatprep.subr.bf16.mxu0 0
    %2206 = vmatpush1.bf16.msra.mxu0 0
    %2207 = vmatprep.subr.bf16.mxu0 0
    %2208 = vmatpush1.bf16.msra.mxu0 0
    %2209 = vmatprep.mubr.bf16.mxu0 0
    %2210 = vmatmul.mubr.bf16.gmra.mrb[0].mxu0 %v2166
    %v2211 = vpop.f32.mrb[0].mxu0
    %v2212 = vadd.f32 0.0, %v2211
    %v2213 = vpop.f32.mrb[0].mxu0
    %v2214 = vpop.f32.mrb[0].mxu0
    %v2215 = vadd.f32 0.0, %v2214
    %v2216 = vpop.f32.mrb[0].mxu0
    %2217 = vmatprep.mubr.bf16.mxu0 0
    %2218 = vmatmul.mubr.bf16.gmra.mrb[0].mxu0 %v2169
    %v2219 = vpop.f32.mrb[0].mxu0
    %v2220 = vadd.f32 0.0, %v2219
    %v2221 = vpop.f32.mrb[0].mxu0
    %v2222 = vpop.f32.mrb[0].mxu0
    %v2223 = vadd.f32 0.0, %v2222
    %v2224 = vpop.f32.mrb[0].mxu0
    %2225 = vmatprep.mubr.bf16.mxu0 0
    %2226 = vmatmul.mubr.bf16.gmra.mrb[0].mxu0 %v2172
    %v2227 = vpop.f32.mrb[0].mxu0
    %v2228 = vadd.f32 0.0, %v2227
    %v2229 = vpop.f32.mrb[0].mxu0
    %v2230 = vpop.f32.mrb[0].mxu0
    %v2231 = vadd.f32 0.0, %v2230
    %v2232 = vpop.f32.mrb[0].mxu0
    %2233 = vmatprep.mubr.bf16.mxu0 0
    %2234 = vmatmul.mubr.bf16.gmra.mrb[0].mxu0 %v2175
    %v2235 = vpop.f32.mrb[0].mxu0
    %v2236 = vadd.f32 0.0, %v2235
    %v2237 = vpop.f32.mrb[0].mxu0
    %v2238 = vpop.f32.mrb[0].mxu0
    %v2239 = vadd.f32 0.0, %v2238
    %v2240 = vpop.f32.mrb[0].mxu0
    %2241 = vdwg.mxu0
    %2242 = vrot.lane.b32.xlu0 %v741, 48
    %v2243 = vpop.permute.xlu0 %2242
    %2244 = vrot.lane.b32.xlu0 %v742, 48
    %v2245 = vpop.permute.xlu0 %2244
    %2246 = vrot.lane.b32.xlu0 %v743, 48
    %v2247 = vpop.permute.xlu0 %2246
    %2248 = vrot.lane.b32.xlu0 %v744, 48
    %v2249 = vpop.permute.xlu0 %2248
    %v2255 = vsel %vm552, %v2149, 0
    %v2258 = vsel %vm552, %v2150, 0
    %v2261 = vsel %vm552, %v2151, 0
    %v2264 = vsel %vm552, %v2152, 0
    %2266 = vmatprep.subr.bf16.mxu0 0
    %2267 = vmatpush1.bf16.msra.mxu0 %v2243
    %2268 = vmatprep.subr.bf16.mxu0 0
    %2269 = vmatpush1.bf16.msra.mxu0 %v2245
    %2270 = vmatprep.subr.bf16.mxu0 0
    %2271 = vmatpush1.bf16.msra.mxu0 %v2247
    %2272 = vmatprep.subr.bf16.mxu0 0
    %2273 = vmatpush1.bf16.msra.mxu0 %v2249
    %2274 = vmatprep.subr.bf16.mxu0 0
    %2275 = vmatpush1.bf16.msra.mxu0 0
    %2276 = vmatprep.subr.bf16.mxu0 0
    %2277 = vmatpush1.bf16.msra.mxu0 0
    %2278 = vmatprep.subr.bf16.mxu0 0
    %2279 = vmatpush1.bf16.msra.mxu0 0
    %2280 = vmatprep.subr.bf16.mxu0 0
    %2281 = vmatpush1.bf16.msra.mxu0 0
    %2282 = vmatprep.subr.bf16.mxu0 0
    %2283 = vmatpush1.bf16.msra.mxu0 0
    %2284 = vmatprep.subr.bf16.mxu0 0
    %2285 = vmatpush1.bf16.msra.mxu0 0
    %2286 = vmatprep.subr.bf16.mxu0 0
    %2287 = vmatpush1.bf16.msra.mxu0 0
    %2288 = vmatprep.subr.bf16.mxu0 0
    %2289 = vmatpush1.bf16.msra.mxu0 0
    %2290 = vmatprep.subr.bf16.mxu0 0
    %2291 = vmatpush1.bf16.msra.mxu0 0
    %2292 = vmatprep.subr.bf16.mxu0 0
    %2293 = vmatpush1.bf16.msra.mxu0 0
    %2294 = vmatprep.subr.bf16.mxu0 0
    %2295 = vmatpush1.bf16.msra.mxu0 0
    %2296 = vmatprep.subr.bf16.mxu0 0
    %2297 = vmatpush1.bf16.msra.mxu0 0
    %2298 = vmatprep.mubr.bf16.mxu0 0
    %2299 = vmatmul.mubr.bf16.gmra.mrb[0].mxu0 %v2255
    %v2300 = vpop.f32.mrb[0].mxu0
    %v2301 = vadd.f32 0.0, %v2300
    %v2302 = vpop.f32.mrb[0].mxu0
    %v2303 = vpop.f32.mrb[0].mxu0
    %v2304 = vadd.f32 0.0, %v2303
    %v2305 = vpop.f32.mrb[0].mxu0
    %2306 = vmatprep.mubr.bf16.mxu0 0
    %2307 = vmatmul.mubr.bf16.gmra.mrb[0].mxu0 %v2258
    %v2308 = vpop.f32.mrb[0].mxu0
    %v2309 = vadd.f32 0.0, %v2308
    %v2310 = vpop.f32.mrb[0].mxu0
    %v2311 = vpop.f32.mrb[0].mxu0
    %v2312 = vadd.f32 0.0, %v2311
    %v2313 = vpop.f32.mrb[0].mxu0
    %2314 = vmatprep.mubr.bf16.mxu0 0
    %2315 = vmatmul.mubr.bf16.gmra.mrb[0].mxu0 %v2261
    %v2316 = vpop.f32.mrb[0].mxu0
    %v2317 = vadd.f32 0.0, %v2316
    %v2318 = vpop.f32.mrb[0].mxu0
    %v2319 = vpop.f32.mrb[0].mxu0
    %v2320 = vadd.f32 0.0, %v2319
    %v2321 = vpop.f32.mrb[0].mxu0
    %2322 = vmatprep.mubr.bf16.mxu0 0
    %2323 = vmatmul.mubr.bf16.gmra.mrb[0].mxu0 %v2264
    %v2324 = vpop.f32.mrb[0].mxu0
    %v2325 = vadd.f32 0.0, %v2324
    %v2326 = vpop.f32.mrb[0].mxu0
    %v2327 = vpop.f32.mrb[0].mxu0
    %v2328 = vadd.f32 0.0, %v2327
    %v2329 = vpop.f32.mrb[0].mxu0
    %2330 = vdwg.mxu0
    %2331 = vrot.lane.b32.xlu0 %v135, 104
    %v2332 = vpop.permute.xlu0 %2331
    %2333 = vrot.lane.b32.xlu0 %v138, 104
    %v2334 = vpop.permute.xlu0 %2333
    %2335 = vrot.lane.b32.xlu0 %v143, 104
    %v2336 = vpop.permute.xlu0 %2335
    %2337 = vrot.lane.b32.xlu0 %v146, 104
    %v2338 = vpop.permute.xlu0 %2337
    %2339 = vrot.lane.b32.xlu0 %v151, 104
    %v2340 = vpop.permute.xlu0 %2339
    %2341 = vrot.lane.b32.xlu0 %v154, 104
    %v2342 = vpop.permute.xlu0 %2341
    %2343 = vrot.lane.b32.xlu0 %v159, 104
    %v2344 = vpop.permute.xlu0 %2343
    %2345 = vrot.lane.b32.xlu0 %v162, 104
    %v2346 = vpop.permute.xlu0 %2345
    %2347 = vrot.lane.b32.xlu0 %v135, 72
    %v2348 = vpop.permute.xlu0 %2347
    %2349 = vrot.lane.b32.xlu0 %v138, 72
    %v2350 = vpop.permute.xlu0 %2349
    %2351 = vrot.lane.b32.xlu0 %v143, 72
    %v2352 = vpop.permute.xlu0 %2351
    %2353 = vrot.lane.b32.xlu0 %v146, 72
    %v2354 = vpop.permute.xlu0 %2353
    %2355 = vrot.lane.b32.xlu0 %v151, 72
    %v2356 = vpop.permute.xlu0 %2355
    %2357 = vrot.lane.b32.xlu0 %v154, 72
    %v2358 = vpop.permute.xlu0 %2357
    %2359 = vrot.lane.b32.xlu0 %v159, 72
    %v2360 = vpop.permute.xlu0 %2359
    %2361 = vrot.lane.b32.xlu0 %v162, 72
    %v2362 = vpop.permute.xlu0 %2361
    %v2363 = vsel %vm253, %v2332, 0
    %v2365 = vsel %vm253, %v2334, 0
    %v2367 = vsel %vm253, %v2336, 0
    %v2369 = vsel %vm253, %v2338, 0
    %v2371 = vsel %vm253, %v2340, 0
    %v2373 = vsel %vm253, %v2342, 0
    %v2375 = vsel %vm253, %v2344, 0
    %v2377 = vsel %vm253, %v2346, 0
    %v2379 = vsel %vm253, %v2348, 0
    %v2381 = vsel %vm253, %v2350, 0
    %v2383 = vsel %vm253, %v2352, 0
    %v2385 = vsel %vm253, %v2354, 0
    %v2387 = vsel %vm253, %v2356, 0
    %v2389 = vsel %vm253, %v2358, 0
    %v2391 = vsel %vm253, %v2360, 0
    %v2393 = vsel %vm253, %v2362, 0
    %2395 = vmatprep.subr.mxu0 0.0
    %2396 = vmatpush1.xpose.msra.mxu0 %v2379
    %2397 = vmatprep.subr.mxu0 0.0
    %2398 = vmatpush1.xpose.msra.mxu0 %v2381
    %2399 = vmatprep.subr.mxu0 0.0
    %2400 = vmatpush1.xpose.msra.mxu0 %v2383
    %2401 = vmatprep.subr.mxu0 0.0
    %2402 = vmatpush1.xpose.msra.mxu0 %v2385
    %2403 = vmatprep.subr.mxu0 0.0
    %2404 = vmatpush1.xpose.msra.mxu0 %v2387
    %2405 = vmatprep.subr.mxu0 0.0
    %2406 = vmatpush1.xpose.msra.mxu0 %v2389
    %2407 = vmatprep.subr.mxu0 0.0
    %2408 = vmatpush1.xpose.msra.mxu0 %v2391
    %2409 = vmatprep.subr.mxu0 0.0
    %2410 = vmatpush1.xpose.msra.mxu0 %v2393
    %2411 = vmatprep.subr.mxu0 0.0
    %2412 = vmatpush1.xpose.msra.mxu0 0.0
    %2413 = vmatprep.subr.mxu0 0.0
    %2414 = vmatpush1.xpose.msra.mxu0 0.0
    %2415 = vmatprep.subr.mxu0 0.0
    %2416 = vmatpush1.xpose.msra.mxu0 0.0
    %2417 = vmatprep.subr.mxu0 0.0
    %2418 = vmatpush1.xpose.msra.mxu0 0.0
    %2419 = vmatprep.subr.mxu0 0.0
    %2420 = vmatpush1.xpose.msra.mxu0 0.0
    %2421 = vmatprep.subr.mxu0 0.0
    %2422 = vmatpush1.xpose.msra.mxu0 0.0
    %2423 = vmatprep.subr.mxu0 0.0
    %2424 = vmatpush1.xpose.msra.mxu0 0.0
    %2425 = vmatprep.subr.mxu0 0.0
    %2426 = vmatpush1.xpose.msra.mxu0 0.0
    %2427 = vmatprep.subr.mxu0 0.0
    %2428 = vmatpush1.xpose.msra.mxu0 0.0
    %2429 = vmatprep.subr.mxu0 0.0
    %2430 = vmatpush1.xpose.msra.mxu0 0.0
    %2431 = vmatprep.subr.mxu0 0.0
    %2432 = vmatpush1.xpose.msra.mxu0 0.0
    %2433 = vmatprep.subr.mxu0 0.0
    %2434 = vmatpush1.xpose.msra.mxu0 0.0
    %2435 = vmatprep.subr.mxu0 0.0
    %2436 = vmatpush1.xpose.msra.mxu0 0.0
    %2437 = vmatprep.subr.mxu0 0.0
    %2438 = vmatpush1.xpose.msra.mxu0 0.0
    %2439 = vmatprep.subr.mxu0 0.0
    %2440 = vmatpush1.xpose.msra.mxu0 0.0
    %2441 = vmatprep.subr.mxu0 0.0
    %2442 = vmatpush1.xpose.msra.mxu0 0.0
    %2443 = vmatprep.subr.mxu0 0.0
    %2444 = vmatpush1.xpose.msra.mxu0 0.0
    %2445 = vmatprep.subr.mxu0 0.0
    %2446 = vmatpush1.xpose.msra.mxu0 0.0
    %2447 = vmatprep.subr.mxu0 0.0
    %2448 = vmatpush1.xpose.msra.mxu0 0.0
    %2449 = vmatprep.subr.mxu0 0.0
    %2450 = vmatpush1.xpose.msra.mxu0 0.0
    %2451 = vmatprep.subr.mxu0 0.0
    %2452 = vmatpush1.xpose.msra.mxu0 0.0
    %2453 = vmatprep.subr.mxu0 0.0
    %2454 = vmatpush1.xpose.msra.mxu0 0.0
    %2455 = vmatprep.subr.mxu0 0.0
    %2456 = vmatpush1.xpose.msra.mxu0 0.0
    %2457 = vmatprep.subr.mxu0 0.0
    %2458 = vmatpush1.xpose.msra.mxu0 0.0
    %2459 = vmatprep.mubr.f32.mxu0 0.0
    %2460 = vmatmul.mubr.f32.gmra.mrb[0].mxu0 %v2363
    %v2461 = vpop.f32.mrb[0].mxu0
    %v2462 = vadd.f32 %v221, %v2461
    %v2463 = vpop.f32.mrb[0].mxu0
    %2464 = vmatprep.mubr.f32.mxu0 0.0
    %2465 = vmatmul.mubr.f32.gmra.mrb[0].mxu0 %v2365
    %v2466 = vpop.f32.mrb[0].mxu0
    %v2467 = vadd.f32 %v222, %v2466
    %v2468 = vpop.f32.mrb[0].mxu0
    %2469 = vmatprep.mubr.f32.mxu0 0.0
    %2470 = vmatmul.mubr.f32.gmra.mrb[0].mxu0 %v2367
    %v2471 = vpop.f32.mrb[0].mxu0
    %v2472 = vadd.f32 %v223, %v2471
    %v2473 = vpop.f32.mrb[0].mxu0
    %2474 = vmatprep.mubr.f32.mxu0 0.0
    %2475 = vmatmul.mubr.f32.gmra.mrb[0].mxu0 %v2369
    %v2476 = vpop.f32.mrb[0].mxu0
    %v2477 = vadd.f32 %v224, %v2476
    %v2478 = vpop.f32.mrb[0].mxu0
    %2479 = vmatprep.mubr.f32.mxu0 0.0
    %2480 = vmatmul.mubr.f32.gmra.mrb[0].mxu0 %v2371
    %v2481 = vpop.f32.mrb[0].mxu0
    %v2482 = vadd.f32 %v225, %v2481
    %v2483 = vpop.f32.mrb[0].mxu0
    %2484 = vmatprep.mubr.f32.mxu0 0.0
    %2485 = vmatmul.mubr.f32.gmra.mrb[0].mxu0 %v2373
    %v2486 = vpop.f32.mrb[0].mxu0
    %v2487 = vadd.f32 %v226, %v2486
    %v2488 = vpop.f32.mrb[0].mxu0
    %2489 = vmatprep.mubr.f32.mxu0 0.0
    %2490 = vmatmul.mubr.f32.gmra.mrb[0].mxu0 %v2375
    %v2491 = vpop.f32.mrb[0].mxu0
    %v2492 = vadd.f32 %v227, %v2491
    %v2493 = vpop.f32.mrb[0].mxu0
    %2494 = vmatprep.mubr.f32.mxu0 0.0
    %2495 = vmatmul.mubr.f32.gmra.mrb[0].mxu0 %v2377
    %v2496 = vpop.f32.mrb[0].mxu0
    %v2497 = vadd.f32 %v228, %v2496
    %v2498 = vpop.f32.mrb[0].mxu0
    %2499 = vdwg.mxu0
    %2500 = vrot.lane.b32.xlu0 %v167, 104
    %v2501 = vpop.permute.xlu0 %2500
    %2502 = vrot.lane.b32.xlu0 %v170, 104
    %v2503 = vpop.permute.xlu0 %2502
    %2504 = vrot.lane.b32.xlu0 %v175, 104
    %v2505 = vpop.permute.xlu0 %2504
    %2506 = vrot.lane.b32.xlu0 %v178, 104
    %v2507 = vpop.permute.xlu0 %2506
    %2508 = vrot.lane.b32.xlu0 %v183, 104
    %v2509 = vpop.permute.xlu0 %2508
    %2510 = vrot.lane.b32.xlu0 %v186, 104
    %v2511 = vpop.permute.xlu0 %2510
    %2512 = vrot.lane.b32.xlu0 %v191, 104
    %v2513 = vpop.permute.xlu0 %2512
    %2514 = vrot.lane.b32.xlu0 %v194, 104
    %v2515 = vpop.permute.xlu0 %2514
    %2516 = vrot.lane.b32.xlu0 %v167, 72
    %v2517 = vpop.permute.xlu0 %2516
    %2518 = vrot.lane.b32.xlu0 %v170, 72
    %v2519 = vpop.permute.xlu0 %2518
    %2520 = vrot.lane.b32.xlu0 %v175, 72
    %v2521 = vpop.permute.xlu0 %2520
    %2522 = vrot.lane.b32.xlu0 %v178, 72
    %v2523 = vpop.permute.xlu0 %2522
    %2524 = vrot.lane.b32.xlu0 %v183, 72
    %v2525 = vpop.permute.xlu0 %2524
    %2526 = vrot.lane.b32.xlu0 %v186, 72
    %v2527 = vpop.permute.xlu0 %2526
    %2528 = vrot.lane.b32.xlu0 %v191, 72
    %v2529 = vpop.permute.xlu0 %2528
    %2530 = vrot.lane.b32.xlu0 %v194, 72
    %v2531 = vpop.permute.xlu0 %2530
    %v2532 = vsel %vm253, %v2501, 0
    %v2534 = vsel %vm253, %v2503, 0
    %v2536 = vsel %vm253, %v2505, 0
    %v2538 = vsel %vm253, %v2507, 0
    %v2540 = vsel %vm253, %v2509, 0
    %v2542 = vsel %vm253, %v2511, 0
    %v2544 = vsel %vm253, %v2513, 0
    %v2546 = vsel %vm253, %v2515, 0
    %v2548 = vsel %vm253, %v2517, 0
    %v2550 = vsel %vm253, %v2519, 0
    %v2552 = vsel %vm253, %v2521, 0
    %v2554 = vsel %vm253, %v2523, 0
    %v2556 = vsel %vm253, %v2525, 0
    %v2558 = vsel %vm253, %v2527, 0
    %v2560 = vsel %vm253, %v2529, 0
    %v2562 = vsel %vm253, %v2531, 0
    %2564 = vmatprep.subr.mxu0 0.0
    %2565 = vmatpush1.xpose.msra.mxu0 %v2548
    %2566 = vmatprep.subr.mxu0 0.0
    %2567 = vmatpush1.xpose.msra.mxu0 %v2550
    %2568 = vmatprep.subr.mxu0 0.0
    %2569 = vmatpush1.xpose.msra.mxu0 %v2552
    %2570 = vmatprep.subr.mxu0 0.0
    %2571 = vmatpush1.xpose.msra.mxu0 %v2554
    %2572 = vmatprep.subr.mxu0 0.0
    %2573 = vmatpush1.xpose.msra.mxu0 %v2556
    %2574 = vmatprep.subr.mxu0 0.0
    %2575 = vmatpush1.xpose.msra.mxu0 %v2558
    %2576 = vmatprep.subr.mxu0 0.0
    %2577 = vmatpush1.xpose.msra.mxu0 %v2560
    %2578 = vmatprep.subr.mxu0 0.0
    %2579 = vmatpush1.xpose.msra.mxu0 %v2562
    %2580 = vmatprep.subr.mxu0 0.0
    %2581 = vmatpush1.xpose.msra.mxu0 0.0
    %2582 = vmatprep.subr.mxu0 0.0
    %2583 = vmatpush1.xpose.msra.mxu0 0.0
    %2584 = vmatprep.subr.mxu0 0.0
    %2585 = vmatpush1.xpose.msra.mxu0 0.0
    %2586 = vmatprep.subr.mxu0 0.0
    %2587 = vmatpush1.xpose.msra.mxu0 0.0
    %2588 = vmatprep.subr.mxu0 0.0
    %2589 = vmatpush1.xpose.msra.mxu0 0.0
    %2590 = vmatprep.subr.mxu0 0.0
    %2591 = vmatpush1.xpose.msra.mxu0 0.0
    %2592 = vmatprep.subr.mxu0 0.0
    %2593 = vmatpush1.xpose.msra.mxu0 0.0
    %2594 = vmatprep.subr.mxu0 0.0
    %2595 = vmatpush1.xpose.msra.mxu0 0.0
    %2596 = vmatprep.subr.mxu0 0.0
    %2597 = vmatpush1.xpose.msra.mxu0 0.0
    %2598 = vmatprep.subr.mxu0 0.0
    %2599 = vmatpush1.xpose.msra.mxu0 0.0
    %2600 = vmatprep.subr.mxu0 0.0
    %2601 = vmatpush1.xpose.msra.mxu0 0.0
    %2602 = vmatprep.subr.mxu0 0.0
    %2603 = vmatpush1.xpose.msra.mxu0 0.0
    %2604 = vmatprep.subr.mxu0 0.0
    %2605 = vmatpush1.xpose.msra.mxu0 0.0
    %2606 = vmatprep.subr.mxu0 0.0
    %2607 = vmatpush1.xpose.msra.mxu0 0.0
    %2608 = vmatprep.subr.mxu0 0.0
    %2609 = vmatpush1.xpose.msra.mxu0 0.0
    %2610 = vmatprep.subr.mxu0 0.0
    %2611 = vmatpush1.xpose.msra.mxu0 0.0
    %2612 = vmatprep.subr.mxu0 0.0
    %2613 = vmatpush1.xpose.msra.mxu0 0.0
    %2614 = vmatprep.subr.mxu0 0.0
    %2615 = vmatpush1.xpose.msra.mxu0 0.0
    %2616 = vmatprep.subr.mxu0 0.0
    %2617 = vmatpush1.xpose.msra.mxu0 0.0
    %2618 = vmatprep.subr.mxu0 0.0
    %2619 = vmatpush1.xpose.msra.mxu0 0.0
    %2620 = vmatprep.subr.mxu0 0.0
    %2621 = vmatpush1.xpose.msra.mxu0 0.0
    %2622 = vmatprep.subr.mxu0 0.0
    %2623 = vmatpush1.xpose.msra.mxu0 0.0
    %2624 = vmatprep.subr.mxu0 0.0
    %2625 = vmatpush1.xpose.msra.mxu0 0.0
    %2626 = vmatprep.subr.mxu0 0.0
    %2627 = vmatpush1.xpose.msra.mxu0 0.0
    %2628 = vmatprep.mubr.f32.mxu0 0.0
    %2629 = vmatmul.mubr.f32.gmra.mrb[0].mxu0 %v2532
    %v2630 = vpop.f32.mrb[0].mxu0
    %v2631 = vadd.f32 %v221, %v2630
    %v2632 = vpop.f32.mrb[0].mxu0
    %2633 = vmatprep.mubr.f32.mxu0 0.0
    %2634 = vmatmul.mubr.f32.gmra.mrb[0].mxu0 %v2534
    %v2635 = vpop.f32.mrb[0].mxu0
    %v2636 = vadd.f32 %v222, %v2635
    %v2637 = vpop.f32.mrb[0].mxu0
    %2638 = vmatprep.mubr.f32.mxu0 0.0
    %2639 = vmatmul.mubr.f32.gmra.mrb[0].mxu0 %v2536
    %v2640 = vpop.f32.mrb[0].mxu0
    %v2641 = vadd.f32 %v223, %v2640
    %v2642 = vpop.f32.mrb[0].mxu0
    %2643 = vmatprep.mubr.f32.mxu0 0.0
    %2644 = vmatmul.mubr.f32.gmra.mrb[0].mxu0 %v2538
    %v2645 = vpop.f32.mrb[0].mxu0
    %v2646 = vadd.f32 %v224, %v2645
    %v2647 = vpop.f32.mrb[0].mxu0
    %2648 = vmatprep.mubr.f32.mxu0 0.0
    %2649 = vmatmul.mubr.f32.gmra.mrb[0].mxu0 %v2540
    %v2650 = vpop.f32.mrb[0].mxu0
    %v2651 = vadd.f32 %v225, %v2650
    %v2652 = vpop.f32.mrb[0].mxu0
    %2653 = vmatprep.mubr.f32.mxu0 0.0
    %2654 = vmatmul.mubr.f32.gmra.mrb[0].mxu0 %v2542
    %v2655 = vpop.f32.mrb[0].mxu0
    %v2656 = vadd.f32 %v226, %v2655
    %v2657 = vpop.f32.mrb[0].mxu0
    %2658 = vmatprep.mubr.f32.mxu0 0.0
    %2659 = vmatmul.mubr.f32.gmra.mrb[0].mxu0 %v2544
    %v2660 = vpop.f32.mrb[0].mxu0
    %v2661 = vadd.f32 %v227, %v2660
    %v2662 = vpop.f32.mrb[0].mxu0
    %2663 = vmatprep.mubr.f32.mxu0 0.0
    %2664 = vmatmul.mubr.f32.gmra.mrb[0].mxu0 %v2546
    %v2665 = vpop.f32.mrb[0].mxu0
    %v2666 = vadd.f32 %v228, %v2665
    %v2667 = vpop.f32.mrb[0].mxu0
    %2668 = vdwg.mxu0
    %v2669 = vsel %vm552, %v2462, -inf
    %2670 = vmax.xlane.f32.xlu0 %v2669
    %v2671 = vpop.xlane.xlu0 %2670
    %v2672 = vsel %vm552, %v2467, -inf
    %2673 = vmax.xlane.f32.xlu0 %v2672
    %v2674 = vpop.xlane.xlu0 %2673
    %v2675 = vsel %vm552, %v2472, -inf
    %2676 = vmax.xlane.f32.xlu0 %v2675
    %v2677 = vpop.xlane.xlu0 %2676
    %v2678 = vsel %vm552, %v2477, -inf
    %2679 = vmax.xlane.f32.xlu0 %v2678
    %v2680 = vpop.xlane.xlu0 %2679
    %v2681 = vsel %vm552, %v2482, -inf
    %2682 = vmax.xlane.f32.xlu0 %v2681
    %v2683 = vpop.xlane.xlu0 %2682
    %v2684 = vsel %vm552, %v2487, -inf
    %2685 = vmax.xlane.f32.xlu0 %v2684
    %v2686 = vpop.xlane.xlu0 %2685
    %v2687 = vsel %vm552, %v2492, -inf
    %2688 = vmax.xlane.f32.xlu0 %v2687
    %v2689 = vpop.xlane.xlu0 %2688
    %v2690 = vsel %vm552, %v2497, -inf
    %2691 = vmax.xlane.f32.xlu0 %v2690
    %v2692 = vpop.xlane.xlu0 %2691
    %v2693 = vsel %vm552, %v2631, -inf
    %2694 = vmax.xlane.f32.xlu0 %v2693
    %v2695 = vpop.xlane.xlu0 %2694
    %v2696 = vsel %vm552, %v2636, -inf
    %2697 = vmax.xlane.f32.xlu0 %v2696
    %v2698 = vpop.xlane.xlu0 %2697
    %v2699 = vsel %vm552, %v2641, -inf
    %2700 = vmax.xlane.f32.xlu0 %v2699
    %v2701 = vpop.xlane.xlu0 %2700
    %v2702 = vsel %vm552, %v2646, -inf
    %2703 = vmax.xlane.f32.xlu0 %v2702
    %v2704 = vpop.xlane.xlu0 %2703
    %v2705 = vsel %vm552, %v2651, -inf
    %2706 = vmax.xlane.f32.xlu0 %v2705
    %v2707 = vpop.xlane.xlu0 %2706
    %v2708 = vsel %vm552, %v2656, -inf
    %2709 = vmax.xlane.f32.xlu0 %v2708
    %v2710 = vpop.xlane.xlu0 %2709
    %v2711 = vsel %vm552, %v2661, -inf
    %2712 = vmax.xlane.f32.xlu0 %v2711
    %v2713 = vpop.xlane.xlu0 %2712
    %v2714 = vsel %vm552, %v2666, -inf
    %2715 = vmax.xlane.f32.xlu0 %v2714
    %v2716 = vpop.xlane.xlu0 %2715
    %v2717 = vsub.f32 %v2462, %v2671
    %v2718 = vsub.f32 %v2467, %v2674
    %v2719 = vsub.f32 %v2472, %v2677
    %v2720 = vsub.f32 %v2477, %v2680
    %v2721 = vsub.f32 %v2482, %v2683
    %v2722 = vsub.f32 %v2487, %v2686
    %v2723 = vsub.f32 %v2492, %v2689
    %v2724 = vsub.f32 %v2497, %v2692
    %v2725 = vsub.f32 %v2631, %v2695
    %v2726 = vsub.f32 %v2636, %v2698
    %v2727 = vsub.f32 %v2641, %v2701
    %v2728 = vsub.f32 %v2646, %v2704
    %v2729 = vsub.f32 %v2651, %v2707
    %v2730 = vsub.f32 %v2656, %v2710
    %v2731 = vsub.f32 %v2661, %v2713
    %v2732 = vsub.f32 %v2666, %v2716
    %v2733 = vmul.f32 %v2717, 1.442695
    %v2734 = vpow.pop %v2733
    %v2735 = vmul.f32 %v2718, 1.442695
    %v2736 = vpow.pop %v2735
    %v2737 = vmul.f32 %v2719, 1.442695
    %v2738 = vpow.pop %v2737
    %v2739 = vmul.f32 %v2720, 1.442695
    %v2740 = vpow.pop %v2739
    %v2741 = vmul.f32 %v2721, 1.442695
    %v2742 = vpow.pop %v2741
    %v2743 = vmul.f32 %v2722, 1.442695
    %v2744 = vpow.pop %v2743
    %v2745 = vmul.f32 %v2723, 1.442695
    %v2746 = vpow.pop %v2745
    %v2747 = vmul.f32 %v2724, 1.442695
    %v2748 = vpow.pop %v2747
    %v2749 = vmul.f32 %v2725, 1.442695
    %v2750 = vpow.pop %v2749
    %v2751 = vmul.f32 %v2726, 1.442695
    %v2752 = vpow.pop %v2751
    %v2753 = vmul.f32 %v2727, 1.442695
    %v2754 = vpow.pop %v2753
    %v2755 = vmul.f32 %v2728, 1.442695
    %v2756 = vpow.pop %v2755
    %v2757 = vmul.f32 %v2729, 1.442695
    %v2758 = vpow.pop %v2757
    %v2759 = vmul.f32 %v2730, 1.442695
    %v2760 = vpow.pop %v2759
    %v2761 = vmul.f32 %v2731, 1.442695
    %v2762 = vpow.pop %v2761
    %v2763 = vmul.f32 %v2732, 1.442695
    %v2764 = vpow.pop %v2763
    %v2765 = vsel %vm552, %v2734, 0.0
    %2766 = vadd.xlane.f32.xlu0 %v2765
    %v2767 = vpop.xlane.xlu0 %2766
    %v2768 = vsel %vm552, %v2736, 0.0
    %2769 = vadd.xlane.f32.xlu0 %v2768
    %v2770 = vpop.xlane.xlu0 %2769
    %v2771 = vsel %vm552, %v2738, 0.0
    %2772 = vadd.xlane.f32.xlu0 %v2771
    %v2773 = vpop.xlane.xlu0 %2772
    %v2774 = vsel %vm552, %v2740, 0.0
    %2775 = vadd.xlane.f32.xlu0 %v2774
    %v2776 = vpop.xlane.xlu0 %2775
    %v2777 = vsel %vm552, %v2742, 0.0
    %2778 = vadd.xlane.f32.xlu0 %v2777
    %v2779 = vpop.xlane.xlu0 %2778
    %v2780 = vsel %vm552, %v2744, 0.0
    %2781 = vadd.xlane.f32.xlu0 %v2780
    %v2782 = vpop.xlane.xlu0 %2781
    %v2783 = vsel %vm552, %v2746, 0.0
    %2784 = vadd.xlane.f32.xlu0 %v2783
    %v2785 = vpop.xlane.xlu0 %2784
    %v2786 = vsel %vm552, %v2748, 0.0
    %2787 = vadd.xlane.f32.xlu0 %v2786
    %v2788 = vpop.xlane.xlu0 %2787
    %v2789 = vsel %vm552, %v2750, 0.0
    %2790 = vadd.xlane.f32.xlu0 %v2789
    %v2791 = vpop.xlane.xlu0 %2790
    %v2792 = vsel %vm552, %v2752, 0.0
    %2793 = vadd.xlane.f32.xlu0 %v2792
    %v2794 = vpop.xlane.xlu0 %2793
    %v2795 = vsel %vm552, %v2754, 0.0
    %2796 = vadd.xlane.f32.xlu0 %v2795
    %v2797 = vpop.xlane.xlu0 %2796
    %v2798 = vsel %vm552, %v2756, 0.0
    %2799 = vadd.xlane.f32.xlu0 %v2798
    %v2800 = vpop.xlane.xlu0 %2799
    %v2801 = vsel %vm552, %v2758, 0.0
    %2802 = vadd.xlane.f32.xlu0 %v2801
    %v2803 = vpop.xlane.xlu0 %2802
    %v2804 = vsel %vm552, %v2760, 0.0
    %2805 = vadd.xlane.f32.xlu0 %v2804
    %v2806 = vpop.xlane.xlu0 %2805
    %v2807 = vsel %vm552, %v2762, 0.0
    %2808 = vadd.xlane.f32.xlu0 %v2807
    %v2809 = vpop.xlane.xlu0 %2808
    %v2810 = vsel %vm552, %v2764, 0.0
    %2811 = vadd.xlane.f32.xlu0 %v2810
    %v2812 = vpop.xlane.xlu0 %2811
    %v2813 = vrcp.pop %v2767
    %v2814 = vrcp.pop %v2770
    %v2815 = vrcp.pop %v2773
    %v2816 = vrcp.pop %v2776
    %v2817 = vrcp.pop %v2779
    %v2818 = vrcp.pop %v2782
    %v2819 = vrcp.pop %v2785
    %v2820 = vrcp.pop %v2788
    %v2821 = vrcp.pop %v2791
    %v2822 = vrcp.pop %v2794
    %v2823 = vrcp.pop %v2797
    %v2824 = vrcp.pop %v2800
    %v2825 = vrcp.pop %v2803
    %v2826 = vrcp.pop %v2806
    %v2827 = vrcp.pop %v2809
    %v2828 = vrcp.pop %v2812
    %v2829 = vmul.f32 %v2734, %v2813
    %v2830 = vmul.f32 %v2736, %v2814
    %v2831 = vmul.f32 %v2738, %v2815
    %v2832 = vmul.f32 %v2740, %v2816
    %v2833 = vmul.f32 %v2742, %v2817
    %v2834 = vmul.f32 %v2744, %v2818
    %v2835 = vmul.f32 %v2746, %v2819
    %v2836 = vmul.f32 %v2748, %v2820
    %v2837 = vmul.f32 %v2750, %v2821
    %v2838 = vmul.f32 %v2752, %v2822
    %v2839 = vmul.f32 %v2754, %v2823
    %v2840 = vmul.f32 %v2756, %v2824
    %v2841 = vmul.f32 %v2758, %v2825
    %v2842 = vmul.f32 %v2760, %v2826
    %v2843 = vmul.f32 %v2762, %v2827
    %v2844 = vmul.f32 %v2764, %v2828
    %v2845 = vpack.c.bf16 %v2830, %v2829
    %v2846 = vpack.c.bf16 %v2832, %v2831
    %v2847 = vpack.c.bf16 %v2834, %v2833
    %v2848 = vpack.c.bf16 %v2836, %v2835
    %v2849 = vpack.c.bf16 %v2838, %v2837
    %v2850 = vpack.c.bf16 %v2840, %v2839
    %v2851 = vpack.c.bf16 %v2842, %v2841
    %v2852 = vpack.c.bf16 %v2844, %v2843
    %2853 = vrot.lane.b32.xlu0 %v737, 40
    %v2854 = vpop.permute.xlu0 %2853
    %2855 = vrot.lane.b32.xlu0 %v738, 40
    %v2856 = vpop.permute.xlu0 %2855
    %2857 = vrot.lane.b32.xlu0 %v739, 40
    %v2858 = vpop.permute.xlu0 %2857
    %2859 = vrot.lane.b32.xlu0 %v740, 40
    %v2860 = vpop.permute.xlu0 %2859
    %v2866 = vsel %vm552, %v2845, 0
    %v2869 = vsel %vm552, %v2846, 0
    %v2872 = vsel %vm552, %v2847, 0
    %v2875 = vsel %vm552, %v2848, 0
    %2877 = vmatprep.subr.bf16.mxu0 0
    %2878 = vmatpush1.bf16.msra.mxu0 %v2854
    %2879 = vmatprep.subr.bf16.mxu0 0
    %2880 = vmatpush1.bf16.msra.mxu0 %v2856
    %2881 = vmatprep.subr.bf16.mxu0 0
    %2882 = vmatpush1.bf16.msra.mxu0 %v2858
    %2883 = vmatprep.subr.bf16.mxu0 0
    %2884 = vmatpush1.bf16.msra.mxu0 %v2860
    %2885 = vmatprep.subr.bf16.mxu0 0
    %2886 = vmatpush1.bf16.msra.mxu0 0
    %2887 = vmatprep.subr.bf16.mxu0 0
    %2888 = vmatpush1.bf16.msra.mxu0 0
    %2889 = vmatprep.subr.bf16.mxu0 0
    %2890 = vmatpush1.bf16.msra.mxu0 0
    %2891 = vmatprep.subr.bf16.mxu0 0
    %2892 = vmatpush1.bf16.msra.mxu0 0
    %2893 = vmatprep.subr.bf16.mxu0 0
    %2894 = vmatpush1.bf16.msra.mxu0 0
    %2895 = vmatprep.subr.bf16.mxu0 0
    %2896 = vmatpush1.bf16.msra.mxu0 0
    %2897 = vmatprep.subr.bf16.mxu0 0
    %2898 = vmatpush1.bf16.msra.mxu0 0
    %2899 = vmatprep.subr.bf16.mxu0 0
    %2900 = vmatpush1.bf16.msra.mxu0 0
    %2901 = vmatprep.subr.bf16.mxu0 0
    %2902 = vmatpush1.bf16.msra.mxu0 0
    %2903 = vmatprep.subr.bf16.mxu0 0
    %2904 = vmatpush1.bf16.msra.mxu0 0
    %2905 = vmatprep.subr.bf16.mxu0 0
    %2906 = vmatpush1.bf16.msra.mxu0 0
    %2907 = vmatprep.subr.bf16.mxu0 0
    %2908 = vmatpush1.bf16.msra.mxu0 0
    %2909 = vmatprep.mubr.bf16.mxu0 0
    %2910 = vmatmul.mubr.bf16.gmra.mrb[0].mxu0 %v2866
    %v2911 = vpop.f32.mrb[0].mxu0
    %v2912 = vadd.f32 0.0, %v2911
    %v2913 = vpop.f32.mrb[0].mxu0
    %v2914 = vpop.f32.mrb[0].mxu0
    %v2915 = vadd.f32 0.0, %v2914
    %v2916 = vpop.f32.mrb[0].mxu0
    %2917 = vmatprep.mubr.bf16.mxu0 0
    %2918 = vmatmul.mubr.bf16.gmra.mrb[0].mxu0 %v2869
    %v2919 = vpop.f32.mrb[0].mxu0
    %v2920 = vadd.f32 0.0, %v2919
    %v2921 = vpop.f32.mrb[0].mxu0
    %v2922 = vpop.f32.mrb[0].mxu0
    %v2923 = vadd.f32 0.0, %v2922
    %v2924 = vpop.f32.mrb[0].mxu0
    %2925 = vmatprep.mubr.bf16.mxu0 0
    %2926 = vmatmul.mubr.bf16.gmra.mrb[0].mxu0 %v2872
    %v2927 = vpop.f32.mrb[0].mxu0
    %v2928 = vadd.f32 0.0, %v2927
    %v2929 = vpop.f32.mrb[0].mxu0
    %v2930 = vpop.f32.mrb[0].mxu0
    %v2931 = vadd.f32 0.0, %v2930
    %v2932 = vpop.f32.mrb[0].mxu0
    %2933 = vmatprep.mubr.bf16.mxu0 0
    %2934 = vmatmul.mubr.bf16.gmra.mrb[0].mxu0 %v2875
    %v2935 = vpop.f32.mrb[0].mxu0
    %v2936 = vadd.f32 0.0, %v2935
    %v2937 = vpop.f32.mrb[0].mxu0
    %v2938 = vpop.f32.mrb[0].mxu0
    %v2939 = vadd.f32 0.0, %v2938
    %v2940 = vpop.f32.mrb[0].mxu0
    %2941 = vdwg.mxu0
    %2942 = vrot.lane.b32.xlu0 %v741, 40
    %v2943 = vpop.permute.xlu0 %2942
    %2944 = vrot.lane.b32.xlu0 %v742, 40
    %v2945 = vpop.permute.xlu0 %2944
    %2946 = vrot.lane.b32.xlu0 %v743, 40
    %v2947 = vpop.permute.xlu0 %2946
    %2948 = vrot.lane.b32.xlu0 %v744, 40
    %v2949 = vpop.permute.xlu0 %2948
    %v2955 = vsel %vm552, %v2849, 0
    %v2958 = vsel %vm552, %v2850, 0
    %v2961 = vsel %vm552, %v2851, 0
    %v2964 = vsel %vm552, %v2852, 0
    %2966 = vmatprep.subr.bf16.mxu0 0
    %2967 = vmatpush1.bf16.msra.mxu0 %v2943
    %2968 = vmatprep.subr.bf16.mxu0 0
    %2969 = vmatpush1.bf16.msra.mxu0 %v2945
    %2970 = vmatprep.subr.bf16.mxu0 0
    %2971 = vmatpush1.bf16.msra.mxu0 %v2947
    %2972 = vmatprep.subr.bf16.mxu0 0
    %2973 = vmatpush1.bf16.msra.mxu0 %v2949
    %2974 = vmatprep.subr.bf16.mxu0 0
    %2975 = vmatpush1.bf16.msra.mxu0 0
    %2976 = vmatprep.subr.bf16.mxu0 0
    %2977 = vmatpush1.bf16.msra.mxu0 0
    %2978 = vmatprep.subr.bf16.mxu0 0
    %2979 = vmatpush1.bf16.msra.mxu0 0
    %2980 = vmatprep.subr.bf16.mxu0 0
    %2981 = vmatpush1.bf16.msra.mxu0 0
    %2982 = vmatprep.subr.bf16.mxu0 0
    %2983 = vmatpush1.bf16.msra.mxu0 0
    %2984 = vmatprep.subr.bf16.mxu0 0
    %2985 = vmatpush1.bf16.msra.mxu0 0
    %2986 = vmatprep.subr.bf16.mxu0 0
    %2987 = vmatpush1.bf16.msra.mxu0 0
    %2988 = vmatprep.subr.bf16.mxu0 0
    %2989 = vmatpush1.bf16.msra.mxu0 0
    %2990 = vmatprep.subr.bf16.mxu0 0
    %2991 = vmatpush1.bf16.msra.mxu0 0
    %2992 = vmatprep.subr.bf16.mxu0 0
    %2993 = vmatpush1.bf16.msra.mxu0 0
    %2994 = vmatprep.subr.bf16.mxu0 0
    %2995 = vmatpush1.bf16.msra.mxu0 0
    %2996 = vmatprep.subr.bf16.mxu0 0
    %2997 = vmatpush1.bf16.msra.mxu0 0
    %2998 = vmatprep.mubr.bf16.mxu0 0
    %2999 = vmatmul.mubr.bf16.gmra.mrb[0].mxu0 %v2955
    %v3000 = vpop.f32.mrb[0].mxu0
    %v3001 = vadd.f32 0.0, %v3000
    %v3002 = vpop.f32.mrb[0].mxu0
    %v3003 = vpop.f32.mrb[0].mxu0
    %v3004 = vadd.f32 0.0, %v3003
    %v3005 = vpop.f32.mrb[0].mxu0
    %3006 = vmatprep.mubr.bf16.mxu0 0
    %3007 = vmatmul.mubr.bf16.gmra.mrb[0].mxu0 %v2958
    %v3008 = vpop.f32.mrb[0].mxu0
    %v3009 = vadd.f32 0.0, %v3008
    %v3010 = vpop.f32.mrb[0].mxu0
    %v3011 = vpop.f32.mrb[0].mxu0
    %v3012 = vadd.f32 0.0, %v3011
    %v3013 = vpop.f32.mrb[0].mxu0
    %3014 = vmatprep.mubr.bf16.mxu0 0
    %3015 = vmatmul.mubr.bf16.gmra.mrb[0].mxu0 %v2961
    %v3016 = vpop.f32.mrb[0].mxu0
    %v3017 = vadd.f32 0.0, %v3016
    %v3018 = vpop.f32.mrb[0].mxu0
    %v3019 = vpop.f32.mrb[0].mxu0
    %v3020 = vadd.f32 0.0, %v3019
    %v3021 = vpop.f32.mrb[0].mxu0
    %3022 = vmatprep.mubr.bf16.mxu0 0
    %3023 = vmatmul.mubr.bf16.gmra.mrb[0].mxu0 %v2964
    %v3024 = vpop.f32.mrb[0].mxu0
    %v3025 = vadd.f32 0.0, %v3024
    %v3026 = vpop.f32.mrb[0].mxu0
    %v3027 = vpop.f32.mrb[0].mxu0
    %v3028 = vadd.f32 0.0, %v3027
    %v3029 = vpop.f32.mrb[0].mxu0
    %3030 = vdwg.mxu0
    %3047 = vrot.lane.b32.xlu0 %v1512, 8
    %v3048 = vpop.permute.xlu0 %3047
    %3049 = vrot.lane.b32.xlu0 %v1515, 8
    %v3050 = vpop.permute.xlu0 %3049
    %3051 = vrot.lane.b32.xlu0 %v1520, 8
    %v3052 = vpop.permute.xlu0 %3051
    %3053 = vrot.lane.b32.xlu0 %v1523, 8
    %v3054 = vpop.permute.xlu0 %3053
    %3055 = vrot.lane.b32.xlu0 %v1528, 8
    %v3056 = vpop.permute.xlu0 %3055
    %3057 = vrot.lane.b32.xlu0 %v1531, 8
    %v3058 = vpop.permute.xlu0 %3057
    %3059 = vrot.lane.b32.xlu0 %v1536, 8
    %v3060 = vpop.permute.xlu0 %3059
    %3061 = vrot.lane.b32.xlu0 %v1539, 8
    %v3062 = vpop.permute.xlu0 %3061
    %3063 = vrot.lane.b32.xlu0 %v1601, 8
    %v3064 = vpop.permute.xlu0 %3063
    %3065 = vrot.lane.b32.xlu0 %v1604, 8
    %v3066 = vpop.permute.xlu0 %3065
    %3067 = vrot.lane.b32.xlu0 %v1609, 8
    %v3068 = vpop.permute.xlu0 %3067
    %3069 = vrot.lane.b32.xlu0 %v1612, 8
    %v3070 = vpop.permute.xlu0 %3069
    %3071 = vrot.lane.b32.xlu0 %v1617, 8
    %v3072 = vpop.permute.xlu0 %3071
    %3073 = vrot.lane.b32.xlu0 %v1620, 8
    %v3074 = vpop.permute.xlu0 %3073
    %3075 = vrot.lane.b32.xlu0 %v1625, 8
    %v3076 = vpop.permute.xlu0 %3075
    %3077 = vrot.lane.b32.xlu0 %v1628, 8
    %v3078 = vpop.permute.xlu0 %3077
    %3111 = vrot.lane.b32.xlu0 %v2212, 16
    %v3112 = vpop.permute.xlu0 %3111
    %3113 = vrot.lane.b32.xlu0 %v2215, 16
    %v3114 = vpop.permute.xlu0 %3113
    %3115 = vrot.lane.b32.xlu0 %v2220, 16
    %v3116 = vpop.permute.xlu0 %3115
    %3117 = vrot.lane.b32.xlu0 %v2223, 16
    %v3118 = vpop.permute.xlu0 %3117
    %3119 = vrot.lane.b32.xlu0 %v2228, 16
    %v3120 = vpop.permute.xlu0 %3119
    %3121 = vrot.lane.b32.xlu0 %v2231, 16
    %v3122 = vpop.permute.xlu0 %3121
    %3123 = vrot.lane.b32.xlu0 %v2236, 16
    %v3124 = vpop.permute.xlu0 %3123
    %3125 = vrot.lane.b32.xlu0 %v2239, 16
    %v3126 = vpop.permute.xlu0 %3125
    %3127 = vrot.lane.b32.xlu0 %v2301, 16
    %v3128 = vpop.permute.xlu0 %3127
    %3129 = vrot.lane.b32.xlu0 %v2304, 16
    %v3130 = vpop.permute.xlu0 %3129
    %3131 = vrot.lane.b32.xlu0 %v2309, 16
    %v3132 = vpop.permute.xlu0 %3131
    %3133 = vrot.lane.b32.xlu0 %v2312, 16
    %v3134 = vpop.permute.xlu0 %3133
    %3135 = vrot.lane.b32.xlu0 %v2317, 16
    %v3136 = vpop.permute.xlu0 %3135
    %3137 = vrot.lane.b32.xlu0 %v2320, 16
    %v3138 = vpop.permute.xlu0 %3137
    %3139 = vrot.lane.b32.xlu0 %v2325, 16
    %v3140 = vpop.permute.xlu0 %3139
    %3141 = vrot.lane.b32.xlu0 %v2328, 16
    %v3142 = vpop.permute.xlu0 %3141
    %3175 = vrot.lane.b32.xlu0 %v2912, 24
    %v3176 = vpop.permute.xlu0 %3175
    %3177 = vrot.lane.b32.xlu0 %v2915, 24
    %v3178 = vpop.permute.xlu0 %3177
    %3179 = vrot.lane.b32.xlu0 %v2920, 24
    %v3180 = vpop.permute.xlu0 %3179
    %3181 = vrot.lane.b32.xlu0 %v2923, 24
    %v3182 = vpop.permute.xlu0 %3181
    %3183 = vrot.lane.b32.xlu0 %v2928, 24
    %v3184 = vpop.permute.xlu0 %3183
    %3185 = vrot.lane.b32.xlu0 %v2931, 24
    %v3186 = vpop.permute.xlu0 %3185
    %3187 = vrot.lane.b32.xlu0 %v2936, 24
    %v3188 = vpop.permute.xlu0 %3187
    %3189 = vrot.lane.b32.xlu0 %v2939, 24
    %v3190 = vpop.permute.xlu0 %3189
    %3191 = vrot.lane.b32.xlu0 %v3001, 24
    %v3192 = vpop.permute.xlu0 %3191
    %3193 = vrot.lane.b32.xlu0 %v3004, 24
    %v3194 = vpop.permute.xlu0 %3193
    %3195 = vrot.lane.b32.xlu0 %v3009, 24
    %v3196 = vpop.permute.xlu0 %3195
    %3197 = vrot.lane.b32.xlu0 %v3012, 24
    %v3198 = vpop.permute.xlu0 %3197
    %3199 = vrot.lane.b32.xlu0 %v3017, 24
    %v3200 = vpop.permute.xlu0 %3199
    %3201 = vrot.lane.b32.xlu0 %v3020, 24
    %v3202 = vpop.permute.xlu0 %3201
    %3203 = vrot.lane.b32.xlu0 %v3025, 24
    %v3204 = vpop.permute.xlu0 %3203
    %3205 = vrot.lane.b32.xlu0 %v3028, 24
    %v3206 = vpop.permute.xlu0 %3205
    %v3223 = vsel %vm253, %v808, %v3048
    %v3224 = vsel %vm253, %v811, %v3050
    %v3225 = vsel %vm253, %v816, %v3052
    %v3226 = vsel %vm253, %v819, %v3054
    %v3227 = vsel %vm253, %v824, %v3056
    %v3228 = vsel %vm253, %v827, %v3058
    %v3229 = vsel %vm253, %v832, %v3060
    %v3230 = vsel %vm253, %v835, %v3062
    %v3231 = vsel %vm253, %v901, %v3064
    %v3232 = vsel %vm253, %v904, %v3066
    %v3233 = vsel %vm253, %v909, %v3068
    %v3234 = vsel %vm253, %v912, %v3070
    %v3235 = vsel %vm253, %v917, %v3072
    %v3236 = vsel %vm253, %v920, %v3074
    %v3237 = vsel %vm253, %v925, %v3076
    %v3238 = vsel %vm253, %v928, %v3078
    %vm3239 = vcmask 130048
    %v3240 = vsel %vm3239, %v3223, %v3112
    %v3241 = vsel %vm3239, %v3224, %v3114
    %v3242 = vsel %vm3239, %v3225, %v3116
    %v3243 = vsel %vm3239, %v3226, %v3118
    %v3244 = vsel %vm3239, %v3227, %v3120
    %v3245 = vsel %vm3239, %v3228, %v3122
    %v3246 = vsel %vm3239, %v3229, %v3124
    %v3247 = vsel %vm3239, %v3230, %v3126
    %v3248 = vsel %vm3239, %v3231, %v3128
    %v3249 = vsel %vm3239, %v3232, %v3130
    %v3250 = vsel %vm3239, %v3233, %v3132
    %v3251 = vsel %vm3239, %v3234, %v3134
    %v3252 = vsel %vm3239, %v3235, %v3136
    %v3253 = vsel %vm3239, %v3236, %v3138
    %v3254 = vsel %vm3239, %v3237, %v3140
    %v3255 = vsel %vm3239, %v3238, %v3142
    %vm3256 = vcmask 195584
    %v3257 = vsel %vm3256, %v3240, %v3176
    %v3258 = vsel %vm3256, %v3241, %v3178
    %v3259 = vsel %vm3256, %v3242, %v3180
    %v3260 = vsel %vm3256, %v3243, %v3182
    %v3261 = vsel %vm3256, %v3244, %v3184
    %v3262 = vsel %vm3256, %v3245, %v3186
    %v3263 = vsel %vm3256, %v3246, %v3188
    %v3264 = vsel %vm3256, %v3247, %v3190
    %v3265 = vsel %vm3256, %v3248, %v3192
    %v3266 = vsel %vm3256, %v3249, %v3194
    %v3267 = vsel %vm3256, %v3250, %v3196
    %v3268 = vsel %vm3256, %v3251, %v3198
    %v3269 = vsel %vm3256, %v3252, %v3200
    %v3270 = vsel %vm3256, %v3253, %v3202
    %v3271 = vsel %vm3256, %v3254, %v3204
    %v3272 = vsel %vm3256, %v3255, %v3206
    %v3273 = vpack.c.bf16 %v3258, %v3257
    %v3274 = vpack.c.bf16 %v3260, %v3259
    %v3275 = vpack.c.bf16 %v3262, %v3261
    %v3276 = vpack.c.bf16 %v3264, %v3263
    %v3277 = vpack.c.bf16 %v3266, %v3265
    %v3278 = vpack.c.bf16 %v3268, %v3267
    %v3279 = vpack.c.bf16 %v3270, %v3269
    %v3280 = vpack.c.bf16 %v3272, %v3271
    %v3281 = vld [vmem:[%s2] sm:$0xf]
    %v3282 = vld [vmem:[%s2 + $0x4] sm:$0xf]
    %v3283 = vld [vmem:[%s2 + $0x8] sm:$0xf]
    %v3284 = vld [vmem:[%s2 + $0xc] sm:$0xf]
    %v3285 = vld [vmem:[%s3] sm:$0x1]
    %v3287 = vlaneseq
    %v3288 = vshrl.u32 %v3287, 7
    %v3289 = vsub.s32 0, %v3288
    %v3290 = vrot.slane %v3285, %v3289
    %v3296 = vunpack.c.l.b16 %v3281
    %v3297 = vunpack.c.l.b16 %v3282
    %v3298 = vunpack.c.l.b16 %v3283
    %v3299 = vunpack.c.l.b16 %v3284
    %v3300 = vpack.c.b16 %v3297, %v3296
    %v3301 = vpack.c.b16 %v3299, %v3298
    %v3305 = vsel %vm75, %v3273, 0
    %v3308 = vsel %vm75, %v3274, 0
    %v3311 = vsel %vm75, %v3275, 0
    %v3314 = vsel %vm75, %v3276, 0
    %v3317 = vsel %vm75, %v3277, 0
    %v3320 = vsel %vm75, %v3278, 0
    %v3323 = vsel %vm75, %v3279, 0
    %v3326 = vsel %vm75, %v3280, 0
    %3328 = vmatprep.subr.bf16.mxu0 0
    %3329 = vmatpush1.bf16.msra.mxu0 %v3300
    %3330 = vmatprep.subr.bf16.mxu0 0
    %3331 = vmatpush1.bf16.msra.mxu0 %v3301
    %3332 = vmatprep.subr.bf16.mxu0 0
    %3333 = vmatpush1.bf16.msra.mxu0 0
    %3334 = vmatprep.subr.bf16.mxu0 0
    %3335 = vmatpush1.bf16.msra.mxu0 0
    %3336 = vmatprep.subr.bf16.mxu0 0
    %3337 = vmatpush1.bf16.msra.mxu0 0
    %3338 = vmatprep.subr.bf16.mxu0 0
    %3339 = vmatpush1.bf16.msra.mxu0 0
    %3340 = vmatprep.subr.bf16.mxu0 0
    %3341 = vmatpush1.bf16.msra.mxu0 0
    %3342 = vmatprep.subr.bf16.mxu0 0
    %3343 = vmatpush1.bf16.msra.mxu0 0
    %3344 = vmatprep.subr.bf16.mxu0 0
    %3345 = vmatpush1.bf16.msra.mxu0 0
    %3346 = vmatprep.subr.bf16.mxu0 0
    %3347 = vmatpush1.bf16.msra.mxu0 0
    %3348 = vmatprep.subr.bf16.mxu0 0
    %3349 = vmatpush1.bf16.msra.mxu0 0
    %3350 = vmatprep.subr.bf16.mxu0 0
    %3351 = vmatpush1.bf16.msra.mxu0 0
    %3352 = vmatprep.subr.bf16.mxu0 0
    %3353 = vmatpush1.bf16.msra.mxu0 0
    %3354 = vmatprep.subr.bf16.mxu0 0
    %3355 = vmatpush1.bf16.msra.mxu0 0
    %3356 = vmatprep.subr.bf16.mxu0 0
    %3357 = vmatpush1.bf16.msra.mxu0 0
    %3358 = vmatprep.subr.bf16.mxu0 0
    %3359 = vmatpush1.bf16.msra.mxu0 0
    %3360 = vmatprep.mubr.bf16.mxu0 0
    %3361 = vmatmul.mubr.bf16.gmra.mrb[0].mxu0 %v3305
    %v3362 = vpop.f32.mrb[0].mxu0
    %v3363 = vadd.f32 %v3290, %v3362
    %v3364 = vpop.f32.mrb[0].mxu0
    %v3365 = vpop.f32.mrb[0].mxu0
    %v3366 = vadd.f32 %v3290, %v3365
    %v3367 = vpop.f32.mrb[0].mxu0
    %3368 = vmatprep.mubr.bf16.mxu0 0
    %3369 = vmatmul.mubr.bf16.gmra.mrb[0].mxu0 %v3308
    %v3370 = vpop.f32.mrb[0].mxu0
    %v3371 = vadd.f32 %v3290, %v3370
    %v3372 = vpop.f32.mrb[0].mxu0
    %v3373 = vpop.f32.mrb[0].mxu0
    %v3374 = vadd.f32 %v3290, %v3373
    %v3375 = vpop.f32.mrb[0].mxu0
    %3376 = vmatprep.mubr.bf16.mxu0 0
    %3377 = vmatmul.mubr.bf16.gmra.mrb[0].mxu0 %v3311
    %v3378 = vpop.f32.mrb[0].mxu0
    %v3379 = vadd.f32 %v3290, %v3378
    %v3380 = vpop.f32.mrb[0].mxu0
    %v3381 = vpop.f32.mrb[0].mxu0
    %v3382 = vadd.f32 %v3290, %v3381
    %v3383 = vpop.f32.mrb[0].mxu0
    %3384 = vmatprep.mubr.bf16.mxu0 0
    %3385 = vmatmul.mubr.bf16.gmra.mrb[0].mxu0 %v3314
    %v3386 = vpop.f32.mrb[0].mxu0
    %v3387 = vadd.f32 %v3290, %v3386
    %v3388 = vpop.f32.mrb[0].mxu0
    %v3389 = vpop.f32.mrb[0].mxu0
    %v3390 = vadd.f32 %v3290, %v3389
    %v3391 = vpop.f32.mrb[0].mxu0
    %3392 = vmatprep.mubr.bf16.mxu0 0
    %3393 = vmatmul.mubr.bf16.gmra.mrb[0].mxu0 %v3317
    %v3394 = vpop.f32.mrb[0].mxu0
    %v3395 = vadd.f32 %v3290, %v3394
    %v3396 = vpop.f32.mrb[0].mxu0
    %v3397 = vpop.f32.mrb[0].mxu0
    %v3398 = vadd.f32 %v3290, %v3397
    %v3399 = vpop.f32.mrb[0].mxu0
    %3400 = vmatprep.mubr.bf16.mxu0 0
    %3401 = vmatmul.mubr.bf16.gmra.mrb[0].mxu0 %v3320
    %v3402 = vpop.f32.mrb[0].mxu0
    %v3403 = vadd.f32 %v3290, %v3402
    %v3404 = vpop.f32.mrb[0].mxu0
    %v3405 = vpop.f32.mrb[0].mxu0
    %v3406 = vadd.f32 %v3290, %v3405
    %v3407 = vpop.f32.mrb[0].mxu0
    %3408 = vmatprep.mubr.bf16.mxu0 0
    %3409 = vmatmul.mubr.bf16.gmra.mrb[0].mxu0 %v3323
    %v3410 = vpop.f32.mrb[0].mxu0
    %v3411 = vadd.f32 %v3290, %v3410
    %v3412 = vpop.f32.mrb[0].mxu0
    %v3413 = vpop.f32.mrb[0].mxu0
    %v3414 = vadd.f32 %v3290, %v3413
    %v3415 = vpop.f32.mrb[0].mxu0
    %3416 = vmatprep.mubr.bf16.mxu0 0
    %3417 = vmatmul.mubr.bf16.gmra.mrb[0].mxu0 %v3326
    %v3418 = vpop.f32.mrb[0].mxu0
    %v3419 = vadd.f32 %v3290, %v3418
    %v3420 = vpop.f32.mrb[0].mxu0
    %v3421 = vpop.f32.mrb[0].mxu0
    %v3422 = vadd.f32 %v3290, %v3421
    %v3423 = vpop.f32.mrb[0].mxu0
    %3424 = vdwg.mxu0
    %3425 = vst.msk [vmem:[%s5] sm:$0xff] %vm75, %v3363
    %3426 = vst.msk [vmem:[%s5 + $0x8] sm:$0xff] %vm75, %v3366
    %3427 = vst.msk [vmem:[%s5 + $0x10] sm:$0xff] %vm75, %v3371
    %3428 = vst.msk [vmem:[%s5 + $0x18] sm:$0xff] %vm75, %v3374
    %3429 = vst.msk [vmem:[%s5 + $0x20] sm:$0xff] %vm75, %v3379
    %3430 = vst.msk [vmem:[%s5 + $0x28] sm:$0xff] %vm75, %v3382
    %3431 = vst.msk [vmem:[%s5 + $0x30] sm:$0xff] %vm75, %v3387
    %3432 = vst.msk [vmem:[%s5 + $0x38] sm:$0xff] %vm75, %v3390
    %3433 = vst.msk [vmem:[%s5 + $0x40] sm:$0xff] %vm75, %v3395
    %3434 = vst.msk [vmem:[%s5 + $0x48] sm:$0xff] %vm75, %v3398
    %3435 = vst.msk [vmem:[%s5 + $0x50] sm:$0xff] %vm75, %v3403
    %3436 = vst.msk [vmem:[%s5 + $0x58] sm:$0xff] %vm75, %v3406
    %3437 = vst.msk [vmem:[%s5 + $0x60] sm:$0xff] %vm75, %v3411
    %3438 = vst.msk [vmem:[%s5 + $0x68] sm:$0xff] %vm75, %v3414
    %3439 = vst.msk [vmem:[%s5 + $0x70] sm:$0xff] %vm75, %v3419
    %3440 = vst.msk [vmem:[%s5 + $0x78] sm:$0xff] %vm75, %v3422
    // Predicated region
    $region26: #{tpu_custom_call.1} parent=1 // pred_check
      _
    $region27: #{tpu_custom_call.1} parent=1 // pred_check_branch
      %3442 = sbr.rel (0) target = $region29
    $region28: #{tpu_custom_call.1} parent=1 // pred_region
      _
    $region29: #{tpu_custom_call.1} parent=1 // pred_fallthru
      _
    // Predicated region
    $region30: #{tpu_custom_call.1} parent=1 // pred_check
      _
    $region31: #{tpu_custom_call.1} parent=1 // pred_check_branch
      %3444 = sbr.rel (0) target = $region33
    $region32: #{tpu_custom_call.1} parent=1 // pred_region
      _
    $region33: #{tpu_custom_call.1} parent=1 // pred_fallthru
      _
    %3445 = vsyncpa [#allocation3], 1

</llo_original>
